<compile_context>
chip_gen: v5e
topology: v5e:2x2
jax: 0.10.0
libtpu: 0.0.40
codegen_flags: <defaults>
</compile_context>

<pallas_src>
import jax
import jax.numpy as jnp
from jax.experimental import pallas as pl
from jax.experimental.pallas import tpu as pltpu

REG_MAX = 16
EPS = 1e-7

_TAN_3PI_8 = 2.414213562373095    # tan(3*pi/8)
_TAN_PI_8 = 0.4142135623730951    # tan(pi/8)


def _atan_sq_nonneg(a):
    """arctan(a)**2 for a >= 0 (Cephes atanf range reduction + polynomial).

    Hand-rolled from mul/add/select/reciprocal so the kernel never relies on a
    Mosaic lowering for atan/atan2; only the square is needed, so it is
    sign-free.
    """
    big = a > _TAN_3PI_8
    mid = a > _TAN_PI_8
    x_big = -pl.reciprocal(a, approx=True)                       # a > 2.414 -> |x| < 0.414
    x_mid = (a - 1.0) * pl.reciprocal(a + 1.0, approx=True)      # 0.414 < a <= 2.414
    x = jnp.where(big, x_big, jnp.where(mid, x_mid, a))
    off = jnp.where(big, jnp.pi / 2, jnp.where(mid, jnp.pi / 4, 0.0))
    z = x * x
    p = ((((8.05374449538e-2 * z - 1.38776856032e-1) * z + 1.99777106478e-1) * z
          - 3.33329491539e-1) * z * x + x)
    r = off + p
    return r * r


def _bbox_loss_kernel(geo_ref, pd_ref, iou_ref, part_ref):
    g = geo_ref[...]                              # (11, B, TN)
    b1_x1, b1_y1, b1_x2, b1_y2 = g[0], g[1], g[2], g[3]
    b2_x1, b2_y1, b2_x2, b2_y2 = g[4], g[5], g[6], g[7]
    ax, ay, fw = g[8], g[9], g[10]                # anchor xy, fg_mask * weight

    # ---- CIoU (bbox_iou, xywh=False, CIoU=True) ----
    w1 = b1_x2 - b1_x1
    h1 = b1_y2 - b1_y1 + EPS
    w2 = b2_x2 - b2_x1
    h2 = b2_y2 - b2_y1 + EPS

    inter = (jnp.maximum(jnp.minimum(b1_x2, b2_x2) - jnp.maximum(b1_x1, b2_x1), 0.0) *
             jnp.maximum(jnp.minimum(b1_y2, b2_y2) - jnp.maximum(b1_y1, b2_y1), 0.0))
    union = w1 * h1 + w2 * h2 - inter + EPS
    iou = inter * pl.reciprocal(union, approx=True)

    cw = jnp.maximum(b1_x2, b2_x2) - jnp.minimum(b1_x1, b2_x1)
    ch = jnp.maximum(b1_y2, b2_y2) - jnp.minimum(b1_y1, b2_y1)
    c2 = cw * cw + ch * ch + EPS
    rho2 = ((b2_x1 + b2_x2 - b1_x1 - b1_x2) ** 2 +
            (b2_y1 + b2_y2 - b1_y1 - b1_y2) ** 2) * 0.25
    # atan(w2/h2) - atan(w1/h1) == atan((w2*h1 - w1*h2)/(h1*h2 + w1*w2)) for w,h >= 0;
    # v only needs atan^2 so the sign is irrelevant.
    t = (w2 * h1 - w1 * h2) * pl.reciprocal(h1 * h2 + w1 * w2, approx=True)
    v = (4.0 / (jnp.pi ** 2)) * _atan_sq_nonneg(jnp.abs(t))
    # Forward-only kernel: PyTorch's no_grad() around alpha is irrelevant here.
    alpha = v * pl.reciprocal(v - iou + (1.0 + EPS), approx=True)
    ciou = iou - (rho2 * pl.reciprocal(c2, approx=True) + v * alpha)    # (B, TN)

    iou_ref[...] = ciou
    liou_row = jnp.sum((1.0 - ciou) * fw, axis=0, keepdims=True)        # (1, TN)

    # ---- DFL loss ----
    pd = pd_ref[...]                              # (B, TN, 4R), native dtype / layout
    B, TN = fw.shape
    R = REG_MAX
    RD = 4 * R

    # One batched MXU matmul against a static identity transposes the whole
    # distribution tensor (anchors stay on lanes, bins leave the lane axis).
    ident = (jax.lax.broadcasted_iota(jnp.int32, (B, RD, RD), 1) ==
             jax.lax.broadcasted_iota(jnp.int32, (B, RD, RD), 2)).astype(pd.dtype)
    logits_all = jax.lax.dot_general(
        ident, pd, dimension_numbers=(((2,), (2,)), ((0,), (0,))),
        preferred_element_type=jnp.float32)       # (B, 4R, TN)

    k_f = jax.lax.broadcasted_iota(jnp.int32, (B, R, TN), 1).astype(jnp.float32)
    # bbox2dist order: (l, t, r, b)
    dists = (ax - b2_x1, ay - b2_y1, b2_x2 - ax, b2_y2 - ay)            # each (B, TN)

    dfl_sum = jnp.zeros((B, TN), dtype=jnp.float32)
    for s in range(4):
        logits = logits_all[:, s * R:(s + 1) * R, :]          # (B, R, TN)
        m_k = jnp.max(logits, axis=1, keepdims=True)          # single running max
        lse = m_k[:, 0, :] + jnp.log(jnp.sum(jnp.exp(logits - m_k), axis=1))   # (B, TN)
        tgt = jnp.clip(dists[s], 0.0, R - 1 - 0.01)           # (B, TN)
        # Triangular kernel == (wl at floor(tgt), wr at floor(tgt)+1), 0 elsewhere.
        sel = jnp.maximum(1.0 - jnp.abs(k_f - tgt[:, None, :]), 0.0)    # (B, R, TN)
        gathered = jnp.sum(sel * logits, axis=1)               # (B, TN)
        # wl*CE(tl) + wr*CE(tl+1) == lse - (wl*logit[tl] + wr*logit[tl+1]),  wl+wr=1
        dfl_sum = dfl_sum + (lse - gathered)

    ldfl_row = jnp.sum(dfl_sum * fw, axis=0, keepdims=True) * 0.25      # mean of 4 sides

    # Merged per-tile partials: row 0 = IoU-loss partial, row 1 = DFL-loss partial.
    part_ref[0, 0:1, :] = liou_row
    part_ref[0, 1:2, :] = ldfl_row


def _choose_block_n(n):
    """Lane-dense anchor tile; shrink only if 512 would leave a single-tile grid."""
    for bn in (512, 256, 128):
        if n >= 2 * bn:
            return bn
    return 128


@jax.jit
def bbox_loss(pred_dist, pred_bboxes, anchor_points, target_bboxes,
              target_scores, target_scores_sum, fg_mask):
    f32 = jnp.float32
    B, N, _ = pred_bboxes.shape
    block_n = _choose_block_n(N)
    n_pad = pl.cdiv(N, block_n) * block_n       # pad instead of single-tile fallback
    grid_n = n_pad // block_n
    pad = n_pad - N

    pb = pred_bboxes.astype(f32)
    tb = target_bboxes.astype(f32)
    ax = jnp.broadcast_to(anchor_points[:, 0].astype(f32)[None, :], (B, N))
    ay = jnp.broadcast_to(anchor_points[:, 1].astype(f32)[None, :], (B, N))
    # target_scores pre-reduced and fg mask folded in -> single per-anchor weight.
    fw = fg_mask.astype(f32) * jnp.sum(target_scores.astype(f32), axis=-1)

    # Packed per-anchor geometry (one DMA stream): rows 0-3 pred xyxy, 4-7 target
    # xyxy, 8-9 anchor xy, 10 fg*weight.
    # TODO(synk): for tiny batch (B < 8) a sublane-dense (..., 8, lane) anchor folding
    # of the CIoU phase would lift VPU utilization further; skipped to keep pred_dist
    # in its natural layout for the single identity matmul.
    geo = jnp.stack([pb[..., 0], pb[..., 1], pb[..., 2], pb[..., 3],
                     tb[..., 0], tb[..., 1], tb[..., 2], tb[..., 3],
                     ax, ay, fw], axis=0)                                 # (11, B, N)
    pd = pred_dist                                # native dtype, natural (B, N, 4R) layout
    if pad:
        geo = jnp.pad(geo, ((0, 0), (0, 0), (0, pad)))
        pd = jnp.pad(pd, ((0, 0), (0, pad), (0, 0)))

    iou_map, parts = pl.pallas_call(
        _bbox_loss_kernel,
        grid=(grid_n,),
        out_shape=(
            jax.ShapeDtypeStruct((B, n_pad), f32),               # per-anchor CIoU
            jax.ShapeDtypeStruct((grid_n, 2, block_n), f32),     # per-tile (iou, dfl) partials
        ),
        in_specs=[
            pl.BlockSpec((11, B, block_n), lambda i: (0, 0, i)),             # geometry pack
            pl.BlockSpec((B, block_n, 4 * REG_MAX), lambda i: (0, i, 0)),    # pred_dist
        ],
        out_specs=(
            pl.BlockSpec((B, block_n), lambda i: (0, i)),
            pl.BlockSpec((1, 2, block_n), lambda i: (i, 0, 0)),
        ),
        compiler_params=pltpu.CompilerParams(
            dimension_semantics=("parallel",),      # no cross-tile accumulator -> shardable
            vmem_limit_bytes=32 * 1024 * 1024,
        ),
    )(geo, pd)

    inv_tss = 1.0 / jnp.asarray(target_scores_sum, f32)
    loss_iou = jnp.sum(parts[:, 0, :]) * inv_tss
    loss_dfl = jnp.sum(parts[:, 1, :]) * inv_tss
    return loss_iou, loss_dfl, iou_map[:, :N, None]     # iou -> (B, N, 1), matches torch


def _reference(pred_dist, pred_bboxes, anchor_points, target_bboxes,
               target_scores, target_scores_sum, fg_mask):
    """Pure-JAX reference mirroring the PyTorch module (mask-gathers as mask-sums)."""
    eps = 1e-7
    b1_x1, b1_y1, b1_x2, b1_y2 = [pred_bboxes[..., i] for i in range(4)]
    b2_x1, b2_y1, b2_x2, b2_y2 = [target_bboxes[..., i] for i in range(4)]
    w1, h1 = b1_x2 - b1_x1, b1_y2 - b1_y1 + eps
    w2, h2 = b2_x2 - b2_x1, b2_y2 - b2_y1 + eps
    inter = jnp.maximum(jnp.minimum(b1_x2, b2_x2) - jnp.maximum(b1_x1, b2_x1), 0) * \
            jnp.maximum(jnp.minimum(b1_y2, b2_y2) - jnp.maximum(b1_y1, b2_y1), 0)
    union = w1 * h1 + w2 * h2 - inter + eps
    iou = inter / union
    cw = jnp.maximum(b1_x2, b2_x2) - jnp.minimum(b1_x1, b2_x1)
    ch = jnp.maximum(b1_y2, b2_y2) - jnp.minimum(b1_y1, b2_y1)
    c2 = cw ** 2 + ch ** 2 + eps
    rho2 = ((b2_x1 + b2_x2 - b1_x1 - b1_x2) ** 2 + (b2_y1 + b2_y2 - b1_y1 - b1_y2) ** 2) / 4
    v = (4 / jnp.pi ** 2) * (jnp.arctan(w2 / h2) - jnp.arctan(w1 / h1)) ** 2
    alpha = v / (v - iou + (1 + eps))
    ciou = iou - (rho2 / c2 + v * alpha)                     # (B, N)

    weight = target_scores.sum(-1)                            # (B, N)
    fg = fg_mask.astype(jnp.float32)
    loss_iou = jnp.sum(fg * (1.0 - ciou) * weight) / target_scores_sum

    B, N, _ = pred_bboxes.shape
    lt = anchor_points[None, :, :] - target_bboxes[..., :2]
    rb = target_bboxes[..., 2:] - anchor_points[None, :, :]
    target_ltrb = jnp.clip(jnp.concatenate([lt, rb], -1), 0, REG_MAX - 1 - 0.01)  # (B,N,4)
    logsm = jax.nn.log_softmax(pred_dist.reshape(B, N, 4, REG_MAX), axis=-1)
    tl = jnp.floor(target_ltrb)
    wl = (tl + 1.0) - target_ltrb
    wr = 1.0 - wl
    ce_l = -jnp.take_along_axis(logsm, tl.astype(jnp.int32)[..., None], -1)[..., 0]
    ce_r = -jnp.take_along_axis(logsm, (tl + 1).astype(jnp.int32)[..., None], -1)[..., 0]
    dfl = jnp.mean(ce_l * wl + ce_r * wr, axis=-1)            # (B, N)
    loss_dfl = jnp.sum(fg * dfl * weight) / target_scores_sum
    return loss_iou, loss_dfl, ciou[..., None]


if __name__ == "__main__":
    B, nc = 2, 4
    gh, gw = 32, 66
    N = gh * gw                      # 2112 anchors (not a multiple of 512 -> exercises padding)
    key = jax.random.PRNGKey(0)
    k1, k2, k3, k4, k5 = jax.random.split(key, 5)

    gx, gy = jnp.meshgrid(jnp.arange(gw, dtype=jnp.float32),
                          jnp.arange(gh, dtype=jnp.float32))
    anchor_points = jnp.stack([gx.reshape(-1), gy.reshape(-1)], -1) + 0.5      # (N, 2)

    def rand_boxes(k):
        d = jax.random.uniform(k, (B, N, 4), minval=0.5, maxval=7.5, dtype=jnp.float32)
        axp = anchor_points[None, :, 0]
        ayp = anchor_points[None, :, 1]
        return jnp.stack([axp - d[..., 0], ayp - d[..., 1],
                          axp + d[..., 2], ayp + d[..., 3]], -1)               # (B, N, 4)

    pred_bboxes = rand_boxes(k1)
    target_bboxes = rand_boxes(k2)
    pred_dist = jax.random.normal(k3, (B, N, 4 * REG_MAX), dtype=jnp.float32)
    target_scores = jax.random.uniform(k4, (B, N, nc), dtype=jnp.float32)
    fg_mask = jax.random.uniform(k5, (B, N)) < 0.3
    target_scores_sum = jnp.maximum(target_scores.sum(), 1.0)

    out = bbox_loss(pred_dist, pred_bboxes, anchor_points, target_bboxes,
                    target_scores, target_scores_sum, fg_mask)
    jax.block_until_ready(out)
    loss_iou, loss_dfl, iou = out

    ref_iou, ref_dfl, ref_iou_map = _reference(
        pred_dist, pred_bboxes, anchor_points, target_bboxes,
        target_scores, target_scores_sum, fg_mask)

    # Scalar losses are tight; the per-anchor CIoU map uses EUP approximate
    # reciprocals, so it is validated at a slightly looser elementwise tolerance.
    assert jnp.allclose(loss_iou, ref_iou, rtol=2e-3, atol=2e-3), (loss_iou, ref_iou)
    assert jnp.allclose(loss_dfl, ref_dfl, rtol=2e-3, atol=2e-3), (loss_dfl, ref_dfl)
    assert jnp.allclose(iou, ref_iou_map, rtol=5e-3, atol=5e-3)
    assert iou.shape == (B, N, 1)

    print("KERNEL_OK")
</pallas_src>

<mosaic_0001>
module attributes {stable_mosaic.version = 11 : i64} {
  func.func @_bbox_loss_kernel(%arg0: i32, %arg1: memref<11x2x512xf32, #tpu.memory_space<vmem>>, %arg2: memref<2x512x64xf32, #tpu.memory_space<vmem>>, %arg3: memref<2x512xf32, #tpu.memory_space<vmem>>, %arg4: memref<1x2x512xf32, #tpu.memory_space<vmem>>) attributes {dimension_semantics = [#tpu.dimension_semantics<parallel>], iteration_bounds = array<i64: 5>, scalar_prefetch = 0 : i64, scratch_operands = 0 : i64, tpu.core_type = #tpu.core_type<tc>, window_params = [{transform_indices = @transform_0, window_bounds = array<i64: 11, 2, 512>}, {transform_indices = @transform_1, window_bounds = array<i64: 2, 512, 64>}, {transform_indices = @transform_2, window_bounds = array<i64: 2, 512>}, {transform_indices = @transform_3, window_bounds = array<i64: 1, 2, 512>}]} {
    %c0 = arith.constant 0 : index
    %c0_0 = arith.constant 0 : index
    %c0_1 = arith.constant 0 : index
    %0 = vector.load %arg1[%c0, %c0_0, %c0_1] : memref<11x2x512xf32, #tpu.memory_space<vmem>>, vector<11x2x512xf32>
    %1 = vector.extract_strided_slice %0 {offsets = [0, 0, 0], sizes = [1, 2, 512], strides = [1, 1, 1]} : vector<11x2x512xf32> to vector<1x2x512xf32>
    %2 = vector.shape_cast %1 : vector<1x2x512xf32> to vector<2x512xf32>
    %3 = vector.extract_strided_slice %0 {offsets = [1, 0, 0], sizes = [1, 2, 512], strides = [1, 1, 1]} : vector<11x2x512xf32> to vector<1x2x512xf32>
    %4 = vector.shape_cast %3 : vector<1x2x512xf32> to vector<2x512xf32>
    %5 = vector.extract_strided_slice %0 {offsets = [2, 0, 0], sizes = [1, 2, 512], strides = [1, 1, 1]} : vector<11x2x512xf32> to vector<1x2x512xf32>
    %6 = vector.shape_cast %5 : vector<1x2x512xf32> to vector<2x512xf32>
    %7 = vector.extract_strided_slice %0 {offsets = [3, 0, 0], sizes = [1, 2, 512], strides = [1, 1, 1]} : vector<11x2x512xf32> to vector<1x2x512xf32>
    %8 = vector.shape_cast %7 : vector<1x2x512xf32> to vector<2x512xf32>
    %9 = vector.extract_strided_slice %0 {offsets = [4, 0, 0], sizes = [1, 2, 512], strides = [1, 1, 1]} : vector<11x2x512xf32> to vector<1x2x512xf32>
    %10 = vector.shape_cast %9 : vector<1x2x512xf32> to vector<2x512xf32>
    %11 = vector.extract_strided_slice %0 {offsets = [5, 0, 0], sizes = [1, 2, 512], strides = [1, 1, 1]} : vector<11x2x512xf32> to vector<1x2x512xf32>
    %12 = vector.shape_cast %11 : vector<1x2x512xf32> to vector<2x512xf32>
    %13 = vector.extract_strided_slice %0 {offsets = [6, 0, 0], sizes = [1, 2, 512], strides = [1, 1, 1]} : vector<11x2x512xf32> to vector<1x2x512xf32>
    %14 = vector.shape_cast %13 : vector<1x2x512xf32> to vector<2x512xf32>
    %15 = vector.extract_strided_slice %0 {offsets = [7, 0, 0], sizes = [1, 2, 512], strides = [1, 1, 1]} : vector<11x2x512xf32> to vector<1x2x512xf32>
    %16 = vector.shape_cast %15 : vector<1x2x512xf32> to vector<2x512xf32>
    %17 = vector.extract_strided_slice %0 {offsets = [8, 0, 0], sizes = [1, 2, 512], strides = [1, 1, 1]} : vector<11x2x512xf32> to vector<1x2x512xf32>
    %18 = vector.shape_cast %17 : vector<1x2x512xf32> to vector<2x512xf32>
    %19 = vector.extract_strided_slice %0 {offsets = [9, 0, 0], sizes = [1, 2, 512], strides = [1, 1, 1]} : vector<11x2x512xf32> to vector<1x2x512xf32>
    %20 = vector.shape_cast %19 : vector<1x2x512xf32> to vector<2x512xf32>
    %21 = vector.extract_strided_slice %0 {offsets = [10, 0, 0], sizes = [1, 2, 512], strides = [1, 1, 1]} : vector<11x2x512xf32> to vector<1x2x512xf32>
    %22 = vector.shape_cast %21 : vector<1x2x512xf32> to vector<2x512xf32>
    %23 = arith.subf %6, %2 : vector<2x512xf32>
    %24 = arith.subf %8, %4 : vector<2x512xf32>
    %cst = arith.constant 1.000000e-07 : f32
    %25 = vector.broadcast %cst : f32 to vector<2x512xf32>
    %26 = arith.addf %24, %25 : vector<2x512xf32>
    %27 = arith.subf %14, %10 : vector<2x512xf32>
    %28 = arith.subf %16, %12 : vector<2x512xf32>
    %cst_2 = arith.constant 1.000000e-07 : f32
    %29 = vector.broadcast %cst_2 : f32 to vector<2x512xf32>
    %30 = arith.addf %28, %29 : vector<2x512xf32>
    %31 = arith.minimumf %6, %14 : vector<2x512xf32>
    %32 = arith.maximumf %2, %10 : vector<2x512xf32>
    %33 = arith.subf %31, %32 : vector<2x512xf32>
    %cst_3 = arith.constant 0.000000e+00 : f32
    %34 = vector.broadcast %cst_3 : f32 to vector<2x512xf32>
    %35 = arith.maximumf %33, %34 : vector<2x512xf32>
    %36 = arith.minimumf %8, %16 : vector<2x512xf32>
    %37 = arith.maximumf %4, %12 : vector<2x512xf32>
    %38 = arith.subf %36, %37 : vector<2x512xf32>
    %cst_4 = arith.constant 0.000000e+00 : f32
    %39 = vector.broadcast %cst_4 : f32 to vector<2x512xf32>
    %40 = arith.maximumf %38, %39 : vector<2x512xf32>
    %41 = arith.mulf %35, %40 : vector<2x512xf32>
    %42 = arith.mulf %23, %26 : vector<2x512xf32>
    %43 = arith.mulf %27, %30 : vector<2x512xf32>
    %44 = arith.addf %42, %43 : vector<2x512xf32>
    %45 = arith.subf %44, %41 : vector<2x512xf32>
    %cst_5 = arith.constant 1.000000e-07 : f32
    %46 = vector.broadcast %cst_5 : f32 to vector<2x512xf32>
    %47 = arith.addf %45, %46 : vector<2x512xf32>
    %48 = tpu.reciprocal %47 {approx = true} : vector<2x512xf32> -> vector<2x512xf32>
    %49 = arith.mulf %41, %48 : vector<2x512xf32>
    %50 = arith.maximumf %6, %14 : vector<2x512xf32>
    %51 = arith.minimumf %2, %10 : vector<2x512xf32>
    %52 = arith.subf %50, %51 : vector<2x512xf32>
    %53 = arith.maximumf %8, %16 : vector<2x512xf32>
    %54 = arith.minimumf %4, %12 : vector<2x512xf32>
    %55 = arith.subf %53, %54 : vector<2x512xf32>
    %56 = arith.mulf %52, %52 : vector<2x512xf32>
    %57 = arith.mulf %55, %55 : vector<2x512xf32>
    %58 = arith.addf %56, %57 : vector<2x512xf32>
    %cst_6 = arith.constant 1.000000e-07 : f32
    %59 = vector.broadcast %cst_6 : f32 to vector<2x512xf32>
    %60 = arith.addf %58, %59 : vector<2x512xf32>
    %61 = arith.addf %10, %14 : vector<2x512xf32>
    %62 = arith.subf %61, %2 : vector<2x512xf32>
    %63 = arith.subf %62, %6 : vector<2x512xf32>
    %64 = arith.mulf %63, %63 : vector<2x512xf32>
    %65 = arith.addf %12, %16 : vector<2x512xf32>
    %66 = arith.subf %65, %4 : vector<2x512xf32>
    %67 = arith.subf %66, %8 : vector<2x512xf32>
    %68 = arith.mulf %67, %67 : vector<2x512xf32>
    %69 = arith.addf %64, %68 : vector<2x512xf32>
    %cst_7 = arith.constant 2.500000e-01 : f32
    %70 = vector.broadcast %cst_7 : f32 to vector<2x512xf32>
    %71 = arith.mulf %69, %70 : vector<2x512xf32>
    %72 = arith.mulf %27, %26 : vector<2x512xf32>
    %73 = arith.mulf %23, %30 : vector<2x512xf32>
    %74 = arith.subf %72, %73 : vector<2x512xf32>
    %75 = arith.mulf %26, %30 : vector<2x512xf32>
    %76 = arith.mulf %23, %27 : vector<2x512xf32>
    %77 = arith.addf %75, %76 : vector<2x512xf32>
    %78 = tpu.reciprocal %77 {approx = true} : vector<2x512xf32> -> vector<2x512xf32>
    %79 = arith.mulf %74, %78 : vector<2x512xf32>
    %80 = math.absf %79 : vector<2x512xf32>
    %cst_8 = arith.constant 2.41421366 : f32
    %81 = vector.broadcast %cst_8 : f32 to vector<2x512xf32>
    %82 = arith.cmpf ogt, %80, %81 : vector<2x512xf32>
    %cst_9 = arith.constant 0.414213568 : f32
    %83 = vector.broadcast %cst_9 : f32 to vector<2x512xf32>
    %84 = arith.cmpf ogt, %80, %83 : vector<2x512xf32>
    %85 = tpu.reciprocal %80 {approx = true} : vector<2x512xf32> -> vector<2x512xf32>
    %cst_10 = arith.constant 0.000000e+00 : f32
    %86 = vector.broadcast %cst_10 : f32 to vector<2x512xf32>
    %87 = arith.subf %86, %85 : vector<2x512xf32>
    %cst_11 = arith.constant 1.000000e+00 : f32
    %88 = vector.broadcast %cst_11 : f32 to vector<2x512xf32>
    %89 = arith.subf %80, %88 : vector<2x512xf32>
    %cst_12 = arith.constant 1.000000e+00 : f32
    %90 = vector.broadcast %cst_12 : f32 to vector<2x512xf32>
    %91 = arith.addf %80, %90 : vector<2x512xf32>
    %92 = tpu.reciprocal %91 {approx = true} : vector<2x512xf32> -> vector<2x512xf32>
    %93 = arith.mulf %89, %92 : vector<2x512xf32>
    %94 = arith.select %84, %93, %80 : vector<2x512xi1>, vector<2x512xf32>
    %95 = arith.select %82, %87, %94 : vector<2x512xi1>, vector<2x512xf32>
    %cst_13 = arith.constant 0.785398185 : f32
    %cst_14 = arith.constant 0.000000e+00 : f32
    %96 = vector.broadcast %cst_13 : f32 to vector<2x512xf32>
    %97 = vector.broadcast %cst_14 : f32 to vector<2x512xf32>
    %98 = arith.select %84, %96, %97 : vector<2x512xi1>, vector<2x512xf32>
    %cst_15 = arith.constant 1.57079637 : f32
    %99 = vector.broadcast %cst_15 : f32 to vector<2x512xf32>
    %100 = arith.select %82, %99, %98 : vector<2x512xi1>, vector<2x512xf32>
    %101 = arith.mulf %95, %95 : vector<2x512xf32>
    %cst_16 = arith.constant 0.0805374458 : f32
    %102 = vector.broadcast %cst_16 : f32 to vector<2x512xf32>
    %103 = arith.mulf %102, %101 : vector<2x512xf32>
    %cst_17 = arith.constant 0.138776854 : f32
    %104 = vector.broadcast %cst_17 : f32 to vector<2x512xf32>
    %105 = arith.subf %103, %104 : vector<2x512xf32>
    %106 = arith.mulf %105, %101 : vector<2x512xf32>
    %cst_18 = arith.constant 0.199777111 : f32
    %107 = vector.broadcast %cst_18 : f32 to vector<2x512xf32>
    %108 = arith.addf %106, %107 : vector<2x512xf32>
    %109 = arith.mulf %108, %101 : vector<2x512xf32>
    %cst_19 = arith.constant 0.333329499 : f32
    %110 = vector.broadcast %cst_19 : f32 to vector<2x512xf32>
    %111 = arith.subf %109, %110 : vector<2x512xf32>
    %112 = arith.mulf %111, %101 : vector<2x512xf32>
    %113 = arith.mulf %112, %95 : vector<2x512xf32>
    %114 = arith.addf %113, %95 : vector<2x512xf32>
    %115 = arith.addf %100, %114 : vector<2x512xf32>
    %116 = arith.mulf %115, %115 : vector<2x512xf32>
    %cst_20 = arith.constant 0.405284733 : f32
    %117 = vector.broadcast %cst_20 : f32 to vector<2x512xf32>
    %118 = arith.mulf %117, %116 : vector<2x512xf32>
    %119 = arith.subf %118, %49 : vector<2x512xf32>
    %cst_21 = arith.constant 1.00000012 : f32
    %120 = vector.broadcast %cst_21 : f32 to vector<2x512xf32>
    %121 = arith.addf %119, %120 : vector<2x512xf32>
    %122 = tpu.reciprocal %121 {approx = true} : vector<2x512xf32> -> vector<2x512xf32>
    %123 = arith.mulf %118, %122 : vector<2x512xf32>
    %124 = tpu.reciprocal %60 {approx = true} : vector<2x512xf32> -> vector<2x512xf32>
    %125 = arith.mulf %71, %124 : vector<2x512xf32>
    %126 = arith.mulf %118, %123 : vector<2x512xf32>
    %127 = arith.addf %125, %126 : vector<2x512xf32>
    %128 = arith.subf %49, %127 : vector<2x512xf32>
    %c0_22 = arith.constant 0 : index
    %c0_23 = arith.constant 0 : index
    %129 = vector.load %arg3[%c0_22, %c0_23] : memref<2x512xf32, #tpu.memory_space<vmem>>, vector<2x512xf32>
    tpu.vector_store %arg3[%c0_22, %c0_23], %128 {strides = array<i32>} : memref<2x512xf32, #tpu.memory_space<vmem>>, vector<2x512xf32>,
    %cst_24 = arith.constant 1.000000e+00 : f32
    %130 = vector.broadcast %cst_24 : f32 to vector<2x512xf32>
    %131 = arith.subf %130, %128 : vector<2x512xf32>
    %132 = arith.mulf %131, %22 : vector<2x512xf32>
    %cst_25 = arith.constant dense<0.000000e+00> : vector<512xf32>
    %133 = vector.multi_reduction <add>, %132, %cst_25 [0] : vector<2x512xf32> to vector<512xf32>
    %134 = vector.shape_cast %133 : vector<512xf32> to vector<1x512xf32>
    %c0_26 = arith.constant 0 : index
    %c0_27 = arith.constant 0 : index
    %c0_28 = arith.constant 0 : index
    %135 = vector.load %arg2[%c0_26, %c0_27, %c0_28] : memref<2x512x64xf32, #tpu.memory_space<vmem>>, vector<2x512x64xf32>
    %136 = tpu.iota {dimensions = array<i32: 1>} : vector<2x64x64xi32>
    %137 = tpu.iota {dimensions = array<i32: 2>} : vector<2x64x64xi32>
    %138 = arith.cmpi eq, %136, %137 : vector<2x64x64xi32>
    %139 = arith.extui %138 : vector<2x64x64xi1> to vector<2x64x64xi32>
    %140 = arith.sitofp %139 : vector<2x64x64xi32> to vector<2x64x64xf32>
    %cst_29 = arith.constant dense<0.000000e+00> : vector<2x64x512xf32>
    %141 = tpu.matmul %140, %135, %cst_29 {dimension_numbers = #tpu.dot_dimension_numbers<[2], [2], [1], [1], [0, 0, 0, 1, 1, 1], [0], [0]>} : vector<2x64x64xf32>, vector<2x512x64xf32>, vector<2x64x512xf32> -> vector<2x64x512xf32>
    %142 = tpu.iota {dimensions = array<i32: 1>} : vector<2x16x512xi32>
    %143 = arith.sitofp %142 : vector<2x16x512xi32> to vector<2x16x512xf32>
    %144 = arith.subf %18, %10 : vector<2x512xf32>
    %145 = arith.subf %20, %12 : vector<2x512xf32>
    %146 = arith.subf %14, %18 : vector<2x512xf32>
    %147 = arith.subf %16, %20 : vector<2x512xf32>
    %cst_30 = arith.constant 0.000000e+00 : f32
    %148 = vector.broadcast %cst_30 : f32 to vector<2x512xf32>
    %149 = vector.extract_strided_slice %141 {offsets = [0, 0, 0], sizes = [2, 16, 512], strides = [1, 1, 1]} : vector<2x64x512xf32> to vector<2x16x512xf32>
    %cst_31 = arith.constant dense<0xFF800000> : vector<2x512xf32>
    %150 = vector.multi_reduction <maximumf>, %149, %cst_31 [1] : vector<2x16x512xf32> to vector<2x512xf32>
    %151 = vector.shape_cast %150 : vector<2x512xf32> to vector<2x1x512xf32>
    %152 = vector.shape_cast %151 : vector<2x1x512xf32> to vector<2x512xf32>
    %153 = vector.broadcast %151 : vector<2x1x512xf32> to vector<2x16x512xf32>
    %154 = arith.subf %149, %153 : vector<2x16x512xf32>
    %155 = math.exp %154 : vector<2x16x512xf32>
    %cst_32 = arith.constant dense<0.000000e+00> : vector<2x512xf32>
    %156 = vector.multi_reduction <add>, %155, %cst_32 [1] : vector<2x16x512xf32> to vector<2x512xf32>
    %157 = math.log %156 : vector<2x512xf32>
    %158 = arith.addf %152, %157 : vector<2x512xf32>
    %cst_33 = arith.constant 0.000000e+00 : f32
    %cst_34 = arith.constant 1.499000e+01 : f32
    %159 = vector.broadcast %cst_33 : f32 to vector<2x512xf32>
    %160 = arith.maximumf %159, %144 : vector<2x512xf32>
    %161 = vector.broadcast %cst_34 : f32 to vector<2x512xf32>
    %162 = arith.minimumf %161, %160 : vector<2x512xf32>
    %163 = vector.shape_cast %162 : vector<2x512xf32> to vector<2x1x512xf32>
    %164 = vector.broadcast %163 : vector<2x1x512xf32> to vector<2x16x512xf32>
    %165 = arith.subf %143, %164 : vector<2x16x512xf32>
    %166 = math.absf %165 : vector<2x16x512xf32>
    %cst_35 = arith.constant 1.000000e+00 : f32
    %167 = vector.broadcast %cst_35 : f32 to vector<2x16x512xf32>
    %168 = arith.subf %167, %166 : vector<2x16x512xf32>
    %cst_36 = arith.constant 0.000000e+00 : f32
    %169 = vector.broadcast %cst_36 : f32 to vector<2x16x512xf32>
    %170 = arith.maximumf %168, %169 : vector<2x16x512xf32>
    %171 = arith.mulf %170, %149 : vector<2x16x512xf32>
    %cst_37 = arith.constant dense<0.000000e+00> : vector<2x512xf32>
    %172 = vector.multi_reduction <add>, %171, %cst_37 [1] : vector<2x16x512xf32> to vector<2x512xf32>
    %173 = arith.subf %158, %172 : vector<2x512xf32>
    %174 = arith.addf %148, %173 : vector<2x512xf32>
    %175 = vector.extract_strided_slice %141 {offsets = [0, 16, 0], sizes = [2, 16, 512], strides = [1, 1, 1]} : vector<2x64x512xf32> to vector<2x16x512xf32>
    %cst_38 = arith.constant dense<0xFF800000> : vector<2x512xf32>
    %176 = vector.multi_reduction <maximumf>, %175, %cst_38 [1] : vector<2x16x512xf32> to vector<2x512xf32>
    %177 = vector.shape_cast %176 : vector<2x512xf32> to vector<2x1x512xf32>
    %178 = vector.shape_cast %177 : vector<2x1x512xf32> to vector<2x512xf32>
    %179 = vector.broadcast %177 : vector<2x1x512xf32> to vector<2x16x512xf32>
    %180 = arith.subf %175, %179 : vector<2x16x512xf32>
    %181 = math.exp %180 : vector<2x16x512xf32>
    %cst_39 = arith.constant dense<0.000000e+00> : vector<2x512xf32>
    %182 = vector.multi_reduction <add>, %181, %cst_39 [1] : vector<2x16x512xf32> to vector<2x512xf32>
    %183 = math.log %182 : vector<2x512xf32>
    %184 = arith.addf %178, %183 : vector<2x512xf32>
    %cst_40 = arith.constant 0.000000e+00 : f32
    %cst_41 = arith.constant 1.499000e+01 : f32
    %185 = vector.broadcast %cst_40 : f32 to vector<2x512xf32>
    %186 = arith.maximumf %185, %145 : vector<2x512xf32>
    %187 = vector.broadcast %cst_41 : f32 to vector<2x512xf32>
    %188 = arith.minimumf %187, %186 : vector<2x512xf32>
    %189 = vector.shape_cast %188 : vector<2x512xf32> to vector<2x1x512xf32>
    %190 = vector.broadcast %189 : vector<2x1x512xf32> to vector<2x16x512xf32>
    %191 = arith.subf %143, %190 : vector<2x16x512xf32>
    %192 = math.absf %191 : vector<2x16x512xf32>
    %cst_42 = arith.constant 1.000000e+00 : f32
    %193 = vector.broadcast %cst_42 : f32 to vector<2x16x512xf32>
    %194 = arith.subf %193, %192 : vector<2x16x512xf32>
    %cst_43 = arith.constant 0.000000e+00 : f32
    %195 = vector.broadcast %cst_43 : f32 to vector<2x16x512xf32>
    %196 = arith.maximumf %194, %195 : vector<2x16x512xf32>
    %197 = arith.mulf %196, %175 : vector<2x16x512xf32>
    %cst_44 = arith.constant dense<0.000000e+00> : vector<2x512xf32>
    %198 = vector.multi_reduction <add>, %197, %cst_44 [1] : vector<2x16x512xf32> to vector<2x512xf32>
    %199 = arith.subf %184, %198 : vector<2x512xf32>
    %200 = arith.addf %174, %199 : vector<2x512xf32>
    %201 = vector.extract_strided_slice %141 {offsets = [0, 32, 0], sizes = [2, 16, 512], strides = [1, 1, 1]} : vector<2x64x512xf32> to vector<2x16x512xf32>
    %cst_45 = arith.constant dense<0xFF800000> : vector<2x512xf32>
    %202 = vector.multi_reduction <maximumf>, %201, %cst_45 [1] : vector<2x16x512xf32> to vector<2x512xf32>
    %203 = vector.shape_cast %202 : vector<2x512xf32> to vector<2x1x512xf32>
    %204 = vector.shape_cast %203 : vector<2x1x512xf32> to vector<2x512xf32>
    %205 = vector.broadcast %203 : vector<2x1x512xf32> to vector<2x16x512xf32>
    %206 = arith.subf %201, %205 : vector<2x16x512xf32>
    %207 = math.exp %206 : vector<2x16x512xf32>
    %cst_46 = arith.constant dense<0.000000e+00> : vector<2x512xf32>
    %208 = vector.multi_reduction <add>, %207, %cst_46 [1] : vector<2x16x512xf32> to vector<2x512xf32>
    %209 = math.log %208 : vector<2x512xf32>
    %210 = arith.addf %204, %209 : vector<2x512xf32>
    %cst_47 = arith.constant 0.000000e+00 : f32
    %cst_48 = arith.constant 1.499000e+01 : f32
    %211 = vector.broadcast %cst_47 : f32 to vector<2x512xf32>
    %212 = arith.maximumf %211, %146 : vector<2x512xf32>
    %213 = vector.broadcast %cst_48 : f32 to vector<2x512xf32>
    %214 = arith.minimumf %213, %212 : vector<2x512xf32>
    %215 = vector.shape_cast %214 : vector<2x512xf32> to vector<2x1x512xf32>
    %216 = vector.broadcast %215 : vector<2x1x512xf32> to vector<2x16x512xf32>
    %217 = arith.subf %143, %216 : vector<2x16x512xf32>
    %218 = math.absf %217 : vector<2x16x512xf32>
    %cst_49 = arith.constant 1.000000e+00 : f32
    %219 = vector.broadcast %cst_49 : f32 to vector<2x16x512xf32>
    %220 = arith.subf %219, %218 : vector<2x16x512xf32>
    %cst_50 = arith.constant 0.000000e+00 : f32
    %221 = vector.broadcast %cst_50 : f32 to vector<2x16x512xf32>
    %222 = arith.maximumf %220, %221 : vector<2x16x512xf32>
    %223 = arith.mulf %222, %201 : vector<2x16x512xf32>
    %cst_51 = arith.constant dense<0.000000e+00> : vector<2x512xf32>
    %224 = vector.multi_reduction <add>, %223, %cst_51 [1] : vector<2x16x512xf32> to vector<2x512xf32>
    %225 = arith.subf %210, %224 : vector<2x512xf32>
    %226 = arith.addf %200, %225 : vector<2x512xf32>
    %227 = vector.extract_strided_slice %141 {offsets = [0, 48, 0], sizes = [2, 16, 512], strides = [1, 1, 1]} : vector<2x64x512xf32> to vector<2x16x512xf32>
    %cst_52 = arith.constant dense<0xFF800000> : vector<2x512xf32>
    %228 = vector.multi_reduction <maximumf>, %227, %cst_52 [1] : vector<2x16x512xf32> to vector<2x512xf32>
    %229 = vector.shape_cast %228 : vector<2x512xf32> to vector<2x1x512xf32>
    %230 = vector.shape_cast %229 : vector<2x1x512xf32> to vector<2x512xf32>
    %231 = vector.broadcast %229 : vector<2x1x512xf32> to vector<2x16x512xf32>
    %232 = arith.subf %227, %231 : vector<2x16x512xf32>
    %233 = math.exp %232 : vector<2x16x512xf32>
    %cst_53 = arith.constant dense<0.000000e+00> : vector<2x512xf32>
    %234 = vector.multi_reduction <add>, %233, %cst_53 [1] : vector<2x16x512xf32> to vector<2x512xf32>
    %235 = math.log %234 : vector<2x512xf32>
    %236 = arith.addf %230, %235 : vector<2x512xf32>
    %cst_54 = arith.constant 0.000000e+00 : f32
    %cst_55 = arith.constant 1.499000e+01 : f32
    %237 = vector.broadcast %cst_54 : f32 to vector<2x512xf32>
    %238 = arith.maximumf %237, %147 : vector<2x512xf32>
    %239 = vector.broadcast %cst_55 : f32 to vector<2x512xf32>
    %240 = arith.minimumf %239, %238 : vector<2x512xf32>
    %241 = vector.shape_cast %240 : vector<2x512xf32> to vector<2x1x512xf32>
    %242 = vector.broadcast %241 : vector<2x1x512xf32> to vector<2x16x512xf32>
    %243 = arith.subf %143, %242 : vector<2x16x512xf32>
    %244 = math.absf %243 : vector<2x16x512xf32>
    %cst_56 = arith.constant 1.000000e+00 : f32
    %245 = vector.broadcast %cst_56 : f32 to vector<2x16x512xf32>
    %246 = arith.subf %245, %244 : vector<2x16x512xf32>
    %cst_57 = arith.constant 0.000000e+00 : f32
    %247 = vector.broadcast %cst_57 : f32 to vector<2x16x512xf32>
    %248 = arith.maximumf %246, %247 : vector<2x16x512xf32>
    %249 = arith.mulf %248, %227 : vector<2x16x512xf32>
    %cst_58 = arith.constant dense<0.000000e+00> : vector<2x512xf32>
    %250 = vector.multi_reduction <add>, %249, %cst_58 [1] : vector<2x16x512xf32> to vector<2x512xf32>
    %251 = arith.subf %236, %250 : vector<2x512xf32>
    %252 = arith.addf %226, %251 : vector<2x512xf32>
    %253 = arith.mulf %252, %22 : vector<2x512xf32>
    %cst_59 = arith.constant dense<0.000000e+00> : vector<512xf32>
    %254 = vector.multi_reduction <add>, %253, %cst_59 [0] : vector<2x512xf32> to vector<512xf32>
    %255 = vector.shape_cast %254 : vector<512xf32> to vector<1x512xf32>
    %cst_60 = arith.constant 2.500000e-01 : f32
    %256 = vector.broadcast %cst_60 : f32 to vector<1x512xf32>
    %257 = arith.mulf %255, %256 : vector<1x512xf32>
    %c0_61 = arith.constant 0 : index
    %c0_62 = arith.constant 0 : index
    %c0_63 = arith.constant 0 : index
    %258 = vector.load %arg4[%c0_61, %c0_62, %c0_63] : memref<1x2x512xf32, #tpu.memory_space<vmem>>, vector<1x1x512xf32>
    %259 = vector.shape_cast %258 : vector<1x1x512xf32> to vector<1x512xf32>
    %260 = vector.shape_cast %134 : vector<1x512xf32> to vector<1x1x512xf32>
    tpu.vector_store %arg4[%c0_61, %c0_62, %c0_63], %260 {strides = array<i32>} : memref<1x2x512xf32, #tpu.memory_space<vmem>>, vector<1x1x512xf32>,
    %c0_64 = arith.constant 0 : index
    %c1 = arith.constant 1 : index
    %c0_65 = arith.constant 0 : index
    %261 = vector.load %arg4[%c0_64, %c1, %c0_65] : memref<1x2x512xf32, #tpu.memory_space<vmem>>, vector<1x1x512xf32>
    %262 = vector.shape_cast %261 : vector<1x1x512xf32> to vector<1x512xf32>
    %263 = vector.shape_cast %257 : vector<1x512xf32> to vector<1x1x512xf32>
    tpu.vector_store %arg4[%c0_64, %c1, %c0_65], %263 {strides = array<i32>} : memref<1x2x512xf32, #tpu.memory_space<vmem>>, vector<1x1x512xf32>,
    return
  }
  func.func @transform_0(%arg0: i32) -> (i32, i32, i32) {
    %c0_i32 = arith.constant 0 : i32
    %c0_i32_0 = arith.constant 0 : i32
    %c0_i32_1 = arith.constant 0 : i32
    return %c0_i32, %c0_i32_0, %arg0 : i32, i32, i32
  }
  func.func @transform_1(%arg0: i32) -> (i32, i32, i32) {
    %c0_i32 = arith.constant 0 : i32
    %c0_i32_0 = arith.constant 0 : i32
    %c0_i32_1 = arith.constant 0 : i32
    return %c0_i32, %arg0, %c0_i32_0 : i32, i32, i32
  }
  func.func @transform_2(%arg0: i32) -> (i32, i32) {
    %c0_i32 = arith.constant 0 : i32
    %c0_i32_0 = arith.constant 0 : i32
    return %c0_i32, %arg0 : i32, i32
  }
  func.func @transform_3(%arg0: i32) -> (i32, i32, i32) {
    %c0_i32 = arith.constant 0 : i32
    %c0_i32_0 = arith.constant 0 : i32
    %c0_i32_1 = arith.constant 0 : i32
    return %arg0, %c0_i32, %c0_i32_0 : i32, i32, i32
  }
}

</mosaic_0001>

<llo_original>
// kernel: bbox_loss.1
$region0: #{bbox_loss.1}
  #allocation0 [shape = 'u32[]', space=smem, size = 0x4, offset = 0x4, fixed_abs, tag = 'smem constant byte address 0x4 - core index']
  #allocation1 [shape = 'u32[72,128]{1,0:T(1,128)}', space=vmem, size = 0x9000, scoped, tag = 'internal scratch']
  %s0 = inlined_call_operand.vmem [shape: f32[11,2,2560], index: 0, kind: input, shape index: {}]
  %s1 = inlined_call_operand.vmem [shape: f32[2,2560,64], index: 1, kind: input, shape index: {}]
  %s2 = inlined_call_operand.vmem [shape: f32[2,2560], index: 2, kind: output, shape index: {0}]
  %s3 = inlined_call_operand.vmem [shape: f32[5,2,512], index: 3, kind: output, shape index: {1}]
  %4 = xla_tuple %s2, %s3
  %s5 = sld [smem:[#allocation0]]
  $region125: #{bbox_loss.1} parent=0
    _
  %s7 = ssub.s32 1, %s5
  %s8 = scalar_select 0, %s7, %s5
  $region1: #{bbox_loss.1} parent=0
    #allocation2 [shape = 'u8[90112]{0}', space=vmem, size = 0x16000, scoped, tag = 'input window, operand 0']
    #allocation3 [shape = 'u8[1048576]{0}', space=vmem, size = 0x100000, scoped, tag = 'input window, operand 1']
    loop: start=0, step=1, limit=7
    $region2: #{bbox_loss.1} parent=1 // loop_pre_header
      _
    $region3: #{bbox_loss.1} parent=1 // loop_header
      %s10 = sphi 0, %s14
      %p11 = scmp.ge.s32.totalorder %s10, 7
      %s20 = sphi 0, %s22
      %s23 = sphi 0, %s20
      %s24 = sphi 0, %s23
      %s40 = sphi 0, %s24
      %s46 = sphi 0, %s48
      %s49 = sphi 0, %s46
      %s50 = sphi 0, %s49
      %s66 = sphi 0, %s50
      %s72 = sphi 0, %s74
      %s75 = sphi 0, %s72
      %s76 = sphi 0, %s75
      %s92 = sphi 0, %s76
      %s98 = sphi 0, %s100
      %s101 = sphi 0, %s98
      %s102 = sphi 0, %s101
      %s118 = sphi 0, %s102
    $region4: #{bbox_loss.1} parent=1 // loop_header_branch
      %13 = sbr.rel (%p11) target = $region8
    $region5: #{bbox_loss.1} parent=1 // loop_body
      %s15 = ssub.s32 %s10, 1
      %s16 = ssub.s32 %s10, 2
      %s17 = sadd.s32 %s10, 1
      %s18 = ssub.s32 %s10, %s17
      %p19 = scmp.eq.s32.totalorder %s18, 0
      %s21 = sadd.s32 %s20, 1
      %s22 = scalar_select %p19, %s20, %s21
      %p25 = pneg %p19
      %p26 = scmp.eq.s32.totalorder %s10, 4
      %p27 = por %p25, %p26
      %p28 = scmp.ne.s32.totalorder %s20, %s23
      %p29 = scmp.eq.s32.totalorder %s10, 0
      %p30 = por %p28, %p29
      %p31 = scmp.ne.s32.totalorder %s20, %s23
      %p32 = scmp.eq.s32.totalorder %s15, 4
      %p33 = por %p31, %p32
      %p34 = scmp.ne.s32.totalorder %s23, %s24
      %p35 = scmp.eq.s32.totalorder %s15, 0
      %p36 = por %p34, %p35
      %p37 = scmp.ne.s32.totalorder %s23, %s24
      %p38 = scmp.eq.s32.totalorder %s16, 4
      %p39 = por %p37, %p38
      %p41 = scmp.ne.s32.totalorder %s24, %s40
      %p42 = scmp.eq.s32.totalorder %s16, 0
      %p43 = por %p41, %p42
      %s44 = ssub.s32 %s10, %s17
      %p45 = scmp.eq.s32.totalorder %s44, 0
      %s47 = sadd.s32 %s46, 1
      %s48 = scalar_select %p45, %s46, %s47
      %p51 = pneg %p45
      %p52 = scmp.eq.s32.totalorder %s10, 4
      %p53 = por %p51, %p52
      %p54 = scmp.ne.s32.totalorder %s46, %s49
      %p55 = scmp.eq.s32.totalorder %s10, 0
      %p56 = por %p54, %p55
      %p57 = scmp.ne.s32.totalorder %s46, %s49
      %p58 = scmp.eq.s32.totalorder %s15, 4
      %p59 = por %p57, %p58
      %p60 = scmp.ne.s32.totalorder %s49, %s50
      %p61 = scmp.eq.s32.totalorder %s15, 0
      %p62 = por %p60, %p61
      %p63 = scmp.ne.s32.totalorder %s49, %s50
      %p64 = scmp.eq.s32.totalorder %s16, 4
      %p65 = por %p63, %p64
      %p67 = scmp.ne.s32.totalorder %s50, %s66
      %p68 = scmp.eq.s32.totalorder %s16, 0
      %p69 = por %p67, %p68
      %s70 = ssub.s32 %s10, %s17
      %p71 = scmp.eq.s32.totalorder %s70, 0
      %s73 = sadd.s32 %s72, 1
      %s74 = scalar_select %p71, %s72, %s73
      %p77 = pneg %p71
      %p78 = scmp.eq.s32.totalorder %s10, 4
      %p79 = por %p77, %p78
      %p80 = scmp.ne.s32.totalorder %s72, %s75
      %p81 = scmp.eq.s32.totalorder %s10, 0
      %p82 = por %p80, %p81
      %p83 = scmp.ne.s32.totalorder %s72, %s75
      %p84 = scmp.eq.s32.totalorder %s15, 4
      %p85 = por %p83, %p84
      %p86 = scmp.ne.s32.totalorder %s75, %s76
      %p87 = scmp.eq.s32.totalorder %s15, 0
      %p88 = por %p86, %p87
      %p89 = scmp.ne.s32.totalorder %s75, %s76
      %p90 = scmp.eq.s32.totalorder %s16, 4
      %p91 = por %p89, %p90
      %p93 = scmp.ne.s32.totalorder %s76, %s92
      %p94 = scmp.eq.s32.totalorder %s16, 0
      %p95 = por %p93, %p94
      %s96 = ssub.s32 %s10, %s17
      %p97 = scmp.eq.s32.totalorder %s96, 0
      %s99 = sadd.s32 %s98, 1
      %s100 = scalar_select %p97, %s98, %s99
      %p103 = pneg %p97
      %p104 = scmp.eq.s32.totalorder %s10, 4
      %p105 = por %p103, %p104
      %p106 = scmp.ne.s32.totalorder %s98, %s101
      %p107 = scmp.eq.s32.totalorder %s10, 0
      %p108 = por %p106, %p107
      %p109 = scmp.ne.s32.totalorder %s98, %s101
      %p110 = scmp.eq.s32.totalorder %s15, 4
      %p111 = por %p109, %p110
      %p112 = scmp.ne.s32.totalorder %s101, %s102
      %p113 = scmp.eq.s32.totalorder %s15, 0
      %p114 = por %p112, %p113
      %p115 = scmp.ne.s32.totalorder %s101, %s102
      %p116 = scmp.eq.s32.totalorder %s16, 4
      %p117 = por %p115, %p116
      %p119 = scmp.ne.s32.totalorder %s102, %s118
      %p120 = scmp.eq.s32.totalorder %s16, 0
      %p121 = por %p119, %p120
      %p122 = scmp.le.s32.totalorder 1, %s10
      %p123 = scmp.lt.s32.totalorder %s10, 6
      %p124 = pnand %p122, %p123
      %p125 = pneg %p124
      // Predicated region
      $region9: #{bbox_loss.1} parent=5 // pred_check
        _
      $region10: #{bbox_loss.1} parent=5 // pred_check_branch
        %127 = sbr.rel (%p124) target = $region12
      $region11: #{bbox_loss.1} parent=5 // pred_region
        %s128 = ssub.s32 %s10, 1
      $region12: #{bbox_loss.1} parent=5 // pred_fallthru
        _
      %p129 = scmp.lt.s32.totalorder %s10, 5
      // Predicated region
      $region13: #{bbox_loss.1} parent=5 // pred_check
        %p130 = pneg %p129
      $region14: #{bbox_loss.1} parent=5 // pred_check_branch
        %132 = sbr.rel (%p130) target = $region16
      $region15: #{bbox_loss.1} parent=5 // pred_region
        // Predicated region
        $region17: #{bbox_loss.1} parent=15 // pred_check
          %p133 = pneg %p30
        $region18: #{bbox_loss.1} parent=15 // pred_check_branch
          %135 = sbr.rel (%p133) target = $region20
        $region19: #{bbox_loss.1} parent=15 // pred_region
          %s136 = sand.u32 %s20, 1
          %s137 = sand.u32 %s20, 1
          %s138 = smul.addr %s137, 88
          %s139 = scalar_lea.vmem [#allocation2], %s138
          %s140 = smul.u32 4, %s10
          %s141 = smul.addr %s140, 2
          %s142 = scalar_lea.vmem %s0, %s141
          // Predicated region
          $region21: #{bbox_loss.1} parent=19 // pred_check
            _
          $region22: #{bbox_loss.1} parent=19 // pred_check_branch
            %144 = sbr.rel (0) target = $region24
          $region23: #{bbox_loss.1} parent=19 // pred_region
            // Predicated region
            $region25: #{bbox_loss.1} parent=23 // pred_check
              _
            $region26: #{bbox_loss.1} parent=23 // pred_check_branch
              %146 = sbr.rel (0) target = $region28
            $region27: #{bbox_loss.1} parent=23 // pred_region
              // Predicated region
              $region40: #{bbox_loss.1} parent=27 // pred_check
                _
              $region41: #{bbox_loss.1} parent=27 // pred_check_branch
                %182 = sbr.rel (0) target = $region43
              $region42: #{bbox_loss.1} parent=27 // pred_region
                loop: start=0, step=1, limit=1
                $region44: #{bbox_loss.1} parent=42 // loop_pre_header
                  _
                $region45: #{bbox_loss.1} parent=42 // loop_header
                  %s184 = sphi 0, %s188
                  %p185 = scmp.ge.s32.totalorder %s184, 1
                  %s189 = sphi %s142, %s142
                  %s190 = sphi %s139, %s139
                $region46: #{bbox_loss.1} parent=42 // loop_header_branch
                  %187 = sbr.rel (%p185) target = $region50
                $region47: #{bbox_loss.1} parent=42 // loop_body
                  %v191 = vld [vmem:[%s189] sm:$0xff]
                  %192 = vst [vmem:[%s190] sm:$0xff] %v191
                  %v193 = vld [vmem:[%s189 + $0x28] sm:$0xff]
                  %194 = vst [vmem:[%s190 + $0x8] sm:$0xff] %v193
                  %v195 = vld [vmem:[%s189 + $0x50] sm:$0xff]
                  %196 = vst [vmem:[%s190 + $0x10] sm:$0xff] %v195
                  %v197 = vld [vmem:[%s189 + $0x78] sm:$0xff]
                  %198 = vst [vmem:[%s190 + $0x18] sm:$0xff] %v197
                  %v199 = vld [vmem:[%s189 + $0xa0] sm:$0xff]
                  %200 = vst [vmem:[%s190 + $0x20] sm:$0xff] %v199
                  %v201 = vld [vmem:[%s189 + $0xc8] sm:$0xff]
                  %202 = vst [vmem:[%s190 + $0x28] sm:$0xff] %v201
                  %v203 = vld [vmem:[%s189 + $0xf0] sm:$0xff]
                  %204 = vst [vmem:[%s190 + $0x30] sm:$0xff] %v203
                  %v205 = vld [vmem:[%s189 + $0x118] sm:$0xff]
                  %206 = vst [vmem:[%s190 + $0x38] sm:$0xff] %v205
                  %v207 = vld [vmem:[%s189 + $0x140] sm:$0xff]
                  %208 = vst [vmem:[%s190 + $0x40] sm:$0xff] %v207
                  %v209 = vld [vmem:[%s189 + $0x168] sm:$0xff]
                  %210 = vst [vmem:[%s190 + $0x48] sm:$0xff] %v209
                  %v211 = vld [vmem:[%s189 + $0x190] sm:$0xff]
                  %212 = vst [vmem:[%s190 + $0x50] sm:$0xff] %v211
                $region48: #{bbox_loss.1} parent=42 // loop_footer
                  %s188 = sadd.s32 1, %s184
                $region49: #{bbox_loss.1} parent=42 // loop_footer_branch
                  %183 = sbr.rel target = $region45
                $region50: #{bbox_loss.1} parent=42 // loop_exit
                  _
              $region43: #{bbox_loss.1} parent=27 // pred_fallthru
                _
              // Predicated region
              $region51: #{bbox_loss.1} parent=27 // pred_check
                _
              $region52: #{bbox_loss.1} parent=27 // pred_check_branch
                %214 = sbr.rel target = $region54
              $region53: #{bbox_loss.1} parent=27 // pred_region
                _
              $region54: #{bbox_loss.1} parent=27 // pred_fallthru
                _
            $region28: #{bbox_loss.1} parent=23 // pred_fallthru
              _
            // Predicated region
            $region29: #{bbox_loss.1} parent=23 // pred_check
              _
            $region30: #{bbox_loss.1} parent=23 // pred_check_branch
              %148 = sbr.rel target = $region32
            $region31: #{bbox_loss.1} parent=23 // pred_region
              %s150 = ssub.s32 256, 1
              loop: start=0, step=1, limit=1
              $region33: #{bbox_loss.1} parent=31 // loop_pre_header
                _
              $region34: #{bbox_loss.1} parent=31 // loop_header
                %s152 = sphi 0, %s156
                %p153 = scmp.ge.s32.totalorder %s152, 1
                %s157 = sphi %s142, %s142
                %s158 = sphi %s139, %s139
              $region35: #{bbox_loss.1} parent=31 // loop_header_branch
                %155 = sbr.rel (%p153) target = $region39
              $region36: #{bbox_loss.1} parent=31 // loop_body
                %v159 = vld [vmem:[%s157] sm:%s150]
                %160 = vst [vmem:[%s158] sm:%s150] %v159
                %v161 = vld [vmem:[%s157 + $0x28] sm:%s150]
                %162 = vst [vmem:[%s158 + $0x8] sm:%s150] %v161
                %v163 = vld [vmem:[%s157 + $0x50] sm:%s150]
                %164 = vst [vmem:[%s158 + $0x10] sm:%s150] %v163
                %v165 = vld [vmem:[%s157 + $0x78] sm:%s150]
                %166 = vst [vmem:[%s158 + $0x18] sm:%s150] %v165
                %v167 = vld [vmem:[%s157 + $0xa0] sm:%s150]
                %168 = vst [vmem:[%s158 + $0x20] sm:%s150] %v167
                %v169 = vld [vmem:[%s157 + $0xc8] sm:%s150]
                %170 = vst [vmem:[%s158 + $0x28] sm:%s150] %v169
                %v171 = vld [vmem:[%s157 + $0xf0] sm:%s150]
                %172 = vst [vmem:[%s158 + $0x30] sm:%s150] %v171
                %v173 = vld [vmem:[%s157 + $0x118] sm:%s150]
                %174 = vst [vmem:[%s158 + $0x38] sm:%s150] %v173
                %v175 = vld [vmem:[%s157 + $0x140] sm:%s150]
                %176 = vst [vmem:[%s158 + $0x40] sm:%s150] %v175
                %v177 = vld [vmem:[%s157 + $0x168] sm:%s150]
                %178 = vst [vmem:[%s158 + $0x48] sm:%s150] %v177
                %v179 = vld [vmem:[%s157 + $0x190] sm:%s150]
                %180 = vst [vmem:[%s158 + $0x50] sm:%s150] %v179
              $region37: #{bbox_loss.1} parent=31 // loop_footer
                %s156 = sadd.s32 1, %s152
              $region38: #{bbox_loss.1} parent=31 // loop_footer_branch
                %151 = sbr.rel target = $region34
              $region39: #{bbox_loss.1} parent=31 // loop_exit
                _
            $region32: #{bbox_loss.1} parent=23 // pred_fallthru
              _
          $region24: #{bbox_loss.1} parent=19 // pred_fallthru
            _
          %215 = vnop
        $region20: #{bbox_loss.1} parent=15 // pred_fallthru
          _
        // Predicated region
        $region55: #{bbox_loss.1} parent=15 // pred_check
          %p216 = pneg %p56
        $region56: #{bbox_loss.1} parent=15 // pred_check_branch
          %218 = sbr.rel (%p216) target = $region58
        $region57: #{bbox_loss.1} parent=15 // pred_region
          %s219 = sand.u32 %s46, 1
          %s220 = sand.u32 %s46, 1
          %s221 = smul.addr %s220, 1024
          %s222 = scalar_lea.vmem [#allocation3], %s221
          %s223 = smul.u32 64, %s10
          %s224 = smul.addr %s223, 8
          %s225 = scalar_lea.vmem %s1, %s224
          // Predicated region
          $region59: #{bbox_loss.1} parent=57 // pred_check
            _
          $region60: #{bbox_loss.1} parent=57 // pred_check_branch
            %227 = sbr.rel (0) target = $region62
          $region61: #{bbox_loss.1} parent=57 // pred_region
            // Predicated region
            $region63: #{bbox_loss.1} parent=61 // pred_check
              _
            $region64: #{bbox_loss.1} parent=61 // pred_check_branch
              %229 = sbr.rel (0) target = $region66
            $region65: #{bbox_loss.1} parent=61 // pred_region
              // Predicated region
              $region78: #{bbox_loss.1} parent=65 // pred_check
                _
              $region79: #{bbox_loss.1} parent=65 // pred_check_branch
                %499 = sbr.rel (0) target = $region81
              $region80: #{bbox_loss.1} parent=65 // pred_region
                loop: start=0, step=1, limit=1
                $region82: #{bbox_loss.1} parent=80 // loop_pre_header
                  _
                $region83: #{bbox_loss.1} parent=80 // loop_header
                  %s501 = sphi 0, %s505
                  %p502 = scmp.ge.s32.totalorder %s501, 1
                  %s506 = sphi %s225, %s225
                  %s507 = sphi %s222, %s222
                $region84: #{bbox_loss.1} parent=80 // loop_header_branch
                  %504 = sbr.rel (%p502) target = $region88
                $region85: #{bbox_loss.1} parent=80 // loop_body
                  %v508 = vld [vmem:[%s506] sm:$0xff]
                  %509 = vst [vmem:[%s507] sm:$0xff] %v508
                  %v510 = vld [vmem:[%s506 + $0x8] sm:$0xff]
                  %511 = vst [vmem:[%s507 + $0x8] sm:$0xff] %v510
                  %v512 = vld [vmem:[%s506 + $0x10] sm:$0xff]
                  %513 = vst [vmem:[%s507 + $0x10] sm:$0xff] %v512
                  %v514 = vld [vmem:[%s506 + $0x18] sm:$0xff]
                  %515 = vst [vmem:[%s507 + $0x18] sm:$0xff] %v514
                  %v516 = vld [vmem:[%s506 + $0x20] sm:$0xff]
                  %517 = vst [vmem:[%s507 + $0x20] sm:$0xff] %v516
                  %v518 = vld [vmem:[%s506 + $0x28] sm:$0xff]
                  %519 = vst [vmem:[%s507 + $0x28] sm:$0xff] %v518
                  %v520 = vld [vmem:[%s506 + $0x30] sm:$0xff]
                  %521 = vst [vmem:[%s507 + $0x30] sm:$0xff] %v520
                  %v522 = vld [vmem:[%s506 + $0x38] sm:$0xff]
                  %523 = vst [vmem:[%s507 + $0x38] sm:$0xff] %v522
                  %v524 = vld [vmem:[%s506 + $0x40] sm:$0xff]
                  %525 = vst [vmem:[%s507 + $0x40] sm:$0xff] %v524
                  %v526 = vld [vmem:[%s506 + $0x48] sm:$0xff]
                  %527 = vst [vmem:[%s507 + $0x48] sm:$0xff] %v526
                  %v528 = vld [vmem:[%s506 + $0x50] sm:$0xff]
                  %529 = vst [vmem:[%s507 + $0x50] sm:$0xff] %v528
                  %v530 = vld [vmem:[%s506 + $0x58] sm:$0xff]
                  %531 = vst [vmem:[%s507 + $0x58] sm:$0xff] %v530
                  %v532 = vld [vmem:[%s506 + $0x60] sm:$0xff]
                  %533 = vst [vmem:[%s507 + $0x60] sm:$0xff] %v532
                  %v534 = vld [vmem:[%s506 + $0x68] sm:$0xff]
                  %535 = vst [vmem:[%s507 + $0x68] sm:$0xff] %v534
                  %v536 = vld [vmem:[%s506 + $0x70] sm:$0xff]
                  %537 = vst [vmem:[%s507 + $0x70] sm:$0xff] %v536
                  %v538 = vld [vmem:[%s506 + $0x78] sm:$0xff]
                  %539 = vst [vmem:[%s507 + $0x78] sm:$0xff] %v538
                  %v540 = vld [vmem:[%s506 + $0x80] sm:$0xff]
                  %541 = vst [vmem:[%s507 + $0x80] sm:$0xff] %v540
                  %v542 = vld [vmem:[%s506 + $0x88] sm:$0xff]
                  %543 = vst [vmem:[%s507 + $0x88] sm:$0xff] %v542
                  %v544 = vld [vmem:[%s506 + $0x90] sm:$0xff]
                  %545 = vst [vmem:[%s507 + $0x90] sm:$0xff] %v544
                  %v546 = vld [vmem:[%s506 + $0x98] sm:$0xff]
                  %547 = vst [vmem:[%s507 + $0x98] sm:$0xff] %v546
                  %v548 = vld [vmem:[%s506 + $0xa0] sm:$0xff]
                  %549 = vst [vmem:[%s507 + $0xa0] sm:$0xff] %v548
                  %v550 = vld [vmem:[%s506 + $0xa8] sm:$0xff]
                  %551 = vst [vmem:[%s507 + $0xa8] sm:$0xff] %v550
                  %v552 = vld [vmem:[%s506 + $0xb0] sm:$0xff]
                  %553 = vst [vmem:[%s507 + $0xb0] sm:$0xff] %v552
                  %v554 = vld [vmem:[%s506 + $0xb8] sm:$0xff]
                  %555 = vst [vmem:[%s507 + $0xb8] sm:$0xff] %v554
                  %v556 = vld [vmem:[%s506 + $0xc0] sm:$0xff]
                  %557 = vst [vmem:[%s507 + $0xc0] sm:$0xff] %v556
                  %v558 = vld [vmem:[%s506 + $0xc8] sm:$0xff]
                  %559 = vst [vmem:[%s507 + $0xc8] sm:$0xff] %v558
                  %v560 = vld [vmem:[%s506 + $0xd0] sm:$0xff]
                  %561 = vst [vmem:[%s507 + $0xd0] sm:$0xff] %v560
                  %v562 = vld [vmem:[%s506 + $0xd8] sm:$0xff]
                  %563 = vst [vmem:[%s507 + $0xd8] sm:$0xff] %v562
                  %v564 = vld [vmem:[%s506 + $0xe0] sm:$0xff]
                  %565 = vst [vmem:[%s507 + $0xe0] sm:$0xff] %v564
                  %v566 = vld [vmem:[%s506 + $0xe8] sm:$0xff]
                  %567 = vst [vmem:[%s507 + $0xe8] sm:$0xff] %v566
                  %v568 = vld [vmem:[%s506 + $0xf0] sm:$0xff]
                  %569 = vst [vmem:[%s507 + $0xf0] sm:$0xff] %v568
                  %v570 = vld [vmem:[%s506 + $0xf8] sm:$0xff]
                  %571 = vst [vmem:[%s507 + $0xf8] sm:$0xff] %v570
                  %v572 = vld [vmem:[%s506 + $0x100] sm:$0xff]
                  %573 = vst [vmem:[%s507 + $0x100] sm:$0xff] %v572
                  %v574 = vld [vmem:[%s506 + $0x108] sm:$0xff]
                  %575 = vst [vmem:[%s507 + $0x108] sm:$0xff] %v574
                  %v576 = vld [vmem:[%s506 + $0x110] sm:$0xff]
                  %577 = vst [vmem:[%s507 + $0x110] sm:$0xff] %v576
                  %v578 = vld [vmem:[%s506 + $0x118] sm:$0xff]
                  %579 = vst [vmem:[%s507 + $0x118] sm:$0xff] %v578
                  %v580 = vld [vmem:[%s506 + $0x120] sm:$0xff]
                  %581 = vst [vmem:[%s507 + $0x120] sm:$0xff] %v580
                  %v582 = vld [vmem:[%s506 + $0x128] sm:$0xff]
                  %583 = vst [vmem:[%s507 + $0x128] sm:$0xff] %v582
                  %v584 = vld [vmem:[%s506 + $0x130] sm:$0xff]
                  %585 = vst [vmem:[%s507 + $0x130] sm:$0xff] %v584
                  %v586 = vld [vmem:[%s506 + $0x138] sm:$0xff]
                  %587 = vst [vmem:[%s507 + $0x138] sm:$0xff] %v586
                  %v588 = vld [vmem:[%s506 + $0x140] sm:$0xff]
                  %589 = vst [vmem:[%s507 + $0x140] sm:$0xff] %v588
                  %v590 = vld [vmem:[%s506 + $0x148] sm:$0xff]
                  %591 = vst [vmem:[%s507 + $0x148] sm:$0xff] %v590
                  %v592 = vld [vmem:[%s506 + $0x150] sm:$0xff]
                  %593 = vst [vmem:[%s507 + $0x150] sm:$0xff] %v592
                  %v594 = vld [vmem:[%s506 + $0x158] sm:$0xff]
                  %595 = vst [vmem:[%s507 + $0x158] sm:$0xff] %v594
                  %v596 = vld [vmem:[%s506 + $0x160] sm:$0xff]
                  %597 = vst [vmem:[%s507 + $0x160] sm:$0xff] %v596
                  %v598 = vld [vmem:[%s506 + $0x168] sm:$0xff]
                  %599 = vst [vmem:[%s507 + $0x168] sm:$0xff] %v598
                  %v600 = vld [vmem:[%s506 + $0x170] sm:$0xff]
                  %601 = vst [vmem:[%s507 + $0x170] sm:$0xff] %v600
                  %v602 = vld [vmem:[%s506 + $0x178] sm:$0xff]
                  %603 = vst [vmem:[%s507 + $0x178] sm:$0xff] %v602
                  %v604 = vld [vmem:[%s506 + $0x180] sm:$0xff]
                  %605 = vst [vmem:[%s507 + $0x180] sm:$0xff] %v604
                  %v606 = vld [vmem:[%s506 + $0x188] sm:$0xff]
                  %607 = vst [vmem:[%s507 + $0x188] sm:$0xff] %v606
                  %v608 = vld [vmem:[%s506 + $0x190] sm:$0xff]
                  %609 = vst [vmem:[%s507 + $0x190] sm:$0xff] %v608
                  %v610 = vld [vmem:[%s506 + $0x198] sm:$0xff]
                  %611 = vst [vmem:[%s507 + $0x198] sm:$0xff] %v610
                  %v612 = vld [vmem:[%s506 + $0x1a0] sm:$0xff]
                  %613 = vst [vmem:[%s507 + $0x1a0] sm:$0xff] %v612
                  %v614 = vld [vmem:[%s506 + $0x1a8] sm:$0xff]
                  %615 = vst [vmem:[%s507 + $0x1a8] sm:$0xff] %v614
                  %v616 = vld [vmem:[%s506 + $0x1b0] sm:$0xff]
                  %617 = vst [vmem:[%s507 + $0x1b0] sm:$0xff] %v616
                  %v618 = vld [vmem:[%s506 + $0x1b8] sm:$0xff]
                  %619 = vst [vmem:[%s507 + $0x1b8] sm:$0xff] %v618
                  %v620 = vld [vmem:[%s506 + $0x1c0] sm:$0xff]
                  %621 = vst [vmem:[%s507 + $0x1c0] sm:$0xff] %v620
                  %v622 = vld [vmem:[%s506 + $0x1c8] sm:$0xff]
                  %623 = vst [vmem:[%s507 + $0x1c8] sm:$0xff] %v622
                  %v624 = vld [vmem:[%s506 + $0x1d0] sm:$0xff]
                  %625 = vst [vmem:[%s507 + $0x1d0] sm:$0xff] %v624
                  %v626 = vld [vmem:[%s506 + $0x1d8] sm:$0xff]
                  %627 = vst [vmem:[%s507 + $0x1d8] sm:$0xff] %v626
                  %v628 = vld [vmem:[%s506 + $0x1e0] sm:$0xff]
                  %629 = vst [vmem:[%s507 + $0x1e0] sm:$0xff] %v628
                  %v630 = vld [vmem:[%s506 + $0x1e8] sm:$0xff]
                  %631 = vst [vmem:[%s507 + $0x1e8] sm:$0xff] %v630
                  %v632 = vld [vmem:[%s506 + $0x1f0] sm:$0xff]
                  %633 = vst [vmem:[%s507 + $0x1f0] sm:$0xff] %v632
                  %v634 = vld [vmem:[%s506 + $0x1f8] sm:$0xff]
                  %635 = vst [vmem:[%s507 + $0x1f8] sm:$0xff] %v634
                  %v636 = vld [vmem:[%s506 + $0xa00] sm:$0xff]
                  %637 = vst [vmem:[%s507 + $0x200] sm:$0xff] %v636
                  %v638 = vld [vmem:[%s506 + $0xa08] sm:$0xff]
                  %639 = vst [vmem:[%s507 + $0x208] sm:$0xff] %v638
                  %v640 = vld [vmem:[%s506 + $0xa10] sm:$0xff]
                  %641 = vst [vmem:[%s507 + $0x210] sm:$0xff] %v640
                  %v642 = vld [vmem:[%s506 + $0xa18] sm:$0xff]
                  %643 = vst [vmem:[%s507 + $0x218] sm:$0xff] %v642
                  %v644 = vld [vmem:[%s506 + $0xa20] sm:$0xff]
                  %645 = vst [vmem:[%s507 + $0x220] sm:$0xff] %v644
                  %v646 = vld [vmem:[%s506 + $0xa28] sm:$0xff]
                  %647 = vst [vmem:[%s507 + $0x228] sm:$0xff] %v646
                  %v648 = vld [vmem:[%s506 + $0xa30] sm:$0xff]
                  %649 = vst [vmem:[%s507 + $0x230] sm:$0xff] %v648
                  %v650 = vld [vmem:[%s506 + $0xa38] sm:$0xff]
                  %651 = vst [vmem:[%s507 + $0x238] sm:$0xff] %v650
                  %v652 = vld [vmem:[%s506 + $0xa40] sm:$0xff]
                  %653 = vst [vmem:[%s507 + $0x240] sm:$0xff] %v652
                  %v654 = vld [vmem:[%s506 + $0xa48] sm:$0xff]
                  %655 = vst [vmem:[%s507 + $0x248] sm:$0xff] %v654
                  %v656 = vld [vmem:[%s506 + $0xa50] sm:$0xff]
                  %657 = vst [vmem:[%s507 + $0x250] sm:$0xff] %v656
                  %v658 = vld [vmem:[%s506 + $0xa58] sm:$0xff]
                  %659 = vst [vmem:[%s507 + $0x258] sm:$0xff] %v658
                  %v660 = vld [vmem:[%s506 + $0xa60] sm:$0xff]
                  %661 = vst [vmem:[%s507 + $0x260] sm:$0xff] %v660
                  %v662 = vld [vmem:[%s506 + $0xa68] sm:$0xff]
                  %663 = vst [vmem:[%s507 + $0x268] sm:$0xff] %v662
                  %v664 = vld [vmem:[%s506 + $0xa70] sm:$0xff]
                  %665 = vst [vmem:[%s507 + $0x270] sm:$0xff] %v664
                  %v666 = vld [vmem:[%s506 + $0xa78] sm:$0xff]
                  %667 = vst [vmem:[%s507 + $0x278] sm:$0xff] %v666
                  %v668 = vld [vmem:[%s506 + $0xa80] sm:$0xff]
                  %669 = vst [vmem:[%s507 + $0x280] sm:$0xff] %v668
                  %v670 = vld [vmem:[%s506 + $0xa88] sm:$0xff]
                  %671 = vst [vmem:[%s507 + $0x288] sm:$0xff] %v670
                  %v672 = vld [vmem:[%s506 + $0xa90] sm:$0xff]
                  %673 = vst [vmem:[%s507 + $0x290] sm:$0xff] %v672
                  %v674 = vld [vmem:[%s506 + $0xa98] sm:$0xff]
                  %675 = vst [vmem:[%s507 + $0x298] sm:$0xff] %v674
                  %v676 = vld [vmem:[%s506 + $0xaa0] sm:$0xff]
                  %677 = vst [vmem:[%s507 + $0x2a0] sm:$0xff] %v676
                  %v678 = vld [vmem:[%s506 + $0xaa8] sm:$0xff]
                  %679 = vst [vmem:[%s507 + $0x2a8] sm:$0xff] %v678
                  %v680 = vld [vmem:[%s506 + $0xab0] sm:$0xff]
                  %681 = vst [vmem:[%s507 + $0x2b0] sm:$0xff] %v680
                  %v682 = vld [vmem:[%s506 + $0xab8] sm:$0xff]
                  %683 = vst [vmem:[%s507 + $0x2b8] sm:$0xff] %v682
                  %v684 = vld [vmem:[%s506 + $0xac0] sm:$0xff]
                  %685 = vst [vmem:[%s507 + $0x2c0] sm:$0xff] %v684
                  %v686 = vld [vmem:[%s506 + $0xac8] sm:$0xff]
                  %687 = vst [vmem:[%s507 + $0x2c8] sm:$0xff] %v686
                  %v688 = vld [vmem:[%s506 + $0xad0] sm:$0xff]
                  %689 = vst [vmem:[%s507 + $0x2d0] sm:$0xff] %v688
                  %v690 = vld [vmem:[%s506 + $0xad8] sm:$0xff]
                  %691 = vst [vmem:[%s507 + $0x2d8] sm:$0xff] %v690
                  %v692 = vld [vmem:[%s506 + $0xae0] sm:$0xff]
                  %693 = vst [vmem:[%s507 + $0x2e0] sm:$0xff] %v692
                  %v694 = vld [vmem:[%s506 + $0xae8] sm:$0xff]
                  %695 = vst [vmem:[%s507 + $0x2e8] sm:$0xff] %v694
                  %v696 = vld [vmem:[%s506 + $0xaf0] sm:$0xff]
                  %697 = vst [vmem:[%s507 + $0x2f0] sm:$0xff] %v696
                  %v698 = vld [vmem:[%s506 + $0xaf8] sm:$0xff]
                  %699 = vst [vmem:[%s507 + $0x2f8] sm:$0xff] %v698
                  %v700 = vld [vmem:[%s506 + $0xb00] sm:$0xff]
                  %701 = vst [vmem:[%s507 + $0x300] sm:$0xff] %v700
                  %v702 = vld [vmem:[%s506 + $0xb08] sm:$0xff]
                  %703 = vst [vmem:[%s507 + $0x308] sm:$0xff] %v702
                  %v704 = vld [vmem:[%s506 + $0xb10] sm:$0xff]
                  %705 = vst [vmem:[%s507 + $0x310] sm:$0xff] %v704
                  %v706 = vld [vmem:[%s506 + $0xb18] sm:$0xff]
                  %707 = vst [vmem:[%s507 + $0x318] sm:$0xff] %v706
                  %v708 = vld [vmem:[%s506 + $0xb20] sm:$0xff]
                  %709 = vst [vmem:[%s507 + $0x320] sm:$0xff] %v708
                  %v710 = vld [vmem:[%s506 + $0xb28] sm:$0xff]
                  %711 = vst [vmem:[%s507 + $0x328] sm:$0xff] %v710
                  %v712 = vld [vmem:[%s506 + $0xb30] sm:$0xff]
                  %713 = vst [vmem:[%s507 + $0x330] sm:$0xff] %v712
                  %v714 = vld [vmem:[%s506 + $0xb38] sm:$0xff]
                  %715 = vst [vmem:[%s507 + $0x338] sm:$0xff] %v714
                  %v716 = vld [vmem:[%s506 + $0xb40] sm:$0xff]
                  %717 = vst [vmem:[%s507 + $0x340] sm:$0xff] %v716
                  %v718 = vld [vmem:[%s506 + $0xb48] sm:$0xff]
                  %719 = vst [vmem:[%s507 + $0x348] sm:$0xff] %v718
                  %v720 = vld [vmem:[%s506 + $0xb50] sm:$0xff]
                  %721 = vst [vmem:[%s507 + $0x350] sm:$0xff] %v720
                  %v722 = vld [vmem:[%s506 + $0xb58] sm:$0xff]
                  %723 = vst [vmem:[%s507 + $0x358] sm:$0xff] %v722
                  %v724 = vld [vmem:[%s506 + $0xb60] sm:$0xff]
                  %725 = vst [vmem:[%s507 + $0x360] sm:$0xff] %v724
                  %v726 = vld [vmem:[%s506 + $0xb68] sm:$0xff]
                  %727 = vst [vmem:[%s507 + $0x368] sm:$0xff] %v726
                  %v728 = vld [vmem:[%s506 + $0xb70] sm:$0xff]
                  %729 = vst [vmem:[%s507 + $0x370] sm:$0xff] %v728
                  %v730 = vld [vmem:[%s506 + $0xb78] sm:$0xff]
                  %731 = vst [vmem:[%s507 + $0x378] sm:$0xff] %v730
                  %v732 = vld [vmem:[%s506 + $0xb80] sm:$0xff]
                  %733 = vst [vmem:[%s507 + $0x380] sm:$0xff] %v732
                  %v734 = vld [vmem:[%s506 + $0xb88] sm:$0xff]
                  %735 = vst [vmem:[%s507 + $0x388] sm:$0xff] %v734
                  %v736 = vld [vmem:[%s506 + $0xb90] sm:$0xff]
                  %737 = vst [vmem:[%s507 + $0x390] sm:$0xff] %v736
                  %v738 = vld [vmem:[%s506 + $0xb98] sm:$0xff]
                  %739 = vst [vmem:[%s507 + $0x398] sm:$0xff] %v738
                  %v740 = vld [vmem:[%s506 + $0xba0] sm:$0xff]
                  %741 = vst [vmem:[%s507 + $0x3a0] sm:$0xff] %v740
                  %v742 = vld [vmem:[%s506 + $0xba8] sm:$0xff]
                  %743 = vst [vmem:[%s507 + $0x3a8] sm:$0xff] %v742
                  %v744 = vld [vmem:[%s506 + $0xbb0] sm:$0xff]
                  %745 = vst [vmem:[%s507 + $0x3b0] sm:$0xff] %v744
                  %v746 = vld [vmem:[%s506 + $0xbb8] sm:$0xff]
                  %747 = vst [vmem:[%s507 + $0x3b8] sm:$0xff] %v746
                  %v748 = vld [vmem:[%s506 + $0xbc0] sm:$0xff]
                  %749 = vst [vmem:[%s507 + $0x3c0] sm:$0xff] %v748
                  %v750 = vld [vmem:[%s506 + $0xbc8] sm:$0xff]
                  %751 = vst [vmem:[%s507 + $0x3c8] sm:$0xff] %v750
                  %v752 = vld [vmem:[%s506 + $0xbd0] sm:$0xff]
                  %753 = vst [vmem:[%s507 + $0x3d0] sm:$0xff] %v752
                  %v754 = vld [vmem:[%s506 + $0xbd8] sm:$0xff]
                  %755 = vst [vmem:[%s507 + $0x3d8] sm:$0xff] %v754
                  %v756 = vld [vmem:[%s506 + $0xbe0] sm:$0xff]
                  %757 = vst [vmem:[%s507 + $0x3e0] sm:$0xff] %v756
                  %v758 = vld [vmem:[%s506 + $0xbe8] sm:$0xff]
                  %759 = vst [vmem:[%s507 + $0x3e8] sm:$0xff] %v758
                  %v760 = vld [vmem:[%s506 + $0xbf0] sm:$0xff]
                  %761 = vst [vmem:[%s507 + $0x3f0] sm:$0xff] %v760
                  %v762 = vld [vmem:[%s506 + $0xbf8] sm:$0xff]
                  %763 = vst [vmem:[%s507 + $0x3f8] sm:$0xff] %v762
                $region86: #{bbox_loss.1} parent=80 // loop_footer
                  %s505 = sadd.s32 1, %s501
                $region87: #{bbox_loss.1} parent=80 // loop_footer_branch
                  %500 = sbr.rel target = $region83
                $region88: #{bbox_loss.1} parent=80 // loop_exit
                  _
              $region81: #{bbox_loss.1} parent=65 // pred_fallthru
                _
              // Predicated region
              $region89: #{bbox_loss.1} parent=65 // pred_check
                _
              $region90: #{bbox_loss.1} parent=65 // pred_check_branch
                %765 = sbr.rel target = $region92
              $region91: #{bbox_loss.1} parent=65 // pred_region
                _
              $region92: #{bbox_loss.1} parent=65 // pred_fallthru
                _
            $region66: #{bbox_loss.1} parent=61 // pred_fallthru
              _
            // Predicated region
            $region67: #{bbox_loss.1} parent=61 // pred_check
              _
            $region68: #{bbox_loss.1} parent=61 // pred_check_branch
              %231 = sbr.rel target = $region70
            $region69: #{bbox_loss.1} parent=61 // pred_region
              %s233 = ssub.s32 256, 1
              loop: start=0, step=1, limit=1
              $region71: #{bbox_loss.1} parent=69 // loop_pre_header
                _
              $region72: #{bbox_loss.1} parent=69 // loop_header
                %s235 = sphi 0, %s239
                %p236 = scmp.ge.s32.totalorder %s235, 1
                %s240 = sphi %s225, %s225
                %s241 = sphi %s222, %s222
              $region73: #{bbox_loss.1} parent=69 // loop_header_branch
                %238 = sbr.rel (%p236) target = $region77
              $region74: #{bbox_loss.1} parent=69 // loop_body
                %v242 = vld [vmem:[%s240] sm:%s233]
                %243 = vst [vmem:[%s241] sm:%s233] %v242
                %v244 = vld [vmem:[%s240 + $0x8] sm:%s233]
                %245 = vst [vmem:[%s241 + $0x8] sm:%s233] %v244
                %v246 = vld [vmem:[%s240 + $0x10] sm:%s233]
                %247 = vst [vmem:[%s241 + $0x10] sm:%s233] %v246
                %v248 = vld [vmem:[%s240 + $0x18] sm:%s233]
                %249 = vst [vmem:[%s241 + $0x18] sm:%s233] %v248
                %v250 = vld [vmem:[%s240 + $0x20] sm:%s233]
                %251 = vst [vmem:[%s241 + $0x20] sm:%s233] %v250
                %v252 = vld [vmem:[%s240 + $0x28] sm:%s233]
                %253 = vst [vmem:[%s241 + $0x28] sm:%s233] %v252
                %v254 = vld [vmem:[%s240 + $0x30] sm:%s233]
                %255 = vst [vmem:[%s241 + $0x30] sm:%s233] %v254
                %v256 = vld [vmem:[%s240 + $0x38] sm:%s233]
                %257 = vst [vmem:[%s241 + $0x38] sm:%s233] %v256
                %v258 = vld [vmem:[%s240 + $0x40] sm:%s233]
                %259 = vst [vmem:[%s241 + $0x40] sm:%s233] %v258
                %v260 = vld [vmem:[%s240 + $0x48] sm:%s233]
                %261 = vst [vmem:[%s241 + $0x48] sm:%s233] %v260
                %v262 = vld [vmem:[%s240 + $0x50] sm:%s233]
                %263 = vst [vmem:[%s241 + $0x50] sm:%s233] %v262
                %v264 = vld [vmem:[%s240 + $0x58] sm:%s233]
                %265 = vst [vmem:[%s241 + $0x58] sm:%s233] %v264
                %v266 = vld [vmem:[%s240 + $0x60] sm:%s233]
                %267 = vst [vmem:[%s241 + $0x60] sm:%s233] %v266
                %v268 = vld [vmem:[%s240 + $0x68] sm:%s233]
                %269 = vst [vmem:[%s241 + $0x68] sm:%s233] %v268
                %v270 = vld [vmem:[%s240 + $0x70] sm:%s233]
                %271 = vst [vmem:[%s241 + $0x70] sm:%s233] %v270
                %v272 = vld [vmem:[%s240 + $0x78] sm:%s233]
                %273 = vst [vmem:[%s241 + $0x78] sm:%s233] %v272
                %v274 = vld [vmem:[%s240 + $0x80] sm:%s233]
                %275 = vst [vmem:[%s241 + $0x80] sm:%s233] %v274
                %v276 = vld [vmem:[%s240 + $0x88] sm:%s233]
                %277 = vst [vmem:[%s241 + $0x88] sm:%s233] %v276
                %v278 = vld [vmem:[%s240 + $0x90] sm:%s233]
                %279 = vst [vmem:[%s241 + $0x90] sm:%s233] %v278
                %v280 = vld [vmem:[%s240 + $0x98] sm:%s233]
                %281 = vst [vmem:[%s241 + $0x98] sm:%s233] %v280
                %v282 = vld [vmem:[%s240 + $0xa0] sm:%s233]
                %283 = vst [vmem:[%s241 + $0xa0] sm:%s233] %v282
                %v284 = vld [vmem:[%s240 + $0xa8] sm:%s233]
                %285 = vst [vmem:[%s241 + $0xa8] sm:%s233] %v284
                %v286 = vld [vmem:[%s240 + $0xb0] sm:%s233]
                %287 = vst [vmem:[%s241 + $0xb0] sm:%s233] %v286
                %v288 = vld [vmem:[%s240 + $0xb8] sm:%s233]
                %289 = vst [vmem:[%s241 + $0xb8] sm:%s233] %v288
                %v290 = vld [vmem:[%s240 + $0xc0] sm:%s233]
                %291 = vst [vmem:[%s241 + $0xc0] sm:%s233] %v290
                %v292 = vld [vmem:[%s240 + $0xc8] sm:%s233]
                %293 = vst [vmem:[%s241 + $0xc8] sm:%s233] %v292
                %v294 = vld [vmem:[%s240 + $0xd0] sm:%s233]
                %295 = vst [vmem:[%s241 + $0xd0] sm:%s233] %v294
                %v296 = vld [vmem:[%s240 + $0xd8] sm:%s233]
                %297 = vst [vmem:[%s241 + $0xd8] sm:%s233] %v296
                %v298 = vld [vmem:[%s240 + $0xe0] sm:%s233]
                %299 = vst [vmem:[%s241 + $0xe0] sm:%s233] %v298
                %v300 = vld [vmem:[%s240 + $0xe8] sm:%s233]
                %301 = vst [vmem:[%s241 + $0xe8] sm:%s233] %v300
                %v302 = vld [vmem:[%s240 + $0xf0] sm:%s233]
                %303 = vst [vmem:[%s241 + $0xf0] sm:%s233] %v302
                %v304 = vld [vmem:[%s240 + $0xf8] sm:%s233]
                %305 = vst [vmem:[%s241 + $0xf8] sm:%s233] %v304
                %v306 = vld [vmem:[%s240 + $0x100] sm:%s233]
                %307 = vst [vmem:[%s241 + $0x100] sm:%s233] %v306
                %v308 = vld [vmem:[%s240 + $0x108] sm:%s233]
                %309 = vst [vmem:[%s241 + $0x108] sm:%s233] %v308
                %v310 = vld [vmem:[%s240 + $0x110] sm:%s233]
                %311 = vst [vmem:[%s241 + $0x110] sm:%s233] %v310
                %v312 = vld [vmem:[%s240 + $0x118] sm:%s233]
                %313 = vst [vmem:[%s241 + $0x118] sm:%s233] %v312
                %v314 = vld [vmem:[%s240 + $0x120] sm:%s233]
                %315 = vst [vmem:[%s241 + $0x120] sm:%s233] %v314
                %v316 = vld [vmem:[%s240 + $0x128] sm:%s233]
                %317 = vst [vmem:[%s241 + $0x128] sm:%s233] %v316
                %v318 = vld [vmem:[%s240 + $0x130] sm:%s233]
                %319 = vst [vmem:[%s241 + $0x130] sm:%s233] %v318
                %v320 = vld [vmem:[%s240 + $0x138] sm:%s233]
                %321 = vst [vmem:[%s241 + $0x138] sm:%s233] %v320
                %v322 = vld [vmem:[%s240 + $0x140] sm:%s233]
                %323 = vst [vmem:[%s241 + $0x140] sm:%s233] %v322
                %v324 = vld [vmem:[%s240 + $0x148] sm:%s233]
                %325 = vst [vmem:[%s241 + $0x148] sm:%s233] %v324
                %v326 = vld [vmem:[%s240 + $0x150] sm:%s233]
                %327 = vst [vmem:[%s241 + $0x150] sm:%s233] %v326
                %v328 = vld [vmem:[%s240 + $0x158] sm:%s233]
                %329 = vst [vmem:[%s241 + $0x158] sm:%s233] %v328
                %v330 = vld [vmem:[%s240 + $0x160] sm:%s233]
                %331 = vst [vmem:[%s241 + $0x160] sm:%s233] %v330
                %v332 = vld [vmem:[%s240 + $0x168] sm:%s233]
                %333 = vst [vmem:[%s241 + $0x168] sm:%s233] %v332
                %v334 = vld [vmem:[%s240 + $0x170] sm:%s233]
                %335 = vst [vmem:[%s241 + $0x170] sm:%s233] %v334
                %v336 = vld [vmem:[%s240 + $0x178] sm:%s233]
                %337 = vst [vmem:[%s241 + $0x178] sm:%s233] %v336
                %v338 = vld [vmem:[%s240 + $0x180] sm:%s233]
                %339 = vst [vmem:[%s241 + $0x180] sm:%s233] %v338
                %v340 = vld [vmem:[%s240 + $0x188] sm:%s233]
                %341 = vst [vmem:[%s241 + $0x188] sm:%s233] %v340
                %v342 = vld [vmem:[%s240 + $0x190] sm:%s233]
                %343 = vst [vmem:[%s241 + $0x190] sm:%s233] %v342
                %v344 = vld [vmem:[%s240 + $0x198] sm:%s233]
                %345 = vst [vmem:[%s241 + $0x198] sm:%s233] %v344
                %v346 = vld [vmem:[%s240 + $0x1a0] sm:%s233]
                %347 = vst [vmem:[%s241 + $0x1a0] sm:%s233] %v346
                %v348 = vld [vmem:[%s240 + $0x1a8] sm:%s233]
                %349 = vst [vmem:[%s241 + $0x1a8] sm:%s233] %v348
                %v350 = vld [vmem:[%s240 + $0x1b0] sm:%s233]
                %351 = vst [vmem:[%s241 + $0x1b0] sm:%s233] %v350
                %v352 = vld [vmem:[%s240 + $0x1b8] sm:%s233]
                %353 = vst [vmem:[%s241 + $0x1b8] sm:%s233] %v352
                %v354 = vld [vmem:[%s240 + $0x1c0] sm:%s233]
                %355 = vst [vmem:[%s241 + $0x1c0] sm:%s233] %v354
                %v356 = vld [vmem:[%s240 + $0x1c8] sm:%s233]
                %357 = vst [vmem:[%s241 + $0x1c8] sm:%s233] %v356
                %v358 = vld [vmem:[%s240 + $0x1d0] sm:%s233]
                %359 = vst [vmem:[%s241 + $0x1d0] sm:%s233] %v358
                %v360 = vld [vmem:[%s240 + $0x1d8] sm:%s233]
                %361 = vst [vmem:[%s241 + $0x1d8] sm:%s233] %v360
                %v362 = vld [vmem:[%s240 + $0x1e0] sm:%s233]
                %363 = vst [vmem:[%s241 + $0x1e0] sm:%s233] %v362
                %v364 = vld [vmem:[%s240 + $0x1e8] sm:%s233]
                %365 = vst [vmem:[%s241 + $0x1e8] sm:%s233] %v364
                %v366 = vld [vmem:[%s240 + $0x1f0] sm:%s233]
                %367 = vst [vmem:[%s241 + $0x1f0] sm:%s233] %v366
                %v368 = vld [vmem:[%s240 + $0x1f8] sm:%s233]
                %369 = vst [vmem:[%s241 + $0x1f8] sm:%s233] %v368
                %v370 = vld [vmem:[%s240 + $0xa00] sm:%s233]
                %371 = vst [vmem:[%s241 + $0x200] sm:%s233] %v370
                %v372 = vld [vmem:[%s240 + $0xa08] sm:%s233]
                %373 = vst [vmem:[%s241 + $0x208] sm:%s233] %v372
                %v374 = vld [vmem:[%s240 + $0xa10] sm:%s233]
                %375 = vst [vmem:[%s241 + $0x210] sm:%s233] %v374
                %v376 = vld [vmem:[%s240 + $0xa18] sm:%s233]
                %377 = vst [vmem:[%s241 + $0x218] sm:%s233] %v376
                %v378 = vld [vmem:[%s240 + $0xa20] sm:%s233]
                %379 = vst [vmem:[%s241 + $0x220] sm:%s233] %v378
                %v380 = vld [vmem:[%s240 + $0xa28] sm:%s233]
                %381 = vst [vmem:[%s241 + $0x228] sm:%s233] %v380
                %v382 = vld [vmem:[%s240 + $0xa30] sm:%s233]
                %383 = vst [vmem:[%s241 + $0x230] sm:%s233] %v382
                %v384 = vld [vmem:[%s240 + $0xa38] sm:%s233]
                %385 = vst [vmem:[%s241 + $0x238] sm:%s233] %v384
                %v386 = vld [vmem:[%s240 + $0xa40] sm:%s233]
                %387 = vst [vmem:[%s241 + $0x240] sm:%s233] %v386
                %v388 = vld [vmem:[%s240 + $0xa48] sm:%s233]
                %389 = vst [vmem:[%s241 + $0x248] sm:%s233] %v388
                %v390 = vld [vmem:[%s240 + $0xa50] sm:%s233]
                %391 = vst [vmem:[%s241 + $0x250] sm:%s233] %v390
                %v392 = vld [vmem:[%s240 + $0xa58] sm:%s233]
                %393 = vst [vmem:[%s241 + $0x258] sm:%s233] %v392
                %v394 = vld [vmem:[%s240 + $0xa60] sm:%s233]
                %395 = vst [vmem:[%s241 + $0x260] sm:%s233] %v394
                %v396 = vld [vmem:[%s240 + $0xa68] sm:%s233]
                %397 = vst [vmem:[%s241 + $0x268] sm:%s233] %v396
                %v398 = vld [vmem:[%s240 + $0xa70] sm:%s233]
                %399 = vst [vmem:[%s241 + $0x270] sm:%s233] %v398
                %v400 = vld [vmem:[%s240 + $0xa78] sm:%s233]
                %401 = vst [vmem:[%s241 + $0x278] sm:%s233] %v400
                %v402 = vld [vmem:[%s240 + $0xa80] sm:%s233]
                %403 = vst [vmem:[%s241 + $0x280] sm:%s233] %v402
                %v404 = vld [vmem:[%s240 + $0xa88] sm:%s233]
                %405 = vst [vmem:[%s241 + $0x288] sm:%s233] %v404
                %v406 = vld [vmem:[%s240 + $0xa90] sm:%s233]
                %407 = vst [vmem:[%s241 + $0x290] sm:%s233] %v406
                %v408 = vld [vmem:[%s240 + $0xa98] sm:%s233]
                %409 = vst [vmem:[%s241 + $0x298] sm:%s233] %v408
                %v410 = vld [vmem:[%s240 + $0xaa0] sm:%s233]
                %411 = vst [vmem:[%s241 + $0x2a0] sm:%s233] %v410
                %v412 = vld [vmem:[%s240 + $0xaa8] sm:%s233]
                %413 = vst [vmem:[%s241 + $0x2a8] sm:%s233] %v412
                %v414 = vld [vmem:[%s240 + $0xab0] sm:%s233]
                %415 = vst [vmem:[%s241 + $0x2b0] sm:%s233] %v414
                %v416 = vld [vmem:[%s240 + $0xab8] sm:%s233]
                %417 = vst [vmem:[%s241 + $0x2b8] sm:%s233] %v416
                %v418 = vld [vmem:[%s240 + $0xac0] sm:%s233]
                %419 = vst [vmem:[%s241 + $0x2c0] sm:%s233] %v418
                %v420 = vld [vmem:[%s240 + $0xac8] sm:%s233]
                %421 = vst [vmem:[%s241 + $0x2c8] sm:%s233] %v420
                %v422 = vld [vmem:[%s240 + $0xad0] sm:%s233]
                %423 = vst [vmem:[%s241 + $0x2d0] sm:%s233] %v422
                %v424 = vld [vmem:[%s240 + $0xad8] sm:%s233]
                %425 = vst [vmem:[%s241 + $0x2d8] sm:%s233] %v424
                %v426 = vld [vmem:[%s240 + $0xae0] sm:%s233]
                %427 = vst [vmem:[%s241 + $0x2e0] sm:%s233] %v426
                %v428 = vld [vmem:[%s240 + $0xae8] sm:%s233]
                %429 = vst [vmem:[%s241 + $0x2e8] sm:%s233] %v428
                %v430 = vld [vmem:[%s240 + $0xaf0] sm:%s233]
                %431 = vst [vmem:[%s241 + $0x2f0] sm:%s233] %v430
                %v432 = vld [vmem:[%s240 + $0xaf8] sm:%s233]
                %433 = vst [vmem:[%s241 + $0x2f8] sm:%s233] %v432
                %v434 = vld [vmem:[%s240 + $0xb00] sm:%s233]
                %435 = vst [vmem:[%s241 + $0x300] sm:%s233] %v434
                %v436 = vld [vmem:[%s240 + $0xb08] sm:%s233]
                %437 = vst [vmem:[%s241 + $0x308] sm:%s233] %v436
                %v438 = vld [vmem:[%s240 + $0xb10] sm:%s233]
                %439 = vst [vmem:[%s241 + $0x310] sm:%s233] %v438
                %v440 = vld [vmem:[%s240 + $0xb18] sm:%s233]
                %441 = vst [vmem:[%s241 + $0x318] sm:%s233] %v440
                %v442 = vld [vmem:[%s240 + $0xb20] sm:%s233]
                %443 = vst [vmem:[%s241 + $0x320] sm:%s233] %v442
                %v444 = vld [vmem:[%s240 + $0xb28] sm:%s233]
                %445 = vst [vmem:[%s241 + $0x328] sm:%s233] %v444
                %v446 = vld [vmem:[%s240 + $0xb30] sm:%s233]
                %447 = vst [vmem:[%s241 + $0x330] sm:%s233] %v446
                %v448 = vld [vmem:[%s240 + $0xb38] sm:%s233]
                %449 = vst [vmem:[%s241 + $0x338] sm:%s233] %v448
                %v450 = vld [vmem:[%s240 + $0xb40] sm:%s233]
                %451 = vst [vmem:[%s241 + $0x340] sm:%s233] %v450
                %v452 = vld [vmem:[%s240 + $0xb48] sm:%s233]
                %453 = vst [vmem:[%s241 + $0x348] sm:%s233] %v452
                %v454 = vld [vmem:[%s240 + $0xb50] sm:%s233]
                %455 = vst [vmem:[%s241 + $0x350] sm:%s233] %v454
                %v456 = vld [vmem:[%s240 + $0xb58] sm:%s233]
                %457 = vst [vmem:[%s241 + $0x358] sm:%s233] %v456
                %v458 = vld [vmem:[%s240 + $0xb60] sm:%s233]
                %459 = vst [vmem:[%s241 + $0x360] sm:%s233] %v458
                %v460 = vld [vmem:[%s240 + $0xb68] sm:%s233]
                %461 = vst [vmem:[%s241 + $0x368] sm:%s233] %v460
                %v462 = vld [vmem:[%s240 + $0xb70] sm:%s233]
                %463 = vst [vmem:[%s241 + $0x370] sm:%s233] %v462
                %v464 = vld [vmem:[%s240 + $0xb78] sm:%s233]
                %465 = vst [vmem:[%s241 + $0x378] sm:%s233] %v464
                %v466 = vld [vmem:[%s240 + $0xb80] sm:%s233]
                %467 = vst [vmem:[%s241 + $0x380] sm:%s233] %v466
                %v468 = vld [vmem:[%s240 + $0xb88] sm:%s233]
                %469 = vst [vmem:[%s241 + $0x388] sm:%s233] %v468
                %v470 = vld [vmem:[%s240 + $0xb90] sm:%s233]
                %471 = vst [vmem:[%s241 + $0x390] sm:%s233] %v470
                %v472 = vld [vmem:[%s240 + $0xb98] sm:%s233]
                %473 = vst [vmem:[%s241 + $0x398] sm:%s233] %v472
                %v474 = vld [vmem:[%s240 + $0xba0] sm:%s233]
                %475 = vst [vmem:[%s241 + $0x3a0] sm:%s233] %v474
                %v476 = vld [vmem:[%s240 + $0xba8] sm:%s233]
                %477 = vst [vmem:[%s241 + $0x3a8] sm:%s233] %v476
                %v478 = vld [vmem:[%s240 + $0xbb0] sm:%s233]
                %479 = vst [vmem:[%s241 + $0x3b0] sm:%s233] %v478
                %v480 = vld [vmem:[%s240 + $0xbb8] sm:%s233]
                %481 = vst [vmem:[%s241 + $0x3b8] sm:%s233] %v480
                %v482 = vld [vmem:[%s240 + $0xbc0] sm:%s233]
                %483 = vst [vmem:[%s241 + $0x3c0] sm:%s233] %v482
                %v484 = vld [vmem:[%s240 + $0xbc8] sm:%s233]
                %485 = vst [vmem:[%s241 + $0x3c8] sm:%s233] %v484
                %v486 = vld [vmem:[%s240 + $0xbd0] sm:%s233]
                %487 = vst [vmem:[%s241 + $0x3d0] sm:%s233] %v486
                %v488 = vld [vmem:[%s240 + $0xbd8] sm:%s233]
                %489 = vst [vmem:[%s241 + $0x3d8] sm:%s233] %v488
                %v490 = vld [vmem:[%s240 + $0xbe0] sm:%s233]
                %491 = vst [vmem:[%s241 + $0x3e0] sm:%s233] %v490
                %v492 = vld [vmem:[%s240 + $0xbe8] sm:%s233]
                %493 = vst [vmem:[%s241 + $0x3e8] sm:%s233] %v492
                %v494 = vld [vmem:[%s240 + $0xbf0] sm:%s233]
                %495 = vst [vmem:[%s241 + $0x3f0] sm:%s233] %v494
                %v496 = vld [vmem:[%s240 + $0xbf8] sm:%s233]
                %497 = vst [vmem:[%s241 + $0x3f8] sm:%s233] %v496
              $region75: #{bbox_loss.1} parent=69 // loop_footer
                %s239 = sadd.s32 1, %s235
              $region76: #{bbox_loss.1} parent=69 // loop_footer_branch
                %234 = sbr.rel target = $region72
              $region77: #{bbox_loss.1} parent=69 // loop_exit
                _
            $region70: #{bbox_loss.1} parent=61 // pred_fallthru
              _
          $region62: #{bbox_loss.1} parent=57 // pred_fallthru
            _
          %766 = vnop
        $region58: #{bbox_loss.1} parent=15 // pred_fallthru
          _
      $region16: #{bbox_loss.1} parent=5 // pred_fallthru
        _
      %p767 = scmp.le.s32.totalorder 1, %s10
      %p768 = scmp.lt.s32.totalorder %s10, 6
      %p769 = pnand %p767, %p768
      %p770 = pneg %p769
      // Predicated region
      $region93: #{bbox_loss.1} parent=5 // pred_check
        _
      $region94: #{bbox_loss.1} parent=5 // pred_check_branch
        %772 = sbr.rel (%p769) target = $region96
      $region95: #{bbox_loss.1} parent=5 // pred_region
        %s773 = ssub.s32 %s10, 1
        %s774 = sand.u32 %s23, 1
        %s775 = sand.u32 %s23, 1
        %s776 = smul.addr %s775, 88
        %s777 = scalar_lea.vmem [#allocation2], %s776
        // Predicated region
        $region97: #{bbox_loss.1} parent=95 // pred_check
          %p778 = pneg %p36
        $region98: #{bbox_loss.1} parent=95 // pred_check_branch
          %780 = sbr.rel (%p778) target = $region100
        $region99: #{bbox_loss.1} parent=95 // pred_region
          _
        $region100: #{bbox_loss.1} parent=95 // pred_fallthru
          _
        %s781 = sand.u32 %s49, 1
        %s782 = sand.u32 %s49, 1
        %s783 = smul.addr %s782, 1024
        %s784 = scalar_lea.vmem [#allocation3], %s783
        // Predicated region
        $region101: #{bbox_loss.1} parent=95 // pred_check
          %p785 = pneg %p62
        $region102: #{bbox_loss.1} parent=95 // pred_check_branch
          %787 = sbr.rel (%p785) target = $region104
        $region103: #{bbox_loss.1} parent=95 // pred_region
          _
        $region104: #{bbox_loss.1} parent=95 // pred_fallthru
          _
        %s788 = sand.u32 %s23, 1
        %s789 = sand.u32 %s23, 1
        %s790 = smul.addr %s789, 88
        %s791 = scalar_lea.vmem [#allocation2], %s790
        %p792 = pneg %p36
        %p793 = pneg %p33
        %s794 = sand.u32 %s49, 1
        %s795 = sand.u32 %s49, 1
        %s796 = smul.addr %s795, 1024
        %s797 = scalar_lea.vmem [#allocation3], %s796
        %p798 = pneg %p62
        %p799 = pneg %p59
        %p800 = pneg %p88
        %p801 = pneg %p85
        %s802 = smul.u32 4, %s15
        %p803 = scmp.lt.s32.totalorder %s802, 19
        %s804 = scalar_select %p803, %s802, 19
        %s805 = smul.addr %s804, 2
        %s806 = scalar_lea.vmem %s2, %s805
        %p807 = pneg %p114
        %p808 = pneg %p111
        %p809 = scmp.lt.s32.totalorder %s15, 4
        %s810 = scalar_select %p809, %s15, 4
        %s811 = smul.addr %s810, 4
        %s812 = smul.addr %s811, 2
        %s813 = scalar_lea.vmem %s3, %s812
        %s814 = smul.u32 4, %s15
        %s815 = smul.u32 64, %s15
        %s816 = smul.u32 4, %s15
        %p817 = scmp.lt.s32.totalorder %s816, 19
        %s818 = scalar_select %p817, %s816, 19
        %s819 = smul.addr %s818, 2
        %s820 = scalar_lea.vmem %s2, %s819
        %s821 = smul.u32 4, %s15
        %p822 = scmp.lt.s32.totalorder %s15, 4
        %s823 = scalar_select %p822, %s15, 4
        %s824 = smul.addr %s823, 4
        %s825 = smul.addr %s824, 2
        %s826 = scalar_lea.vmem %s3, %s825
        %v827 = vld [vmem:[%s777] sm:$0xff]
        %v828 = vld [vmem:[%s777 + $0x8] sm:$0xff]
        %v829 = vld [vmem:[%s777 + $0x10] sm:$0xff]
        %v830 = vld [vmem:[%s777 + $0x18] sm:$0xff]
        %v831 = vld [vmem:[%s777 + $0x20] sm:$0xff]
        %v832 = vld [vmem:[%s777 + $0x28] sm:$0xff]
        %v833 = vld [vmem:[%s777 + $0x30] sm:$0xff]
        %v834 = vld [vmem:[%s777 + $0x38] sm:$0xff]
        %v835 = vld [vmem:[%s777 + $0x40] sm:$0xff]
        %v836 = vld [vmem:[%s777 + $0x48] sm:$0xff]
        %v837 = vld [vmem:[%s777 + $0x50] sm:$0xff]
        %v838 = vsub.f32 %v829, %v827
        %v839 = vsub.f32 %v830, %v828
        %v840 = vadd.f32 %v839, 1e-07
        %v841 = vsub.f32 %v833, %v831
        %v842 = vsub.f32 %v834, %v832
        %v843 = vadd.f32 %v842, 1e-07
        %v844 = vmin.f32 %v829, %v833
        %v845 = vmax.f32 %v827, %v831
        %v846 = vsub.f32 %v844, %v845
        %v847 = vmax.f32 %v846, 0.0
        %v848 = vmin.f32 %v830, %v834
        %v849 = vmax.f32 %v828, %v832
        %v850 = vsub.f32 %v848, %v849
        %v851 = vmax.f32 %v850, 0.0
        %v852 = vmul.f32 %v847, %v851
        %v853 = vmul.f32 %v838, %v840
        %v854 = vmul.f32 %v841, %v843
        %v855 = vadd.f32 %v853, %v854
        %v856 = vsub.f32 %v855, %v852
        %v857 = vadd.f32 %v856, 1e-07
        %v858 = vrcp.pop %v857
        %v859 = vmul.f32 %v852, %v858
        %v860 = vmax.f32 %v829, %v833
        %v861 = vmin.f32 %v827, %v831
        %v862 = vsub.f32 %v860, %v861
        %v863 = vmax.f32 %v830, %v834
        %v864 = vmin.f32 %v828, %v832
        %v865 = vsub.f32 %v863, %v864
        %v866 = vmul.f32 %v862, %v862
        %v867 = vmul.f32 %v865, %v865
        %v868 = vadd.f32 %v866, %v867
        %v869 = vadd.f32 %v868, 1e-07
        %v870 = vadd.f32 %v831, %v833
        %v871 = vsub.f32 %v870, %v827
        %v872 = vsub.f32 %v871, %v829
        %v873 = vmul.f32 %v872, %v872
        %v874 = vadd.f32 %v832, %v834
        %v875 = vsub.f32 %v874, %v828
        %v876 = vsub.f32 %v875, %v830
        %v877 = vmul.f32 %v876, %v876
        %v878 = vadd.f32 %v873, %v877
        %v879 = vmul.f32 %v878, 0.25
        %v880 = vmul.f32 %v841, %v840
        %v881 = vmul.f32 %v838, %v843
        %v882 = vsub.f32 %v880, %v881
        %v883 = vmul.f32 %v840, %v843
        %v884 = vmul.f32 %v838, %v841
        %v885 = vadd.f32 %v883, %v884
        %v886 = vrcp.pop %v885
        %v887 = vmul.f32 %v882, %v886
        %v888 = vand.u32 2147483647, %v887
        %vm889 = vcmp.gt.f32.partialorder %v888, 2.4142137
        %vm890 = vcmp.gt.f32.partialorder %v888, 0.41421357
        %v891 = vrcp.pop %v888
        %v892 = vsub.f32 0.0, %v891
        %v893 = vsub.f32 %v888, 1.0
        %v894 = vadd.f32 %v888, 1.0
        %v895 = vrcp.pop %v894
        %v896 = vmul.f32 %v893, %v895
        %v897 = vsel %vm890, %v896, %v888
        %v898 = vsel %vm889, %v892, %v897
        %v899 = vsel %vm890, 0.7853982, 0.0
        %v900 = vsel %vm889, 1.5707964, %v899
        %v901 = vmul.f32 %v898, %v898
        %v902 = vmul.f32 %v901, 0.080537446
        %v903 = vsub.f32 %v902, 0.13877685
        %v904 = vmul.f32 %v903, %v901
        %v905 = vadd.f32 %v904, 0.19977711
        %v906 = vmul.f32 %v905, %v901
        %v907 = vsub.f32 %v906, 0.3333295
        %v908 = vmul.f32 %v907, %v901
        %v909 = vmul.f32 %v908, %v898
        %v910 = vadd.f32 %v909, %v898
        %v911 = vadd.f32 %v900, %v910
        %v912 = vmul.f32 %v911, %v911
        %v913 = vmul.f32 %v912, 0.40528473
        %v914 = vsub.f32 %v913, %v859
        %v915 = vadd.f32 %v914, 1.0000001
        %v916 = vrcp.pop %v915
        %v917 = vmul.f32 %v913, %v916
        %v918 = vrcp.pop %v869
        %v919 = vmul.f32 %v879, %v918
        %v920 = vmul.f32 %v913, %v917
        %v921 = vadd.f32 %v919, %v920
        %v922 = vsub.f32 %v859, %v921
        %923 = vst [vmem:[%s820] sm:$0xff] %v922
        %v924 = vsub.f32 1.0, %v922
        %v925 = vmul.f32 %v924, %v837
        %927 = vst [vmem:[#allocation1] ss:$4 sm:$0xff] %v925
        %v928 = vld.sshfl [vmem:[#allocation1] sm:$0xff pattern:$0x73625140]
        %v929 = vld.sshfl [vmem:[#allocation1 + $0x8] sm:$0xff pattern:$0x73625140]
        %v930 = vld.sshfl [vmem:[#allocation1 + $0x10] sm:$0xff pattern:$0x73625140]
        %v931 = vld.sshfl [vmem:[#allocation1 + $0x18] sm:$0xff pattern:$0x73625140]
        %vm936 = vcmask 1041408
        %v937 = vsel %vm936, %v928, 0.0
        %v938 = vrot.slane %v937, 4
        %v939 = vadd.f32 %v937, %v938
        %v940 = vrot.slane %v939, 2
        %v941 = vadd.f32 %v939, %v940
        %v942 = vrot.slane %v941, 1
        %v943 = vadd.f32 %v941, %v942
        %v944 = vsel %vm936, %v929, 0.0
        %v945 = vrot.slane %v944, 4
        %v946 = vadd.f32 %v944, %v945
        %v947 = vrot.slane %v946, 2
        %v948 = vadd.f32 %v946, %v947
        %v949 = vrot.slane %v948, 1
        %v950 = vadd.f32 %v948, %v949
        %v951 = vsel %vm936, %v930, 0.0
        %v952 = vrot.slane %v951, 4
        %v953 = vadd.f32 %v951, %v952
        %v954 = vrot.slane %v953, 2
        %v955 = vadd.f32 %v953, %v954
        %v956 = vrot.slane %v955, 1
        %v957 = vadd.f32 %v955, %v956
        %v958 = vsel %vm936, %v931, 0.0
        %v959 = vrot.slane %v958, 4
        %v960 = vadd.f32 %v958, %v959
        %v961 = vrot.slane %v960, 2
        %v962 = vadd.f32 %v960, %v961
        %v963 = vrot.slane %v962, 1
        %v964 = vadd.f32 %v962, %v963
        %v965 = vld [vmem:[%s784] sm:$0xff]
        %v966 = vld [vmem:[%s784 + $0x8] sm:$0xff]
        %v967 = vld [vmem:[%s784 + $0x10] sm:$0xff]
        %v968 = vld [vmem:[%s784 + $0x18] sm:$0xff]
        %v969 = vld [vmem:[%s784 + $0x20] sm:$0xff]
        %v970 = vld [vmem:[%s784 + $0x28] sm:$0xff]
        %v971 = vld [vmem:[%s784 + $0x30] sm:$0xff]
        %v972 = vld [vmem:[%s784 + $0x38] sm:$0xff]
        %v973 = vld [vmem:[%s784 + $0x40] sm:$0xff]
        %v974 = vld [vmem:[%s784 + $0x48] sm:$0xff]
        %v975 = vld [vmem:[%s784 + $0x50] sm:$0xff]
        %v976 = vld [vmem:[%s784 + $0x58] sm:$0xff]
        %v977 = vld [vmem:[%s784 + $0x60] sm:$0xff]
        %v978 = vld [vmem:[%s784 + $0x68] sm:$0xff]
        %v979 = vld [vmem:[%s784 + $0x70] sm:$0xff]
        %v980 = vld [vmem:[%s784 + $0x78] sm:$0xff]
        %v981 = vld [vmem:[%s784 + $0x80] sm:$0xff]
        %v982 = vld [vmem:[%s784 + $0x88] sm:$0xff]
        %v983 = vld [vmem:[%s784 + $0x90] sm:$0xff]
        %v984 = vld [vmem:[%s784 + $0x98] sm:$0xff]
        %v985 = vld [vmem:[%s784 + $0xa0] sm:$0xff]
        %v986 = vld [vmem:[%s784 + $0xa8] sm:$0xff]
        %v987 = vld [vmem:[%s784 + $0xb0] sm:$0xff]
        %v988 = vld [vmem:[%s784 + $0xb8] sm:$0xff]
        %v989 = vld [vmem:[%s784 + $0xc0] sm:$0xff]
        %v990 = vld [vmem:[%s784 + $0xc8] sm:$0xff]
        %v991 = vld [vmem:[%s784 + $0xd0] sm:$0xff]
        %v992 = vld [vmem:[%s784 + $0xd8] sm:$0xff]
        %v993 = vld [vmem:[%s784 + $0xe0] sm:$0xff]
        %v994 = vld [vmem:[%s784 + $0xe8] sm:$0xff]
        %v995 = vld [vmem:[%s784 + $0xf0] sm:$0xff]
        %v996 = vld [vmem:[%s784 + $0xf8] sm:$0xff]
        %v997 = vld [vmem:[%s784 + $0x100] sm:$0xff]
        %v998 = vld [vmem:[%s784 + $0x108] sm:$0xff]
        %v999 = vld [vmem:[%s784 + $0x110] sm:$0xff]
        %v1000 = vld [vmem:[%s784 + $0x118] sm:$0xff]
        %v1001 = vld [vmem:[%s784 + $0x120] sm:$0xff]
        %v1002 = vld [vmem:[%s784 + $0x128] sm:$0xff]
        %v1003 = vld [vmem:[%s784 + $0x130] sm:$0xff]
        %v1004 = vld [vmem:[%s784 + $0x138] sm:$0xff]
        %v1005 = vld [vmem:[%s784 + $0x140] sm:$0xff]
        %v1006 = vld [vmem:[%s784 + $0x148] sm:$0xff]
        %v1007 = vld [vmem:[%s784 + $0x150] sm:$0xff]
        %v1008 = vld [vmem:[%s784 + $0x158] sm:$0xff]
        %v1009 = vld [vmem:[%s784 + $0x160] sm:$0xff]
        %v1010 = vld [vmem:[%s784 + $0x168] sm:$0xff]
        %v1011 = vld [vmem:[%s784 + $0x170] sm:$0xff]
        %v1012 = vld [vmem:[%s784 + $0x178] sm:$0xff]
        %v1013 = vld [vmem:[%s784 + $0x180] sm:$0xff]
        %v1014 = vld [vmem:[%s784 + $0x188] sm:$0xff]
        %v1015 = vld [vmem:[%s784 + $0x190] sm:$0xff]
        %v1016 = vld [vmem:[%s784 + $0x198] sm:$0xff]
        %v1017 = vld [vmem:[%s784 + $0x1a0] sm:$0xff]
        %v1018 = vld [vmem:[%s784 + $0x1a8] sm:$0xff]
        %v1019 = vld [vmem:[%s784 + $0x1b0] sm:$0xff]
        %v1020 = vld [vmem:[%s784 + $0x1b8] sm:$0xff]
        %v1021 = vld [vmem:[%s784 + $0x1c0] sm:$0xff]
        %v1022 = vld [vmem:[%s784 + $0x1c8] sm:$0xff]
        %v1023 = vld [vmem:[%s784 + $0x1d0] sm:$0xff]
        %v1024 = vld [vmem:[%s784 + $0x1d8] sm:$0xff]
        %v1025 = vld [vmem:[%s784 + $0x1e0] sm:$0xff]
        %v1026 = vld [vmem:[%s784 + $0x1e8] sm:$0xff]
        %v1027 = vld [vmem:[%s784 + $0x1f0] sm:$0xff]
        %v1028 = vld [vmem:[%s784 + $0x1f8] sm:$0xff]
        %v1029 = vld [vmem:[%s784 + $0x200] sm:$0xff]
        %v1030 = vld [vmem:[%s784 + $0x208] sm:$0xff]
        %v1031 = vld [vmem:[%s784 + $0x210] sm:$0xff]
        %v1032 = vld [vmem:[%s784 + $0x218] sm:$0xff]
        %v1033 = vld [vmem:[%s784 + $0x220] sm:$0xff]
        %v1034 = vld [vmem:[%s784 + $0x228] sm:$0xff]
        %v1035 = vld [vmem:[%s784 + $0x230] sm:$0xff]
        %v1036 = vld [vmem:[%s784 + $0x238] sm:$0xff]
        %v1037 = vld [vmem:[%s784 + $0x240] sm:$0xff]
        %v1038 = vld [vmem:[%s784 + $0x248] sm:$0xff]
        %v1039 = vld [vmem:[%s784 + $0x250] sm:$0xff]
        %v1040 = vld [vmem:[%s784 + $0x258] sm:$0xff]
        %v1041 = vld [vmem:[%s784 + $0x260] sm:$0xff]
        %v1042 = vld [vmem:[%s784 + $0x268] sm:$0xff]
        %v1043 = vld [vmem:[%s784 + $0x270] sm:$0xff]
        %v1044 = vld [vmem:[%s784 + $0x278] sm:$0xff]
        %v1045 = vld [vmem:[%s784 + $0x280] sm:$0xff]
        %v1046 = vld [vmem:[%s784 + $0x288] sm:$0xff]
        %v1047 = vld [vmem:[%s784 + $0x290] sm:$0xff]
        %v1048 = vld [vmem:[%s784 + $0x298] sm:$0xff]
        %v1049 = vld [vmem:[%s784 + $0x2a0] sm:$0xff]
        %v1050 = vld [vmem:[%s784 + $0x2a8] sm:$0xff]
        %v1051 = vld [vmem:[%s784 + $0x2b0] sm:$0xff]
        %v1052 = vld [vmem:[%s784 + $0x2b8] sm:$0xff]
        %v1053 = vld [vmem:[%s784 + $0x2c0] sm:$0xff]
        %v1054 = vld [vmem:[%s784 + $0x2c8] sm:$0xff]
        %v1055 = vld [vmem:[%s784 + $0x2d0] sm:$0xff]
        %v1056 = vld [vmem:[%s784 + $0x2d8] sm:$0xff]
        %v1057 = vld [vmem:[%s784 + $0x2e0] sm:$0xff]
        %v1058 = vld [vmem:[%s784 + $0x2e8] sm:$0xff]
        %v1059 = vld [vmem:[%s784 + $0x2f0] sm:$0xff]
        %v1060 = vld [vmem:[%s784 + $0x2f8] sm:$0xff]
        %v1061 = vld [vmem:[%s784 + $0x300] sm:$0xff]
        %v1062 = vld [vmem:[%s784 + $0x308] sm:$0xff]
        %v1063 = vld [vmem:[%s784 + $0x310] sm:$0xff]
        %v1064 = vld [vmem:[%s784 + $0x318] sm:$0xff]
        %v1065 = vld [vmem:[%s784 + $0x320] sm:$0xff]
        %v1066 = vld [vmem:[%s784 + $0x328] sm:$0xff]
        %v1067 = vld [vmem:[%s784 + $0x330] sm:$0xff]
        %v1068 = vld [vmem:[%s784 + $0x338] sm:$0xff]
        %v1069 = vld [vmem:[%s784 + $0x340] sm:$0xff]
        %v1070 = vld [vmem:[%s784 + $0x348] sm:$0xff]
        %v1071 = vld [vmem:[%s784 + $0x350] sm:$0xff]
        %v1072 = vld [vmem:[%s784 + $0x358] sm:$0xff]
        %v1073 = vld [vmem:[%s784 + $0x360] sm:$0xff]
        %v1074 = vld [vmem:[%s784 + $0x368] sm:$0xff]
        %v1075 = vld [vmem:[%s784 + $0x370] sm:$0xff]
        %v1076 = vld [vmem:[%s784 + $0x378] sm:$0xff]
        %v1077 = vld [vmem:[%s784 + $0x380] sm:$0xff]
        %v1078 = vld [vmem:[%s784 + $0x388] sm:$0xff]
        %v1079 = vld [vmem:[%s784 + $0x390] sm:$0xff]
        %v1080 = vld [vmem:[%s784 + $0x398] sm:$0xff]
        %v1081 = vld [vmem:[%s784 + $0x3a0] sm:$0xff]
        %v1082 = vld [vmem:[%s784 + $0x3a8] sm:$0xff]
        %v1083 = vld [vmem:[%s784 + $0x3b0] sm:$0xff]
        %v1084 = vld [vmem:[%s784 + $0x3b8] sm:$0xff]
        %v1085 = vld [vmem:[%s784 + $0x3c0] sm:$0xff]
        %v1086 = vld [vmem:[%s784 + $0x3c8] sm:$0xff]
        %v1087 = vld [vmem:[%s784 + $0x3d0] sm:$0xff]
        %v1088 = vld [vmem:[%s784 + $0x3d8] sm:$0xff]
        %v1089 = vld [vmem:[%s784 + $0x3e0] sm:$0xff]
        %v1090 = vld [vmem:[%s784 + $0x3e8] sm:$0xff]
        %v1091 = vld [vmem:[%s784 + $0x3f0] sm:$0xff]
        %v1092 = vld [vmem:[%s784 + $0x3f8] sm:$0xff]
        %v1093 = vlaneseq
        %v1094 = vshrl.u32 %v1093, 7
        %v1095 = vadd.s32 %v1094, 8
        %v1096 = vadd.s32 %v1094, 16
        %v1097 = vadd.s32 %v1094, 24
        %v1098 = vadd.s32 %v1094, 32
        %v1099 = vadd.s32 %v1094, 40
        %v1100 = vadd.s32 %v1094, 48
        %v1101 = vadd.s32 %v1094, 56
        %v1102 = vlaneseq
        %v1103 = vand.u32 %v1102, 127
        %vm1104 = vcmp.eq.s32.totalorder %v1094, %v1103
        %vm1105 = vcmp.eq.s32.totalorder %v1095, %v1103
        %vm1106 = vcmp.eq.s32.totalorder %v1096, %v1103
        %vm1107 = vcmp.eq.s32.totalorder %v1097, %v1103
        %vm1108 = vcmp.eq.s32.totalorder %v1098, %v1103
        %vm1109 = vcmp.eq.s32.totalorder %v1099, %v1103
        %vm1110 = vcmp.eq.s32.totalorder %v1100, %v1103
        %vm1111 = vcmp.eq.s32.totalorder %v1101, %v1103
        %v1112 = vsel %vm1104, 1, 0
        %v1113 = vsel %vm1105, 1, 0
        %v1114 = vsel %vm1106, 1, 0
        %v1115 = vsel %vm1107, 1, 0
        %v1116 = vsel %vm1108, 1, 0
        %v1117 = vsel %vm1109, 1, 0
        %v1118 = vsel %vm1110, 1, 0
        %v1119 = vsel %vm1111, 1, 0
        %v1120 = vcvt.s32.f32 %v1112
        %v1121 = vcvt.s32.f32 %v1113
        %v1122 = vcvt.s32.f32 %v1114
        %v1123 = vcvt.s32.f32 %v1115
        %v1124 = vcvt.s32.f32 %v1116
        %v1125 = vcvt.s32.f32 %v1117
        %v1126 = vcvt.s32.f32 %v1118
        %v1127 = vcvt.s32.f32 %v1119
        %vm1128 = vcmask 523264
        %v1130 = vsel %vm1128, %v1120, 0
        %v1133 = vsel %vm1128, %v1121, 0
        %v1136 = vsel %vm1128, %v1122, 0
        %v1139 = vsel %vm1128, %v1123, 0
        %v1142 = vsel %vm1128, %v1124, 0
        %v1145 = vsel %vm1128, %v1125, 0
        %v1148 = vsel %vm1128, %v1126, 0
        %v1151 = vsel %vm1128, %v1127, 0
        %v1154 = vsel %vm1128, %v965, 0
        %v1157 = vsel %vm1128, %v966, 0
        %v1160 = vsel %vm1128, %v967, 0
        %v1163 = vsel %vm1128, %v968, 0
        %v1166 = vsel %vm1128, %v969, 0
        %v1169 = vsel %vm1128, %v970, 0
        %v1172 = vsel %vm1128, %v971, 0
        %v1175 = vsel %vm1128, %v972, 0
        %v1178 = vsel %vm1128, %v973, 0
        %v1181 = vsel %vm1128, %v974, 0
        %v1184 = vsel %vm1128, %v975, 0
        %v1187 = vsel %vm1128, %v976, 0
        %v1190 = vsel %vm1128, %v977, 0
        %v1193 = vsel %vm1128, %v978, 0
        %v1196 = vsel %vm1128, %v979, 0
        %v1199 = vsel %vm1128, %v980, 0
        %v1202 = vsel %vm1128, %v981, 0
        %v1205 = vsel %vm1128, %v982, 0
        %v1208 = vsel %vm1128, %v983, 0
        %v1211 = vsel %vm1128, %v984, 0
        %v1214 = vsel %vm1128, %v985, 0
        %v1217 = vsel %vm1128, %v986, 0
        %v1220 = vsel %vm1128, %v987, 0
        %v1223 = vsel %vm1128, %v988, 0
        %v1226 = vsel %vm1128, %v989, 0
        %v1229 = vsel %vm1128, %v990, 0
        %v1232 = vsel %vm1128, %v991, 0
        %v1235 = vsel %vm1128, %v992, 0
        %v1238 = vsel %vm1128, %v993, 0
        %v1241 = vsel %vm1128, %v994, 0
        %v1244 = vsel %vm1128, %v995, 0
        %v1247 = vsel %vm1128, %v996, 0
        %v1250 = vsel %vm1128, %v997, 0
        %v1253 = vsel %vm1128, %v998, 0
        %v1256 = vsel %vm1128, %v999, 0
        %v1259 = vsel %vm1128, %v1000, 0
        %v1262 = vsel %vm1128, %v1001, 0
        %v1265 = vsel %vm1128, %v1002, 0
        %v1268 = vsel %vm1128, %v1003, 0
        %v1271 = vsel %vm1128, %v1004, 0
        %v1274 = vsel %vm1128, %v1005, 0
        %v1277 = vsel %vm1128, %v1006, 0
        %v1280 = vsel %vm1128, %v1007, 0
        %v1283 = vsel %vm1128, %v1008, 0
        %v1286 = vsel %vm1128, %v1009, 0
        %v1289 = vsel %vm1128, %v1010, 0
        %v1292 = vsel %vm1128, %v1011, 0
        %v1295 = vsel %vm1128, %v1012, 0
        %v1298 = vsel %vm1128, %v1013, 0
        %v1301 = vsel %vm1128, %v1014, 0
        %v1304 = vsel %vm1128, %v1015, 0
        %v1307 = vsel %vm1128, %v1016, 0
        %v1310 = vsel %vm1128, %v1017, 0
        %v1313 = vsel %vm1128, %v1018, 0
        %v1316 = vsel %vm1128, %v1019, 0
        %v1319 = vsel %vm1128, %v1020, 0
        %v1322 = vsel %vm1128, %v1021, 0
        %v1325 = vsel %vm1128, %v1022, 0
        %v1328 = vsel %vm1128, %v1023, 0
        %v1331 = vsel %vm1128, %v1024, 0
        %v1334 = vsel %vm1128, %v1025, 0
        %v1337 = vsel %vm1128, %v1026, 0
        %v1340 = vsel %vm1128, %v1027, 0
        %v1343 = vsel %vm1128, %v1028, 0
        %1345 = vmatpush.xpose.msra.mxu0 %v1199
        %1346 = vmatpush.xpose.msra.mxu0 %v1196
        %1347 = vmatpush.xpose.msra.mxu0 %v1193
        %1348 = vmatpush.xpose.msra.mxu0 %v1190
        %1349 = vmatpush.xpose.msra.mxu0 %v1187
        %1350 = vmatpush.xpose.msra.mxu0 %v1184
        %1351 = vmatpush.xpose.msra.mxu0 %v1181
        %1352 = vmatpush.xpose.msra.mxu0 %v1178
        %1353 = vmatpush.xpose.msra.mxu0 %v1175
        %1354 = vmatpush.xpose.msra.mxu0 %v1172
        %1355 = vmatpush.xpose.msra.mxu0 %v1169
        %1356 = vmatpush.xpose.msra.mxu0 %v1166
        %1357 = vmatpush.xpose.msra.mxu0 %v1163
        %1358 = vmatpush.xpose.msra.mxu0 %v1160
        %1359 = vmatpush.xpose.msra.mxu0 %v1157
        %1360 = vmatpush.xpose.msra.mxu0 %v1154
        %1361 = vmatmul.f32.gmra.mxu0 %v1130
        %v1362 = vpop.f32.mrf.mxu0
        %v1363 = vadd.f32 0.0, %v1362
        %1364 = vmatmul.f32.gmra.mxu0 %v1133
        %v1365 = vpop.f32.mrf.mxu0
        %v1366 = vadd.f32 0.0, %v1365
        %1367 = vmatmul.f32.gmra.mxu0 %v1136
        %v1368 = vpop.f32.mrf.mxu0
        %v1369 = vadd.f32 0.0, %v1368
        %1370 = vmatmul.f32.gmra.mxu0 %v1139
        %v1371 = vpop.f32.mrf.mxu0
        %v1372 = vadd.f32 0.0, %v1371
        %1373 = vmatmul.f32.gmra.mxu0 %v1142
        %v1374 = vpop.f32.mrf.mxu0
        %v1375 = vadd.f32 0.0, %v1374
        %1376 = vmatmul.f32.gmra.mxu0 %v1145
        %v1377 = vpop.f32.mrf.mxu0
        %v1378 = vadd.f32 0.0, %v1377
        %1379 = vmatmul.f32.gmra.mxu0 %v1148
        %v1380 = vpop.f32.mrf.mxu0
        %v1381 = vadd.f32 0.0, %v1380
        %1382 = vmatmul.f32.gmra.mxu0 %v1151
        %v1383 = vpop.f32.mrf.mxu0
        %v1384 = vadd.f32 0.0, %v1383
        %1385 = vdwg.mxu0
        %1386 = vmatpush.xpose.msra.mxu0 %v1247
        %1387 = vmatpush.xpose.msra.mxu0 %v1244
        %1388 = vmatpush.xpose.msra.mxu0 %v1241
        %1389 = vmatpush.xpose.msra.mxu0 %v1238
        %1390 = vmatpush.xpose.msra.mxu0 %v1235
        %1391 = vmatpush.xpose.msra.mxu0 %v1232
        %1392 = vmatpush.xpose.msra.mxu0 %v1229
        %1393 = vmatpush.xpose.msra.mxu0 %v1226
        %1394 = vmatpush.xpose.msra.mxu0 %v1223
        %1395 = vmatpush.xpose.msra.mxu0 %v1220
        %1396 = vmatpush.xpose.msra.mxu0 %v1217
        %1397 = vmatpush.xpose.msra.mxu0 %v1214
        %1398 = vmatpush.xpose.msra.mxu0 %v1211
        %1399 = vmatpush.xpose.msra.mxu0 %v1208
        %1400 = vmatpush.xpose.msra.mxu0 %v1205
        %1401 = vmatpush.xpose.msra.mxu0 %v1202
        %1402 = vmatmul.f32.gmra.mxu0 %v1130
        %v1403 = vpop.f32.mrf.mxu0
        %v1404 = vadd.f32 0.0, %v1403
        %1405 = vmatmul.f32.gmra.mxu0 %v1133
        %v1406 = vpop.f32.mrf.mxu0
        %v1407 = vadd.f32 0.0, %v1406
        %1408 = vmatmul.f32.gmra.mxu0 %v1136
        %v1409 = vpop.f32.mrf.mxu0
        %v1410 = vadd.f32 0.0, %v1409
        %1411 = vmatmul.f32.gmra.mxu0 %v1139
        %v1412 = vpop.f32.mrf.mxu0
        %v1413 = vadd.f32 0.0, %v1412
        %1414 = vmatmul.f32.gmra.mxu0 %v1142
        %v1415 = vpop.f32.mrf.mxu0
        %v1416 = vadd.f32 0.0, %v1415
        %1417 = vmatmul.f32.gmra.mxu0 %v1145
        %v1418 = vpop.f32.mrf.mxu0
        %v1419 = vadd.f32 0.0, %v1418
        %1420 = vmatmul.f32.gmra.mxu0 %v1148
        %v1421 = vpop.f32.mrf.mxu0
        %v1422 = vadd.f32 0.0, %v1421
        %1423 = vmatmul.f32.gmra.mxu0 %v1151
        %v1424 = vpop.f32.mrf.mxu0
        %v1425 = vadd.f32 0.0, %v1424
        %1426 = vdwg.mxu0
        %1427 = vmatpush.xpose.msra.mxu0 %v1295
        %1428 = vmatpush.xpose.msra.mxu0 %v1292
        %1429 = vmatpush.xpose.msra.mxu0 %v1289
        %1430 = vmatpush.xpose.msra.mxu0 %v1286
        %1431 = vmatpush.xpose.msra.mxu0 %v1283
        %1432 = vmatpush.xpose.msra.mxu0 %v1280
        %1433 = vmatpush.xpose.msra.mxu0 %v1277
        %1434 = vmatpush.xpose.msra.mxu0 %v1274
        %1435 = vmatpush.xpose.msra.mxu0 %v1271
        %1436 = vmatpush.xpose.msra.mxu0 %v1268
        %1437 = vmatpush.xpose.msra.mxu0 %v1265
        %1438 = vmatpush.xpose.msra.mxu0 %v1262
        %1439 = vmatpush.xpose.msra.mxu0 %v1259
        %1440 = vmatpush.xpose.msra.mxu0 %v1256
        %1441 = vmatpush.xpose.msra.mxu0 %v1253
        %1442 = vmatpush.xpose.msra.mxu0 %v1250
        %1443 = vmatmul.f32.gmra.mxu0 %v1130
        %v1444 = vpop.f32.mrf.mxu0
        %v1445 = vadd.f32 0.0, %v1444
        %1446 = vmatmul.f32.gmra.mxu0 %v1133
        %v1447 = vpop.f32.mrf.mxu0
        %v1448 = vadd.f32 0.0, %v1447
        %1449 = vmatmul.f32.gmra.mxu0 %v1136
        %v1450 = vpop.f32.mrf.mxu0
        %v1451 = vadd.f32 0.0, %v1450
        %1452 = vmatmul.f32.gmra.mxu0 %v1139
        %v1453 = vpop.f32.mrf.mxu0
        %v1454 = vadd.f32 0.0, %v1453
        %1455 = vmatmul.f32.gmra.mxu0 %v1142
        %v1456 = vpop.f32.mrf.mxu0
        %v1457 = vadd.f32 0.0, %v1456
        %1458 = vmatmul.f32.gmra.mxu0 %v1145
        %v1459 = vpop.f32.mrf.mxu0
        %v1460 = vadd.f32 0.0, %v1459
        %1461 = vmatmul.f32.gmra.mxu0 %v1148
        %v1462 = vpop.f32.mrf.mxu0
        %v1463 = vadd.f32 0.0, %v1462
        %1464 = vmatmul.f32.gmra.mxu0 %v1151
        %v1465 = vpop.f32.mrf.mxu0
        %v1466 = vadd.f32 0.0, %v1465
        %1467 = vdwg.mxu0
        %1468 = vmatpush.xpose.msra.mxu0 %v1343
        %1469 = vmatpush.xpose.msra.mxu0 %v1340
        %1470 = vmatpush.xpose.msra.mxu0 %v1337
        %1471 = vmatpush.xpose.msra.mxu0 %v1334
        %1472 = vmatpush.xpose.msra.mxu0 %v1331
        %1473 = vmatpush.xpose.msra.mxu0 %v1328
        %1474 = vmatpush.xpose.msra.mxu0 %v1325
        %1475 = vmatpush.xpose.msra.mxu0 %v1322
        %1476 = vmatpush.xpose.msra.mxu0 %v1319
        %1477 = vmatpush.xpose.msra.mxu0 %v1316
        %1478 = vmatpush.xpose.msra.mxu0 %v1313
        %1479 = vmatpush.xpose.msra.mxu0 %v1310
        %1480 = vmatpush.xpose.msra.mxu0 %v1307
        %1481 = vmatpush.xpose.msra.mxu0 %v1304
        %1482 = vmatpush.xpose.msra.mxu0 %v1301
        %1483 = vmatpush.xpose.msra.mxu0 %v1298
        %1484 = vmatmul.f32.gmra.mxu0 %v1130
        %v1485 = vpop.f32.mrf.mxu0
        %v1486 = vadd.f32 0.0, %v1485
        %1487 = vmatmul.f32.gmra.mxu0 %v1133
        %v1488 = vpop.f32.mrf.mxu0
        %v1489 = vadd.f32 0.0, %v1488
        %1490 = vmatmul.f32.gmra.mxu0 %v1136
        %v1491 = vpop.f32.mrf.mxu0
        %v1492 = vadd.f32 0.0, %v1491
        %1493 = vmatmul.f32.gmra.mxu0 %v1139
        %v1494 = vpop.f32.mrf.mxu0
        %v1495 = vadd.f32 0.0, %v1494
        %1496 = vmatmul.f32.gmra.mxu0 %v1142
        %v1497 = vpop.f32.mrf.mxu0
        %v1498 = vadd.f32 0.0, %v1497
        %1499 = vmatmul.f32.gmra.mxu0 %v1145
        %v1500 = vpop.f32.mrf.mxu0
        %v1501 = vadd.f32 0.0, %v1500
        %1502 = vmatmul.f32.gmra.mxu0 %v1148
        %v1503 = vpop.f32.mrf.mxu0
        %v1504 = vadd.f32 0.0, %v1503
        %1505 = vmatmul.f32.gmra.mxu0 %v1151
        %v1506 = vpop.f32.mrf.mxu0
        %v1507 = vadd.f32 0.0, %v1506
        %1508 = vdwg.mxu0
        %v1510 = vsel %vm1128, %v1029, 0
        %v1513 = vsel %vm1128, %v1030, 0
        %v1516 = vsel %vm1128, %v1031, 0
        %v1519 = vsel %vm1128, %v1032, 0
        %v1522 = vsel %vm1128, %v1033, 0
        %v1525 = vsel %vm1128, %v1034, 0
        %v1528 = vsel %vm1128, %v1035, 0
        %v1531 = vsel %vm1128, %v1036, 0
        %v1534 = vsel %vm1128, %v1037, 0
        %v1537 = vsel %vm1128, %v1038, 0
        %v1540 = vsel %vm1128, %v1039, 0
        %v1543 = vsel %vm1128, %v1040, 0
        %v1546 = vsel %vm1128, %v1041, 0
        %v1549 = vsel %vm1128, %v1042, 0
        %v1552 = vsel %vm1128, %v1043, 0
        %v1555 = vsel %vm1128, %v1044, 0
        %v1558 = vsel %vm1128, %v1045, 0
        %v1561 = vsel %vm1128, %v1046, 0
        %v1564 = vsel %vm1128, %v1047, 0
        %v1567 = vsel %vm1128, %v1048, 0
        %v1570 = vsel %vm1128, %v1049, 0
        %v1573 = vsel %vm1128, %v1050, 0
        %v1576 = vsel %vm1128, %v1051, 0
        %v1579 = vsel %vm1128, %v1052, 0
        %v1582 = vsel %vm1128, %v1053, 0
        %v1585 = vsel %vm1128, %v1054, 0
        %v1588 = vsel %vm1128, %v1055, 0
        %v1591 = vsel %vm1128, %v1056, 0
        %v1594 = vsel %vm1128, %v1057, 0
        %v1597 = vsel %vm1128, %v1058, 0
        %v1600 = vsel %vm1128, %v1059, 0
        %v1603 = vsel %vm1128, %v1060, 0
        %v1606 = vsel %vm1128, %v1061, 0
        %v1609 = vsel %vm1128, %v1062, 0
        %v1612 = vsel %vm1128, %v1063, 0
        %v1615 = vsel %vm1128, %v1064, 0
        %v1618 = vsel %vm1128, %v1065, 0
        %v1621 = vsel %vm1128, %v1066, 0
        %v1624 = vsel %vm1128, %v1067, 0
        %v1627 = vsel %vm1128, %v1068, 0
        %v1630 = vsel %vm1128, %v1069, 0
        %v1633 = vsel %vm1128, %v1070, 0
        %v1636 = vsel %vm1128, %v1071, 0
        %v1639 = vsel %vm1128, %v1072, 0
        %v1642 = vsel %vm1128, %v1073, 0
        %v1645 = vsel %vm1128, %v1074, 0
        %v1648 = vsel %vm1128, %v1075, 0
        %v1651 = vsel %vm1128, %v1076, 0
        %v1654 = vsel %vm1128, %v1077, 0
        %v1657 = vsel %vm1128, %v1078, 0
        %v1660 = vsel %vm1128, %v1079, 0
        %v1663 = vsel %vm1128, %v1080, 0
        %v1666 = vsel %vm1128, %v1081, 0
        %v1669 = vsel %vm1128, %v1082, 0
        %v1672 = vsel %vm1128, %v1083, 0
        %v1675 = vsel %vm1128, %v1084, 0
        %v1678 = vsel %vm1128, %v1085, 0
        %v1681 = vsel %vm1128, %v1086, 0
        %v1684 = vsel %vm1128, %v1087, 0
        %v1687 = vsel %vm1128, %v1088, 0
        %v1690 = vsel %vm1128, %v1089, 0
        %v1693 = vsel %vm1128, %v1090, 0
        %v1696 = vsel %vm1128, %v1091, 0
        %v1699 = vsel %vm1128, %v1092, 0
        %1701 = vmatpush.xpose.msra.mxu0 %v1555
        %1702 = vmatpush.xpose.msra.mxu0 %v1552
        %1703 = vmatpush.xpose.msra.mxu0 %v1549
        %1704 = vmatpush.xpose.msra.mxu0 %v1546
        %1705 = vmatpush.xpose.msra.mxu0 %v1543
        %1706 = vmatpush.xpose.msra.mxu0 %v1540
        %1707 = vmatpush.xpose.msra.mxu0 %v1537
        %1708 = vmatpush.xpose.msra.mxu0 %v1534
        %1709 = vmatpush.xpose.msra.mxu0 %v1531
        %1710 = vmatpush.xpose.msra.mxu0 %v1528
        %1711 = vmatpush.xpose.msra.mxu0 %v1525
        %1712 = vmatpush.xpose.msra.mxu0 %v1522
        %1713 = vmatpush.xpose.msra.mxu0 %v1519
        %1714 = vmatpush.xpose.msra.mxu0 %v1516
        %1715 = vmatpush.xpose.msra.mxu0 %v1513
        %1716 = vmatpush.xpose.msra.mxu0 %v1510
        %1717 = vmatmul.f32.gmra.mxu0 %v1130
        %v1718 = vpop.f32.mrf.mxu0
        %v1719 = vadd.f32 0.0, %v1718
        %1720 = vmatmul.f32.gmra.mxu0 %v1133
        %v1721 = vpop.f32.mrf.mxu0
        %v1722 = vadd.f32 0.0, %v1721
        %1723 = vmatmul.f32.gmra.mxu0 %v1136
        %v1724 = vpop.f32.mrf.mxu0
        %v1725 = vadd.f32 0.0, %v1724
        %1726 = vmatmul.f32.gmra.mxu0 %v1139
        %v1727 = vpop.f32.mrf.mxu0
        %v1728 = vadd.f32 0.0, %v1727
        %1729 = vmatmul.f32.gmra.mxu0 %v1142
        %v1730 = vpop.f32.mrf.mxu0
        %v1731 = vadd.f32 0.0, %v1730
        %1732 = vmatmul.f32.gmra.mxu0 %v1145
        %v1733 = vpop.f32.mrf.mxu0
        %v1734 = vadd.f32 0.0, %v1733
        %1735 = vmatmul.f32.gmra.mxu0 %v1148
        %v1736 = vpop.f32.mrf.mxu0
        %v1737 = vadd.f32 0.0, %v1736
        %1738 = vmatmul.f32.gmra.mxu0 %v1151
        %v1739 = vpop.f32.mrf.mxu0
        %v1740 = vadd.f32 0.0, %v1739
        %1741 = vdwg.mxu0
        %1742 = vmatpush.xpose.msra.mxu0 %v1603
        %1743 = vmatpush.xpose.msra.mxu0 %v1600
        %1744 = vmatpush.xpose.msra.mxu0 %v1597
        %1745 = vmatpush.xpose.msra.mxu0 %v1594
        %1746 = vmatpush.xpose.msra.mxu0 %v1591
        %1747 = vmatpush.xpose.msra.mxu0 %v1588
        %1748 = vmatpush.xpose.msra.mxu0 %v1585
        %1749 = vmatpush.xpose.msra.mxu0 %v1582
        %1750 = vmatpush.xpose.msra.mxu0 %v1579
        %1751 = vmatpush.xpose.msra.mxu0 %v1576
        %1752 = vmatpush.xpose.msra.mxu0 %v1573
        %1753 = vmatpush.xpose.msra.mxu0 %v1570
        %1754 = vmatpush.xpose.msra.mxu0 %v1567
        %1755 = vmatpush.xpose.msra.mxu0 %v1564
        %1756 = vmatpush.xpose.msra.mxu0 %v1561
        %1757 = vmatpush.xpose.msra.mxu0 %v1558
        %1758 = vmatmul.f32.gmra.mxu0 %v1130
        %v1759 = vpop.f32.mrf.mxu0
        %v1760 = vadd.f32 0.0, %v1759
        %1761 = vmatmul.f32.gmra.mxu0 %v1133
        %v1762 = vpop.f32.mrf.mxu0
        %v1763 = vadd.f32 0.0, %v1762
        %1764 = vmatmul.f32.gmra.mxu0 %v1136
        %v1765 = vpop.f32.mrf.mxu0
        %v1766 = vadd.f32 0.0, %v1765
        %1767 = vmatmul.f32.gmra.mxu0 %v1139
        %v1768 = vpop.f32.mrf.mxu0
        %v1769 = vadd.f32 0.0, %v1768
        %1770 = vmatmul.f32.gmra.mxu0 %v1142
        %v1771 = vpop.f32.mrf.mxu0
        %v1772 = vadd.f32 0.0, %v1771
        %1773 = vmatmul.f32.gmra.mxu0 %v1145
        %v1774 = vpop.f32.mrf.mxu0
        %v1775 = vadd.f32 0.0, %v1774
        %1776 = vmatmul.f32.gmra.mxu0 %v1148
        %v1777 = vpop.f32.mrf.mxu0
        %v1778 = vadd.f32 0.0, %v1777
        %1779 = vmatmul.f32.gmra.mxu0 %v1151
        %v1780 = vpop.f32.mrf.mxu0
        %v1781 = vadd.f32 0.0, %v1780
        %1782 = vdwg.mxu0
        %1783 = vmatpush.xpose.msra.mxu0 %v1651
        %1784 = vmatpush.xpose.msra.mxu0 %v1648
        %1785 = vmatpush.xpose.msra.mxu0 %v1645
        %1786 = vmatpush.xpose.msra.mxu0 %v1642
        %1787 = vmatpush.xpose.msra.mxu0 %v1639
        %1788 = vmatpush.xpose.msra.mxu0 %v1636
        %1789 = vmatpush.xpose.msra.mxu0 %v1633
        %1790 = vmatpush.xpose.msra.mxu0 %v1630
        %1791 = vmatpush.xpose.msra.mxu0 %v1627
        %1792 = vmatpush.xpose.msra.mxu0 %v1624
        %1793 = vmatpush.xpose.msra.mxu0 %v1621
        %1794 = vmatpush.xpose.msra.mxu0 %v1618
        %1795 = vmatpush.xpose.msra.mxu0 %v1615
        %1796 = vmatpush.xpose.msra.mxu0 %v1612
        %1797 = vmatpush.xpose.msra.mxu0 %v1609
        %1798 = vmatpush.xpose.msra.mxu0 %v1606
        %1799 = vmatmul.f32.gmra.mxu0 %v1130
        %v1800 = vpop.f32.mrf.mxu0
        %v1801 = vadd.f32 0.0, %v1800
        %1802 = vmatmul.f32.gmra.mxu0 %v1133
        %v1803 = vpop.f32.mrf.mxu0
        %v1804 = vadd.f32 0.0, %v1803
        %1805 = vmatmul.f32.gmra.mxu0 %v1136
        %v1806 = vpop.f32.mrf.mxu0
        %v1807 = vadd.f32 0.0, %v1806
        %1808 = vmatmul.f32.gmra.mxu0 %v1139
        %v1809 = vpop.f32.mrf.mxu0
        %v1810 = vadd.f32 0.0, %v1809
        %1811 = vmatmul.f32.gmra.mxu0 %v1142
        %v1812 = vpop.f32.mrf.mxu0
        %v1813 = vadd.f32 0.0, %v1812
        %1814 = vmatmul.f32.gmra.mxu0 %v1145
        %v1815 = vpop.f32.mrf.mxu0
        %v1816 = vadd.f32 0.0, %v1815
        %1817 = vmatmul.f32.gmra.mxu0 %v1148
        %v1818 = vpop.f32.mrf.mxu0
        %v1819 = vadd.f32 0.0, %v1818
        %1820 = vmatmul.f32.gmra.mxu0 %v1151
        %v1821 = vpop.f32.mrf.mxu0
        %v1822 = vadd.f32 0.0, %v1821
        %1823 = vdwg.mxu0
        %1824 = vmatpush.xpose.msra.mxu0 %v1699
        %1825 = vmatpush.xpose.msra.mxu0 %v1696
        %1826 = vmatpush.xpose.msra.mxu0 %v1693
        %1827 = vmatpush.xpose.msra.mxu0 %v1690
        %1828 = vmatpush.xpose.msra.mxu0 %v1687
        %1829 = vmatpush.xpose.msra.mxu0 %v1684
        %1830 = vmatpush.xpose.msra.mxu0 %v1681
        %1831 = vmatpush.xpose.msra.mxu0 %v1678
        %1832 = vmatpush.xpose.msra.mxu0 %v1675
        %1833 = vmatpush.xpose.msra.mxu0 %v1672
        %1834 = vmatpush.xpose.msra.mxu0 %v1669
        %1835 = vmatpush.xpose.msra.mxu0 %v1666
        %1836 = vmatpush.xpose.msra.mxu0 %v1663
        %1837 = vmatpush.xpose.msra.mxu0 %v1660
        %1838 = vmatpush.xpose.msra.mxu0 %v1657
        %1839 = vmatpush.xpose.msra.mxu0 %v1654
        %1840 = vmatmul.f32.gmra.mxu0 %v1130
        %v1841 = vpop.f32.mrf.mxu0
        %v1842 = vadd.f32 0.0, %v1841
        %1843 = vmatmul.f32.gmra.mxu0 %v1133
        %v1844 = vpop.f32.mrf.mxu0
        %v1845 = vadd.f32 0.0, %v1844
        %1846 = vmatmul.f32.gmra.mxu0 %v1136
        %v1847 = vpop.f32.mrf.mxu0
        %v1848 = vadd.f32 0.0, %v1847
        %1849 = vmatmul.f32.gmra.mxu0 %v1139
        %v1850 = vpop.f32.mrf.mxu0
        %v1851 = vadd.f32 0.0, %v1850
        %1852 = vmatmul.f32.gmra.mxu0 %v1142
        %v1853 = vpop.f32.mrf.mxu0
        %v1854 = vadd.f32 0.0, %v1853
        %1855 = vmatmul.f32.gmra.mxu0 %v1145
        %v1856 = vpop.f32.mrf.mxu0
        %v1857 = vadd.f32 0.0, %v1856
        %1858 = vmatmul.f32.gmra.mxu0 %v1148
        %v1859 = vpop.f32.mrf.mxu0
        %v1860 = vadd.f32 0.0, %v1859
        %1861 = vmatmul.f32.gmra.mxu0 %v1151
        %v1862 = vpop.f32.mrf.mxu0
        %v1863 = vadd.f32 0.0, %v1862
        %1864 = vdwg.mxu0
        %v1865 = vcvt.s32.f32 %v1094
        %v1866 = vcvt.s32.f32 %v1095
        %v1867 = vsub.f32 %v835, %v831
        %v1868 = vsub.f32 %v836, %v832
        %v1869 = vsub.f32 %v833, %v835
        %v1870 = vsub.f32 %v834, %v836
        %v1871 = vmax.f32 %v1363, %v1366
        %v1872 = vrot.slane %v1871, 4
        %v1873 = vmax.f32 %v1871, %v1872
        %v1874 = vrot.slane %v1873, 2
        %v1875 = vmax.f32 %v1873, %v1874
        %v1876 = vrot.slane %v1875, 1
        %v1877 = vmax.f32 %v1875, %v1876
        %v1878 = vmax.f32 %v1404, %v1407
        %v1879 = vrot.slane %v1878, 4
        %v1880 = vmax.f32 %v1878, %v1879
        %v1881 = vrot.slane %v1880, 2
        %v1882 = vmax.f32 %v1880, %v1881
        %v1883 = vrot.slane %v1882, 1
        %v1884 = vmax.f32 %v1882, %v1883
        %v1885 = vmax.f32 %v1445, %v1448
        %v1886 = vrot.slane %v1885, 4
        %v1887 = vmax.f32 %v1885, %v1886
        %v1888 = vrot.slane %v1887, 2
        %v1889 = vmax.f32 %v1887, %v1888
        %v1890 = vrot.slane %v1889, 1
        %v1891 = vmax.f32 %v1889, %v1890
        %v1892 = vmax.f32 %v1486, %v1489
        %v1893 = vrot.slane %v1892, 4
        %v1894 = vmax.f32 %v1892, %v1893
        %v1895 = vrot.slane %v1894, 2
        %v1896 = vmax.f32 %v1894, %v1895
        %v1897 = vrot.slane %v1896, 1
        %v1898 = vmax.f32 %v1896, %v1897
        %v1899 = vmax.f32 %v1719, %v1722
        %v1900 = vrot.slane %v1899, 4
        %v1901 = vmax.f32 %v1899, %v1900
        %v1902 = vrot.slane %v1901, 2
        %v1903 = vmax.f32 %v1901, %v1902
        %v1904 = vrot.slane %v1903, 1
        %v1905 = vmax.f32 %v1903, %v1904
        %v1906 = vmax.f32 %v1760, %v1763
        %v1907 = vrot.slane %v1906, 4
        %v1908 = vmax.f32 %v1906, %v1907
        %v1909 = vrot.slane %v1908, 2
        %v1910 = vmax.f32 %v1908, %v1909
        %v1911 = vrot.slane %v1910, 1
        %v1912 = vmax.f32 %v1910, %v1911
        %v1913 = vmax.f32 %v1801, %v1804
        %v1914 = vrot.slane %v1913, 4
        %v1915 = vmax.f32 %v1913, %v1914
        %v1916 = vrot.slane %v1915, 2
        %v1917 = vmax.f32 %v1915, %v1916
        %v1918 = vrot.slane %v1917, 1
        %v1919 = vmax.f32 %v1917, %v1918
        %v1920 = vmax.f32 %v1842, %v1845
        %v1921 = vrot.slane %v1920, 4
        %v1922 = vmax.f32 %v1920, %v1921
        %v1923 = vrot.slane %v1922, 2
        %v1924 = vmax.f32 %v1922, %v1923
        %v1925 = vrot.slane %v1924, 1
        %v1926 = vmax.f32 %v1924, %v1925
        %v1927 = vsub.f32 %v1363, %v1877
        %v1928 = vsub.f32 %v1404, %v1884
        %v1929 = vsub.f32 %v1445, %v1891
        %v1930 = vsub.f32 %v1486, %v1898
        %v1931 = vsub.f32 %v1366, %v1877
        %v1932 = vsub.f32 %v1407, %v1884
        %v1933 = vsub.f32 %v1448, %v1891
        %v1934 = vsub.f32 %v1489, %v1898
        %v1935 = vsub.f32 %v1719, %v1905
        %v1936 = vsub.f32 %v1760, %v1912
        %v1937 = vsub.f32 %v1801, %v1919
        %v1938 = vsub.f32 %v1842, %v1926
        %v1939 = vsub.f32 %v1722, %v1905
        %v1940 = vsub.f32 %v1763, %v1912
        %v1941 = vsub.f32 %v1804, %v1919
        %v1942 = vsub.f32 %v1845, %v1926
        %v1943 = vmul.f32 %v1927, 1.442695
        %v1944 = vpow.pop %v1943
        %v1945 = vmul.f32 %v1928, 1.442695
        %v1946 = vpow.pop %v1945
        %v1947 = vmul.f32 %v1929, 1.442695
        %v1948 = vpow.pop %v1947
        %v1949 = vmul.f32 %v1930, 1.442695
        %v1950 = vpow.pop %v1949
        %v1951 = vmul.f32 %v1931, 1.442695
        %v1952 = vpow.pop %v1951
        %v1953 = vmul.f32 %v1932, 1.442695
        %v1954 = vpow.pop %v1953
        %v1955 = vmul.f32 %v1933, 1.442695
        %v1956 = vpow.pop %v1955
        %v1957 = vmul.f32 %v1934, 1.442695
        %v1958 = vpow.pop %v1957
        %v1959 = vmul.f32 %v1935, 1.442695
        %v1960 = vpow.pop %v1959
        %v1961 = vmul.f32 %v1936, 1.442695
        %v1962 = vpow.pop %v1961
        %v1963 = vmul.f32 %v1937, 1.442695
        %v1964 = vpow.pop %v1963
        %v1965 = vmul.f32 %v1938, 1.442695
        %v1966 = vpow.pop %v1965
        %v1967 = vmul.f32 %v1939, 1.442695
        %v1968 = vpow.pop %v1967
        %v1969 = vmul.f32 %v1940, 1.442695
        %v1970 = vpow.pop %v1969
        %v1971 = vmul.f32 %v1941, 1.442695
        %v1972 = vpow.pop %v1971
        %v1973 = vmul.f32 %v1942, 1.442695
        %v1974 = vpow.pop %v1973
        %v1975 = vadd.f32 %v1944, %v1952
        %v1976 = vrot.slane %v1975, 4
        %v1977 = vadd.f32 %v1975, %v1976
        %v1978 = vrot.slane %v1977, 2
        %v1979 = vadd.f32 %v1977, %v1978
        %v1980 = vrot.slane %v1979, 1
        %v1981 = vadd.f32 %v1979, %v1980
        %v1982 = vadd.f32 %v1946, %v1954
        %v1983 = vrot.slane %v1982, 4
        %v1984 = vadd.f32 %v1982, %v1983
        %v1985 = vrot.slane %v1984, 2
        %v1986 = vadd.f32 %v1984, %v1985
        %v1987 = vrot.slane %v1986, 1
        %v1988 = vadd.f32 %v1986, %v1987
        %v1989 = vadd.f32 %v1948, %v1956
        %v1990 = vrot.slane %v1989, 4
        %v1991 = vadd.f32 %v1989, %v1990
        %v1992 = vrot.slane %v1991, 2
        %v1993 = vadd.f32 %v1991, %v1992
        %v1994 = vrot.slane %v1993, 1
        %v1995 = vadd.f32 %v1993, %v1994
        %v1996 = vadd.f32 %v1950, %v1958
        %v1997 = vrot.slane %v1996, 4
        %v1998 = vadd.f32 %v1996, %v1997
        %v1999 = vrot.slane %v1998, 2
        %v2000 = vadd.f32 %v1998, %v1999
        %v2001 = vrot.slane %v2000, 1
        %v2002 = vadd.f32 %v2000, %v2001
        %v2003 = vadd.f32 %v1960, %v1968
        %v2004 = vrot.slane %v2003, 4
        %v2005 = vadd.f32 %v2003, %v2004
        %v2006 = vrot.slane %v2005, 2
        %v2007 = vadd.f32 %v2005, %v2006
        %v2008 = vrot.slane %v2007, 1
        %v2009 = vadd.f32 %v2007, %v2008
        %v2010 = vadd.f32 %v1962, %v1970
        %v2011 = vrot.slane %v2010, 4
        %v2012 = vadd.f32 %v2010, %v2011
        %v2013 = vrot.slane %v2012, 2
        %v2014 = vadd.f32 %v2012, %v2013
        %v2015 = vrot.slane %v2014, 1
        %v2016 = vadd.f32 %v2014, %v2015
        %v2017 = vadd.f32 %v1964, %v1972
        %v2018 = vrot.slane %v2017, 4
        %v2019 = vadd.f32 %v2017, %v2018
        %v2020 = vrot.slane %v2019, 2
        %v2021 = vadd.f32 %v2019, %v2020
        %v2022 = vrot.slane %v2021, 1
        %v2023 = vadd.f32 %v2021, %v2022
        %v2024 = vadd.f32 %v1966, %v1974
        %v2025 = vrot.slane %v2024, 4
        %v2026 = vadd.f32 %v2024, %v2025
        %v2027 = vrot.slane %v2026, 2
        %v2028 = vadd.f32 %v2026, %v2027
        %v2029 = vrot.slane %v2028, 1
        %v2030 = vadd.f32 %v2028, %v2029
        %v2031 = vlog2.pop %v1981
        %v2032 = vmul.f32 %v2031, 0.6931472
        %v2033 = vlog2.pop %v1988
        %v2034 = vmul.f32 %v2033, 0.6931472
        %v2035 = vlog2.pop %v1995
        %v2036 = vmul.f32 %v2035, 0.6931472
        %v2037 = vlog2.pop %v2002
        %v2038 = vmul.f32 %v2037, 0.6931472
        %v2039 = vlog2.pop %v2009
        %v2040 = vmul.f32 %v2039, 0.6931472
        %v2041 = vlog2.pop %v2016
        %v2042 = vmul.f32 %v2041, 0.6931472
        %v2043 = vlog2.pop %v2023
        %v2044 = vmul.f32 %v2043, 0.6931472
        %v2045 = vlog2.pop %v2030
        %v2046 = vmul.f32 %v2045, 0.6931472
        %v2047 = vadd.f32 %v1877, %v2032
        %v2048 = vadd.f32 %v1884, %v2034
        %v2049 = vadd.f32 %v1891, %v2036
        %v2050 = vadd.f32 %v1898, %v2038
        %v2051 = vadd.f32 %v1905, %v2040
        %v2052 = vadd.f32 %v1912, %v2042
        %v2053 = vadd.f32 %v1919, %v2044
        %v2054 = vadd.f32 %v1926, %v2046
        %v2055 = vmax.f32 %v1867, 0.0
        %v2056 = vmin.f32 %v2055, 14.99
        %v2058 = vrot.slane %v2056, 1
        %v2059 = vrot.slane %v2056, 2
        %v2060 = vrot.slane %v2056, 3
        %vm2061 = vcmask 1040384
        %v2062 = vsel %vm2061, %v2056, %v2058
        %vm2063 = vcmask 1042434
        %v2064 = vsel %vm2063, %v2059, %v2060
        %v2065 = vsel %vm936, %v2062, %v2064
        %vm2066 = vcmask 1041409
        %v2067 = vsel %vm2066, %v2056, %v2058
        %vm2068 = vcmask 1043459
        %v2069 = vsel %vm2068, %v2059, %v2060
        %vm2070 = vcmask 1042433
        %v2071 = vsel %vm2070, %v2067, %v2069
        %v2072 = vrot.slane %v2071, 1
        %v2073 = vperm.slane %v2065, 0
        %v2074 = vperm.slane %v2065, 1
        %v2075 = vperm.slane %v2065, 2
        %v2076 = vperm.slane %v2065, 3
        %v2077 = vperm.slane %v2072, 0
        %v2078 = vperm.slane %v2072, 1
        %v2079 = vperm.slane %v2072, 2
        %v2080 = vperm.slane %v2072, 3
        %v2089 = vsub.f32 %v1865, %v2073
        %v2090 = vsub.f32 %v1865, %v2074
        %v2091 = vsub.f32 %v1865, %v2075
        %v2092 = vsub.f32 %v1865, %v2076
        %v2093 = vsub.f32 %v1866, %v2073
        %v2094 = vsub.f32 %v1866, %v2074
        %v2095 = vsub.f32 %v1866, %v2075
        %v2096 = vsub.f32 %v1866, %v2076
        %v2097 = vsub.f32 %v1865, %v2077
        %v2098 = vsub.f32 %v1865, %v2078
        %v2099 = vsub.f32 %v1865, %v2079
        %v2100 = vsub.f32 %v1865, %v2080
        %v2101 = vsub.f32 %v1866, %v2077
        %v2102 = vsub.f32 %v1866, %v2078
        %v2103 = vsub.f32 %v1866, %v2079
        %v2104 = vsub.f32 %v1866, %v2080
        %v2105 = vand.u32 2147483647, %v2089
        %v2106 = vand.u32 2147483647, %v2090
        %v2107 = vand.u32 2147483647, %v2091
        %v2108 = vand.u32 2147483647, %v2092
        %v2109 = vand.u32 2147483647, %v2093
        %v2110 = vand.u32 2147483647, %v2094
        %v2111 = vand.u32 2147483647, %v2095
        %v2112 = vand.u32 2147483647, %v2096
        %v2113 = vand.u32 2147483647, %v2097
        %v2114 = vand.u32 2147483647, %v2098
        %v2115 = vand.u32 2147483647, %v2099
        %v2116 = vand.u32 2147483647, %v2100
        %v2117 = vand.u32 2147483647, %v2101
        %v2118 = vand.u32 2147483647, %v2102
        %v2119 = vand.u32 2147483647, %v2103
        %v2120 = vand.u32 2147483647, %v2104
        %v2121 = vsub.f32 1.0, %v2105
        %v2122 = vsub.f32 1.0, %v2106
        %v2123 = vsub.f32 1.0, %v2107
        %v2124 = vsub.f32 1.0, %v2108
        %v2125 = vsub.f32 1.0, %v2109
        %v2126 = vsub.f32 1.0, %v2110
        %v2127 = vsub.f32 1.0, %v2111
        %v2128 = vsub.f32 1.0, %v2112
        %v2129 = vsub.f32 1.0, %v2113
        %v2130 = vsub.f32 1.0, %v2114
        %v2131 = vsub.f32 1.0, %v2115
        %v2132 = vsub.f32 1.0, %v2116
        %v2133 = vsub.f32 1.0, %v2117
        %v2134 = vsub.f32 1.0, %v2118
        %v2135 = vsub.f32 1.0, %v2119
        %v2136 = vsub.f32 1.0, %v2120
        %v2137 = vmax.f32 %v2121, 0.0
        %v2138 = vmax.f32 %v2122, 0.0
        %v2139 = vmax.f32 %v2123, 0.0
        %v2140 = vmax.f32 %v2124, 0.0
        %v2141 = vmax.f32 %v2125, 0.0
        %v2142 = vmax.f32 %v2126, 0.0
        %v2143 = vmax.f32 %v2127, 0.0
        %v2144 = vmax.f32 %v2128, 0.0
        %v2145 = vmax.f32 %v2129, 0.0
        %v2146 = vmax.f32 %v2130, 0.0
        %v2147 = vmax.f32 %v2131, 0.0
        %v2148 = vmax.f32 %v2132, 0.0
        %v2149 = vmax.f32 %v2133, 0.0
        %v2150 = vmax.f32 %v2134, 0.0
        %v2151 = vmax.f32 %v2135, 0.0
        %v2152 = vmax.f32 %v2136, 0.0
        %v2153 = vmul.f32 %v2137, %v1363
        %v2154 = vmul.f32 %v2138, %v1404
        %v2155 = vmul.f32 %v2139, %v1445
        %v2156 = vmul.f32 %v2140, %v1486
        %v2157 = vmul.f32 %v2141, %v1366
        %v2158 = vmul.f32 %v2142, %v1407
        %v2159 = vmul.f32 %v2143, %v1448
        %v2160 = vmul.f32 %v2144, %v1489
        %v2161 = vmul.f32 %v2145, %v1719
        %v2162 = vmul.f32 %v2146, %v1760
        %v2163 = vmul.f32 %v2147, %v1801
        %v2164 = vmul.f32 %v2148, %v1842
        %v2165 = vmul.f32 %v2149, %v1722
        %v2166 = vmul.f32 %v2150, %v1763
        %v2167 = vmul.f32 %v2151, %v1804
        %v2168 = vmul.f32 %v2152, %v1845
        %v2169 = vadd.f32 %v2153, %v2157
        %v2170 = vrot.slane %v2169, 4
        %v2171 = vadd.f32 %v2169, %v2170
        %v2172 = vrot.slane %v2171, 2
        %v2173 = vadd.f32 %v2171, %v2172
        %v2174 = vrot.slane %v2173, 1
        %v2175 = vadd.f32 %v2173, %v2174
        %v2176 = vadd.f32 %v2154, %v2158
        %v2177 = vrot.slane %v2176, 4
        %v2178 = vadd.f32 %v2176, %v2177
        %v2179 = vrot.slane %v2178, 2
        %v2180 = vadd.f32 %v2178, %v2179
        %v2181 = vrot.slane %v2180, 1
        %v2182 = vadd.f32 %v2180, %v2181
        %v2183 = vadd.f32 %v2155, %v2159
        %v2184 = vrot.slane %v2183, 4
        %v2185 = vadd.f32 %v2183, %v2184
        %v2186 = vrot.slane %v2185, 2
        %v2187 = vadd.f32 %v2185, %v2186
        %v2188 = vrot.slane %v2187, 1
        %v2189 = vadd.f32 %v2187, %v2188
        %v2190 = vadd.f32 %v2156, %v2160
        %v2191 = vrot.slane %v2190, 4
        %v2192 = vadd.f32 %v2190, %v2191
        %v2193 = vrot.slane %v2192, 2
        %v2194 = vadd.f32 %v2192, %v2193
        %v2195 = vrot.slane %v2194, 1
        %v2196 = vadd.f32 %v2194, %v2195
        %v2197 = vadd.f32 %v2161, %v2165
        %v2198 = vrot.slane %v2197, 4
        %v2199 = vadd.f32 %v2197, %v2198
        %v2200 = vrot.slane %v2199, 2
        %v2201 = vadd.f32 %v2199, %v2200
        %v2202 = vrot.slane %v2201, 1
        %v2203 = vadd.f32 %v2201, %v2202
        %v2204 = vadd.f32 %v2162, %v2166
        %v2205 = vrot.slane %v2204, 4
        %v2206 = vadd.f32 %v2204, %v2205
        %v2207 = vrot.slane %v2206, 2
        %v2208 = vadd.f32 %v2206, %v2207
        %v2209 = vrot.slane %v2208, 1
        %v2210 = vadd.f32 %v2208, %v2209
        %v2211 = vadd.f32 %v2163, %v2167
        %v2212 = vrot.slane %v2211, 4
        %v2213 = vadd.f32 %v2211, %v2212
        %v2214 = vrot.slane %v2213, 2
        %v2215 = vadd.f32 %v2213, %v2214
        %v2216 = vrot.slane %v2215, 1
        %v2217 = vadd.f32 %v2215, %v2216
        %v2218 = vadd.f32 %v2164, %v2168
        %v2219 = vrot.slane %v2218, 4
        %v2220 = vadd.f32 %v2218, %v2219
        %v2221 = vrot.slane %v2220, 2
        %v2222 = vadd.f32 %v2220, %v2221
        %v2223 = vrot.slane %v2222, 1
        %v2224 = vadd.f32 %v2222, %v2223
        %v2225 = vsub.f32 %v2047, %v2175
        %v2226 = vsub.f32 %v2048, %v2182
        %v2227 = vsub.f32 %v2049, %v2189
        %v2228 = vsub.f32 %v2050, %v2196
        %v2229 = vsub.f32 %v2051, %v2203
        %v2230 = vsub.f32 %v2052, %v2210
        %v2231 = vsub.f32 %v2053, %v2217
        %v2232 = vsub.f32 %v2054, %v2224
        %v2233 = vadd.f32 %v2225, 0.0
        %v2234 = vadd.f32 %v2226, 0.0
        %v2235 = vadd.f32 %v2227, 0.0
        %v2236 = vadd.f32 %v2228, 0.0
        %v2237 = vadd.f32 %v2229, 0.0
        %v2238 = vadd.f32 %v2230, 0.0
        %v2239 = vadd.f32 %v2231, 0.0
        %v2240 = vadd.f32 %v2232, 0.0
        %v2241 = vmax.f32 %v1369, %v1372
        %v2242 = vrot.slane %v2241, 4
        %v2243 = vmax.f32 %v2241, %v2242
        %v2244 = vrot.slane %v2243, 2
        %v2245 = vmax.f32 %v2243, %v2244
        %v2246 = vrot.slane %v2245, 1
        %v2247 = vmax.f32 %v2245, %v2246
        %v2248 = vmax.f32 %v1410, %v1413
        %v2249 = vrot.slane %v2248, 4
        %v2250 = vmax.f32 %v2248, %v2249
        %v2251 = vrot.slane %v2250, 2
        %v2252 = vmax.f32 %v2250, %v2251
        %v2253 = vrot.slane %v2252, 1
        %v2254 = vmax.f32 %v2252, %v2253
        %v2255 = vmax.f32 %v1451, %v1454
        %v2256 = vrot.slane %v2255, 4
        %v2257 = vmax.f32 %v2255, %v2256
        %v2258 = vrot.slane %v2257, 2
        %v2259 = vmax.f32 %v2257, %v2258
        %v2260 = vrot.slane %v2259, 1
        %v2261 = vmax.f32 %v2259, %v2260
        %v2262 = vmax.f32 %v1492, %v1495
        %v2263 = vrot.slane %v2262, 4
        %v2264 = vmax.f32 %v2262, %v2263
        %v2265 = vrot.slane %v2264, 2
        %v2266 = vmax.f32 %v2264, %v2265
        %v2267 = vrot.slane %v2266, 1
        %v2268 = vmax.f32 %v2266, %v2267
        %v2269 = vmax.f32 %v1725, %v1728
        %v2270 = vrot.slane %v2269, 4
        %v2271 = vmax.f32 %v2269, %v2270
        %v2272 = vrot.slane %v2271, 2
        %v2273 = vmax.f32 %v2271, %v2272
        %v2274 = vrot.slane %v2273, 1
        %v2275 = vmax.f32 %v2273, %v2274
        %v2276 = vmax.f32 %v1766, %v1769
        %v2277 = vrot.slane %v2276, 4
        %v2278 = vmax.f32 %v2276, %v2277
        %v2279 = vrot.slane %v2278, 2
        %v2280 = vmax.f32 %v2278, %v2279
        %v2281 = vrot.slane %v2280, 1
        %v2282 = vmax.f32 %v2280, %v2281
        %v2283 = vmax.f32 %v1807, %v1810
        %v2284 = vrot.slane %v2283, 4
        %v2285 = vmax.f32 %v2283, %v2284
        %v2286 = vrot.slane %v2285, 2
        %v2287 = vmax.f32 %v2285, %v2286
        %v2288 = vrot.slane %v2287, 1
        %v2289 = vmax.f32 %v2287, %v2288
        %v2290 = vmax.f32 %v1848, %v1851
        %v2291 = vrot.slane %v2290, 4
        %v2292 = vmax.f32 %v2290, %v2291
        %v2293 = vrot.slane %v2292, 2
        %v2294 = vmax.f32 %v2292, %v2293
        %v2295 = vrot.slane %v2294, 1
        %v2296 = vmax.f32 %v2294, %v2295
        %v2297 = vsub.f32 %v1369, %v2247
        %v2298 = vsub.f32 %v1410, %v2254
        %v2299 = vsub.f32 %v1451, %v2261
        %v2300 = vsub.f32 %v1492, %v2268
        %v2301 = vsub.f32 %v1372, %v2247
        %v2302 = vsub.f32 %v1413, %v2254
        %v2303 = vsub.f32 %v1454, %v2261
        %v2304 = vsub.f32 %v1495, %v2268
        %v2305 = vsub.f32 %v1725, %v2275
        %v2306 = vsub.f32 %v1766, %v2282
        %v2307 = vsub.f32 %v1807, %v2289
        %v2308 = vsub.f32 %v1848, %v2296
        %v2309 = vsub.f32 %v1728, %v2275
        %v2310 = vsub.f32 %v1769, %v2282
        %v2311 = vsub.f32 %v1810, %v2289
        %v2312 = vsub.f32 %v1851, %v2296
        %v2313 = vmul.f32 %v2297, 1.442695
        %v2314 = vpow.pop %v2313
        %v2315 = vmul.f32 %v2298, 1.442695
        %v2316 = vpow.pop %v2315
        %v2317 = vmul.f32 %v2299, 1.442695
        %v2318 = vpow.pop %v2317
        %v2319 = vmul.f32 %v2300, 1.442695
        %v2320 = vpow.pop %v2319
        %v2321 = vmul.f32 %v2301, 1.442695
        %v2322 = vpow.pop %v2321
        %v2323 = vmul.f32 %v2302, 1.442695
        %v2324 = vpow.pop %v2323
        %v2325 = vmul.f32 %v2303, 1.442695
        %v2326 = vpow.pop %v2325
        %v2327 = vmul.f32 %v2304, 1.442695
        %v2328 = vpow.pop %v2327
        %v2329 = vmul.f32 %v2305, 1.442695
        %v2330 = vpow.pop %v2329
        %v2331 = vmul.f32 %v2306, 1.442695
        %v2332 = vpow.pop %v2331
        %v2333 = vmul.f32 %v2307, 1.442695
        %v2334 = vpow.pop %v2333
        %v2335 = vmul.f32 %v2308, 1.442695
        %v2336 = vpow.pop %v2335
        %v2337 = vmul.f32 %v2309, 1.442695
        %v2338 = vpow.pop %v2337
        %v2339 = vmul.f32 %v2310, 1.442695
        %v2340 = vpow.pop %v2339
        %v2341 = vmul.f32 %v2311, 1.442695
        %v2342 = vpow.pop %v2341
        %v2343 = vmul.f32 %v2312, 1.442695
        %v2344 = vpow.pop %v2343
        %v2345 = vadd.f32 %v2314, %v2322
        %v2346 = vrot.slane %v2345, 4
        %v2347 = vadd.f32 %v2345, %v2346
        %v2348 = vrot.slane %v2347, 2
        %v2349 = vadd.f32 %v2347, %v2348
        %v2350 = vrot.slane %v2349, 1
        %v2351 = vadd.f32 %v2349, %v2350
        %v2352 = vadd.f32 %v2316, %v2324
        %v2353 = vrot.slane %v2352, 4
        %v2354 = vadd.f32 %v2352, %v2353
        %v2355 = vrot.slane %v2354, 2
        %v2356 = vadd.f32 %v2354, %v2355
        %v2357 = vrot.slane %v2356, 1
        %v2358 = vadd.f32 %v2356, %v2357
        %v2359 = vadd.f32 %v2318, %v2326
        %v2360 = vrot.slane %v2359, 4
        %v2361 = vadd.f32 %v2359, %v2360
        %v2362 = vrot.slane %v2361, 2
        %v2363 = vadd.f32 %v2361, %v2362
        %v2364 = vrot.slane %v2363, 1
        %v2365 = vadd.f32 %v2363, %v2364
        %v2366 = vadd.f32 %v2320, %v2328
        %v2367 = vrot.slane %v2366, 4
        %v2368 = vadd.f32 %v2366, %v2367
        %v2369 = vrot.slane %v2368, 2
        %v2370 = vadd.f32 %v2368, %v2369
        %v2371 = vrot.slane %v2370, 1
        %v2372 = vadd.f32 %v2370, %v2371
        %v2373 = vadd.f32 %v2330, %v2338
        %v2374 = vrot.slane %v2373, 4
        %v2375 = vadd.f32 %v2373, %v2374
        %v2376 = vrot.slane %v2375, 2
        %v2377 = vadd.f32 %v2375, %v2376
        %v2378 = vrot.slane %v2377, 1
        %v2379 = vadd.f32 %v2377, %v2378
        %v2380 = vadd.f32 %v2332, %v2340
        %v2381 = vrot.slane %v2380, 4
        %v2382 = vadd.f32 %v2380, %v2381
        %v2383 = vrot.slane %v2382, 2
        %v2384 = vadd.f32 %v2382, %v2383
        %v2385 = vrot.slane %v2384, 1
        %v2386 = vadd.f32 %v2384, %v2385
        %v2387 = vadd.f32 %v2334, %v2342
        %v2388 = vrot.slane %v2387, 4
        %v2389 = vadd.f32 %v2387, %v2388
        %v2390 = vrot.slane %v2389, 2
        %v2391 = vadd.f32 %v2389, %v2390
        %v2392 = vrot.slane %v2391, 1
        %v2393 = vadd.f32 %v2391, %v2392
        %v2394 = vadd.f32 %v2336, %v2344
        %v2395 = vrot.slane %v2394, 4
        %v2396 = vadd.f32 %v2394, %v2395
        %v2397 = vrot.slane %v2396, 2
        %v2398 = vadd.f32 %v2396, %v2397
        %v2399 = vrot.slane %v2398, 1
        %v2400 = vadd.f32 %v2398, %v2399
        %v2401 = vlog2.pop %v2351
        %v2402 = vmul.f32 %v2401, 0.6931472
        %v2403 = vlog2.pop %v2358
        %v2404 = vmul.f32 %v2403, 0.6931472
        %v2405 = vlog2.pop %v2365
        %v2406 = vmul.f32 %v2405, 0.6931472
        %v2407 = vlog2.pop %v2372
        %v2408 = vmul.f32 %v2407, 0.6931472
        %v2409 = vlog2.pop %v2379
        %v2410 = vmul.f32 %v2409, 0.6931472
        %v2411 = vlog2.pop %v2386
        %v2412 = vmul.f32 %v2411, 0.6931472
        %v2413 = vlog2.pop %v2393
        %v2414 = vmul.f32 %v2413, 0.6931472
        %v2415 = vlog2.pop %v2400
        %v2416 = vmul.f32 %v2415, 0.6931472
        %v2417 = vadd.f32 %v2247, %v2402
        %v2418 = vadd.f32 %v2254, %v2404
        %v2419 = vadd.f32 %v2261, %v2406
        %v2420 = vadd.f32 %v2268, %v2408
        %v2421 = vadd.f32 %v2275, %v2410
        %v2422 = vadd.f32 %v2282, %v2412
        %v2423 = vadd.f32 %v2289, %v2414
        %v2424 = vadd.f32 %v2296, %v2416
        %v2425 = vmax.f32 %v1868, 0.0
        %v2426 = vmin.f32 %v2425, 14.99
        %v2428 = vrot.slane %v2426, 1
        %v2429 = vrot.slane %v2426, 2
        %v2430 = vrot.slane %v2426, 3
        %v2431 = vsel %vm2061, %v2426, %v2428
        %v2432 = vsel %vm2063, %v2429, %v2430
        %v2433 = vsel %vm936, %v2431, %v2432
        %v2434 = vsel %vm2066, %v2426, %v2428
        %v2435 = vsel %vm2068, %v2429, %v2430
        %v2436 = vsel %vm2070, %v2434, %v2435
        %v2437 = vrot.slane %v2436, 1
        %v2438 = vperm.slane %v2433, 0
        %v2439 = vperm.slane %v2433, 1
        %v2440 = vperm.slane %v2433, 2
        %v2441 = vperm.slane %v2433, 3
        %v2442 = vperm.slane %v2437, 0
        %v2443 = vperm.slane %v2437, 1
        %v2444 = vperm.slane %v2437, 2
        %v2445 = vperm.slane %v2437, 3
        %v2454 = vsub.f32 %v1865, %v2438
        %v2455 = vsub.f32 %v1865, %v2439
        %v2456 = vsub.f32 %v1865, %v2440
        %v2457 = vsub.f32 %v1865, %v2441
        %v2458 = vsub.f32 %v1866, %v2438
        %v2459 = vsub.f32 %v1866, %v2439
        %v2460 = vsub.f32 %v1866, %v2440
        %v2461 = vsub.f32 %v1866, %v2441
        %v2462 = vsub.f32 %v1865, %v2442
        %v2463 = vsub.f32 %v1865, %v2443
        %v2464 = vsub.f32 %v1865, %v2444
        %v2465 = vsub.f32 %v1865, %v2445
        %v2466 = vsub.f32 %v1866, %v2442
        %v2467 = vsub.f32 %v1866, %v2443
        %v2468 = vsub.f32 %v1866, %v2444
        %v2469 = vsub.f32 %v1866, %v2445
        %v2470 = vand.u32 2147483647, %v2454
        %v2471 = vand.u32 2147483647, %v2455
        %v2472 = vand.u32 2147483647, %v2456
        %v2473 = vand.u32 2147483647, %v2457
        %v2474 = vand.u32 2147483647, %v2458
        %v2475 = vand.u32 2147483647, %v2459
        %v2476 = vand.u32 2147483647, %v2460
        %v2477 = vand.u32 2147483647, %v2461
        %v2478 = vand.u32 2147483647, %v2462
        %v2479 = vand.u32 2147483647, %v2463
        %v2480 = vand.u32 2147483647, %v2464
        %v2481 = vand.u32 2147483647, %v2465
        %v2482 = vand.u32 2147483647, %v2466
        %v2483 = vand.u32 2147483647, %v2467
        %v2484 = vand.u32 2147483647, %v2468
        %v2485 = vand.u32 2147483647, %v2469
        %v2486 = vsub.f32 1.0, %v2470
        %v2487 = vsub.f32 1.0, %v2471
        %v2488 = vsub.f32 1.0, %v2472
        %v2489 = vsub.f32 1.0, %v2473
        %v2490 = vsub.f32 1.0, %v2474
        %v2491 = vsub.f32 1.0, %v2475
        %v2492 = vsub.f32 1.0, %v2476
        %v2493 = vsub.f32 1.0, %v2477
        %v2494 = vsub.f32 1.0, %v2478
        %v2495 = vsub.f32 1.0, %v2479
        %v2496 = vsub.f32 1.0, %v2480
        %v2497 = vsub.f32 1.0, %v2481
        %v2498 = vsub.f32 1.0, %v2482
        %v2499 = vsub.f32 1.0, %v2483
        %v2500 = vsub.f32 1.0, %v2484
        %v2501 = vsub.f32 1.0, %v2485
        %v2502 = vmax.f32 %v2486, 0.0
        %v2503 = vmax.f32 %v2487, 0.0
        %v2504 = vmax.f32 %v2488, 0.0
        %v2505 = vmax.f32 %v2489, 0.0
        %v2506 = vmax.f32 %v2490, 0.0
        %v2507 = vmax.f32 %v2491, 0.0
        %v2508 = vmax.f32 %v2492, 0.0
        %v2509 = vmax.f32 %v2493, 0.0
        %v2510 = vmax.f32 %v2494, 0.0
        %v2511 = vmax.f32 %v2495, 0.0
        %v2512 = vmax.f32 %v2496, 0.0
        %v2513 = vmax.f32 %v2497, 0.0
        %v2514 = vmax.f32 %v2498, 0.0
        %v2515 = vmax.f32 %v2499, 0.0
        %v2516 = vmax.f32 %v2500, 0.0
        %v2517 = vmax.f32 %v2501, 0.0
        %v2518 = vmul.f32 %v2502, %v1369
        %v2519 = vmul.f32 %v2503, %v1410
        %v2520 = vmul.f32 %v2504, %v1451
        %v2521 = vmul.f32 %v2505, %v1492
        %v2522 = vmul.f32 %v2506, %v1372
        %v2523 = vmul.f32 %v2507, %v1413
        %v2524 = vmul.f32 %v2508, %v1454
        %v2525 = vmul.f32 %v2509, %v1495
        %v2526 = vmul.f32 %v2510, %v1725
        %v2527 = vmul.f32 %v2511, %v1766
        %v2528 = vmul.f32 %v2512, %v1807
        %v2529 = vmul.f32 %v2513, %v1848
        %v2530 = vmul.f32 %v2514, %v1728
        %v2531 = vmul.f32 %v2515, %v1769
        %v2532 = vmul.f32 %v2516, %v1810
        %v2533 = vmul.f32 %v2517, %v1851
        %v2534 = vadd.f32 %v2518, %v2522
        %v2535 = vrot.slane %v2534, 4
        %v2536 = vadd.f32 %v2534, %v2535
        %v2537 = vrot.slane %v2536, 2
        %v2538 = vadd.f32 %v2536, %v2537
        %v2539 = vrot.slane %v2538, 1
        %v2540 = vadd.f32 %v2538, %v2539
        %v2541 = vadd.f32 %v2519, %v2523
        %v2542 = vrot.slane %v2541, 4
        %v2543 = vadd.f32 %v2541, %v2542
        %v2544 = vrot.slane %v2543, 2
        %v2545 = vadd.f32 %v2543, %v2544
        %v2546 = vrot.slane %v2545, 1
        %v2547 = vadd.f32 %v2545, %v2546
        %v2548 = vadd.f32 %v2520, %v2524
        %v2549 = vrot.slane %v2548, 4
        %v2550 = vadd.f32 %v2548, %v2549
        %v2551 = vrot.slane %v2550, 2
        %v2552 = vadd.f32 %v2550, %v2551
        %v2553 = vrot.slane %v2552, 1
        %v2554 = vadd.f32 %v2552, %v2553
        %v2555 = vadd.f32 %v2521, %v2525
        %v2556 = vrot.slane %v2555, 4
        %v2557 = vadd.f32 %v2555, %v2556
        %v2558 = vrot.slane %v2557, 2
        %v2559 = vadd.f32 %v2557, %v2558
        %v2560 = vrot.slane %v2559, 1
        %v2561 = vadd.f32 %v2559, %v2560
        %v2562 = vadd.f32 %v2526, %v2530
        %v2563 = vrot.slane %v2562, 4
        %v2564 = vadd.f32 %v2562, %v2563
        %v2565 = vrot.slane %v2564, 2
        %v2566 = vadd.f32 %v2564, %v2565
        %v2567 = vrot.slane %v2566, 1
        %v2568 = vadd.f32 %v2566, %v2567
        %v2569 = vadd.f32 %v2527, %v2531
        %v2570 = vrot.slane %v2569, 4
        %v2571 = vadd.f32 %v2569, %v2570
        %v2572 = vrot.slane %v2571, 2
        %v2573 = vadd.f32 %v2571, %v2572
        %v2574 = vrot.slane %v2573, 1
        %v2575 = vadd.f32 %v2573, %v2574
        %v2576 = vadd.f32 %v2528, %v2532
        %v2577 = vrot.slane %v2576, 4
        %v2578 = vadd.f32 %v2576, %v2577
        %v2579 = vrot.slane %v2578, 2
        %v2580 = vadd.f32 %v2578, %v2579
        %v2581 = vrot.slane %v2580, 1
        %v2582 = vadd.f32 %v2580, %v2581
        %v2583 = vadd.f32 %v2529, %v2533
        %v2584 = vrot.slane %v2583, 4
        %v2585 = vadd.f32 %v2583, %v2584
        %v2586 = vrot.slane %v2585, 2
        %v2587 = vadd.f32 %v2585, %v2586
        %v2588 = vrot.slane %v2587, 1
        %v2589 = vadd.f32 %v2587, %v2588
        %v2590 = vsub.f32 %v2417, %v2540
        %v2591 = vsub.f32 %v2418, %v2547
        %v2592 = vsub.f32 %v2419, %v2554
        %v2593 = vsub.f32 %v2420, %v2561
        %v2594 = vsub.f32 %v2421, %v2568
        %v2595 = vsub.f32 %v2422, %v2575
        %v2596 = vsub.f32 %v2423, %v2582
        %v2597 = vsub.f32 %v2424, %v2589
        %v2598 = vadd.f32 %v2233, %v2590
        %v2599 = vadd.f32 %v2234, %v2591
        %v2600 = vadd.f32 %v2235, %v2592
        %v2601 = vadd.f32 %v2236, %v2593
        %v2602 = vadd.f32 %v2237, %v2594
        %v2603 = vadd.f32 %v2238, %v2595
        %v2604 = vadd.f32 %v2239, %v2596
        %v2605 = vadd.f32 %v2240, %v2597
        %v2606 = vmax.f32 %v1375, %v1378
        %v2607 = vrot.slane %v2606, 4
        %v2608 = vmax.f32 %v2606, %v2607
        %v2609 = vrot.slane %v2608, 2
        %v2610 = vmax.f32 %v2608, %v2609
        %v2611 = vrot.slane %v2610, 1
        %v2612 = vmax.f32 %v2610, %v2611
        %v2613 = vmax.f32 %v1416, %v1419
        %v2614 = vrot.slane %v2613, 4
        %v2615 = vmax.f32 %v2613, %v2614
        %v2616 = vrot.slane %v2615, 2
        %v2617 = vmax.f32 %v2615, %v2616
        %v2618 = vrot.slane %v2617, 1
        %v2619 = vmax.f32 %v2617, %v2618
        %v2620 = vmax.f32 %v1457, %v1460
        %v2621 = vrot.slane %v2620, 4
        %v2622 = vmax.f32 %v2620, %v2621
        %v2623 = vrot.slane %v2622, 2
        %v2624 = vmax.f32 %v2622, %v2623
        %v2625 = vrot.slane %v2624, 1
        %v2626 = vmax.f32 %v2624, %v2625
        %v2627 = vmax.f32 %v1498, %v1501
        %v2628 = vrot.slane %v2627, 4
        %v2629 = vmax.f32 %v2627, %v2628
        %v2630 = vrot.slane %v2629, 2
        %v2631 = vmax.f32 %v2629, %v2630
        %v2632 = vrot.slane %v2631, 1
        %v2633 = vmax.f32 %v2631, %v2632
        %v2634 = vmax.f32 %v1731, %v1734
        %v2635 = vrot.slane %v2634, 4
        %v2636 = vmax.f32 %v2634, %v2635
        %v2637 = vrot.slane %v2636, 2
        %v2638 = vmax.f32 %v2636, %v2637
        %v2639 = vrot.slane %v2638, 1
        %v2640 = vmax.f32 %v2638, %v2639
        %v2641 = vmax.f32 %v1772, %v1775
        %v2642 = vrot.slane %v2641, 4
        %v2643 = vmax.f32 %v2641, %v2642
        %v2644 = vrot.slane %v2643, 2
        %v2645 = vmax.f32 %v2643, %v2644
        %v2646 = vrot.slane %v2645, 1
        %v2647 = vmax.f32 %v2645, %v2646
        %v2648 = vmax.f32 %v1813, %v1816
        %v2649 = vrot.slane %v2648, 4
        %v2650 = vmax.f32 %v2648, %v2649
        %v2651 = vrot.slane %v2650, 2
        %v2652 = vmax.f32 %v2650, %v2651
        %v2653 = vrot.slane %v2652, 1
        %v2654 = vmax.f32 %v2652, %v2653
        %v2655 = vmax.f32 %v1854, %v1857
        %v2656 = vrot.slane %v2655, 4
        %v2657 = vmax.f32 %v2655, %v2656
        %v2658 = vrot.slane %v2657, 2
        %v2659 = vmax.f32 %v2657, %v2658
        %v2660 = vrot.slane %v2659, 1
        %v2661 = vmax.f32 %v2659, %v2660
        %v2662 = vsub.f32 %v1375, %v2612
        %v2663 = vsub.f32 %v1416, %v2619
        %v2664 = vsub.f32 %v1457, %v2626
        %v2665 = vsub.f32 %v1498, %v2633
        %v2666 = vsub.f32 %v1378, %v2612
        %v2667 = vsub.f32 %v1419, %v2619
        %v2668 = vsub.f32 %v1460, %v2626
        %v2669 = vsub.f32 %v1501, %v2633
        %v2670 = vsub.f32 %v1731, %v2640
        %v2671 = vsub.f32 %v1772, %v2647
        %v2672 = vsub.f32 %v1813, %v2654
        %v2673 = vsub.f32 %v1854, %v2661
        %v2674 = vsub.f32 %v1734, %v2640
        %v2675 = vsub.f32 %v1775, %v2647
        %v2676 = vsub.f32 %v1816, %v2654
        %v2677 = vsub.f32 %v1857, %v2661
        %v2678 = vmul.f32 %v2662, 1.442695
        %v2679 = vpow.pop %v2678
        %v2680 = vmul.f32 %v2663, 1.442695
        %v2681 = vpow.pop %v2680
        %v2682 = vmul.f32 %v2664, 1.442695
        %v2683 = vpow.pop %v2682
        %v2684 = vmul.f32 %v2665, 1.442695
        %v2685 = vpow.pop %v2684
        %v2686 = vmul.f32 %v2666, 1.442695
        %v2687 = vpow.pop %v2686
        %v2688 = vmul.f32 %v2667, 1.442695
        %v2689 = vpow.pop %v2688
        %v2690 = vmul.f32 %v2668, 1.442695
        %v2691 = vpow.pop %v2690
        %v2692 = vmul.f32 %v2669, 1.442695
        %v2693 = vpow.pop %v2692
        %v2694 = vmul.f32 %v2670, 1.442695
        %v2695 = vpow.pop %v2694
        %v2696 = vmul.f32 %v2671, 1.442695
        %v2697 = vpow.pop %v2696
        %v2698 = vmul.f32 %v2672, 1.442695
        %v2699 = vpow.pop %v2698
        %v2700 = vmul.f32 %v2673, 1.442695
        %v2701 = vpow.pop %v2700
        %v2702 = vmul.f32 %v2674, 1.442695
        %v2703 = vpow.pop %v2702
        %v2704 = vmul.f32 %v2675, 1.442695
        %v2705 = vpow.pop %v2704
        %v2706 = vmul.f32 %v2676, 1.442695
        %v2707 = vpow.pop %v2706
        %v2708 = vmul.f32 %v2677, 1.442695
        %v2709 = vpow.pop %v2708
        %v2710 = vadd.f32 %v2679, %v2687
        %v2711 = vrot.slane %v2710, 4
        %v2712 = vadd.f32 %v2710, %v2711
        %v2713 = vrot.slane %v2712, 2
        %v2714 = vadd.f32 %v2712, %v2713
        %v2715 = vrot.slane %v2714, 1
        %v2716 = vadd.f32 %v2714, %v2715
        %v2717 = vadd.f32 %v2681, %v2689
        %v2718 = vrot.slane %v2717, 4
        %v2719 = vadd.f32 %v2717, %v2718
        %v2720 = vrot.slane %v2719, 2
        %v2721 = vadd.f32 %v2719, %v2720
        %v2722 = vrot.slane %v2721, 1
        %v2723 = vadd.f32 %v2721, %v2722
        %v2724 = vadd.f32 %v2683, %v2691
        %v2725 = vrot.slane %v2724, 4
        %v2726 = vadd.f32 %v2724, %v2725
        %v2727 = vrot.slane %v2726, 2
        %v2728 = vadd.f32 %v2726, %v2727
        %v2729 = vrot.slane %v2728, 1
        %v2730 = vadd.f32 %v2728, %v2729
        %v2731 = vadd.f32 %v2685, %v2693
        %v2732 = vrot.slane %v2731, 4
        %v2733 = vadd.f32 %v2731, %v2732
        %v2734 = vrot.slane %v2733, 2
        %v2735 = vadd.f32 %v2733, %v2734
        %v2736 = vrot.slane %v2735, 1
        %v2737 = vadd.f32 %v2735, %v2736
        %v2738 = vadd.f32 %v2695, %v2703
        %v2739 = vrot.slane %v2738, 4
        %v2740 = vadd.f32 %v2738, %v2739
        %v2741 = vrot.slane %v2740, 2
        %v2742 = vadd.f32 %v2740, %v2741
        %v2743 = vrot.slane %v2742, 1
        %v2744 = vadd.f32 %v2742, %v2743
        %v2745 = vadd.f32 %v2697, %v2705
        %v2746 = vrot.slane %v2745, 4
        %v2747 = vadd.f32 %v2745, %v2746
        %v2748 = vrot.slane %v2747, 2
        %v2749 = vadd.f32 %v2747, %v2748
        %v2750 = vrot.slane %v2749, 1
        %v2751 = vadd.f32 %v2749, %v2750
        %v2752 = vadd.f32 %v2699, %v2707
        %v2753 = vrot.slane %v2752, 4
        %v2754 = vadd.f32 %v2752, %v2753
        %v2755 = vrot.slane %v2754, 2
        %v2756 = vadd.f32 %v2754, %v2755
        %v2757 = vrot.slane %v2756, 1
        %v2758 = vadd.f32 %v2756, %v2757
        %v2759 = vadd.f32 %v2701, %v2709
        %v2760 = vrot.slane %v2759, 4
        %v2761 = vadd.f32 %v2759, %v2760
        %v2762 = vrot.slane %v2761, 2
        %v2763 = vadd.f32 %v2761, %v2762
        %v2764 = vrot.slane %v2763, 1
        %v2765 = vadd.f32 %v2763, %v2764
        %v2766 = vlog2.pop %v2716
        %v2767 = vmul.f32 %v2766, 0.6931472
        %v2768 = vlog2.pop %v2723
        %v2769 = vmul.f32 %v2768, 0.6931472
        %v2770 = vlog2.pop %v2730
        %v2771 = vmul.f32 %v2770, 0.6931472
        %v2772 = vlog2.pop %v2737
        %v2773 = vmul.f32 %v2772, 0.6931472
        %v2774 = vlog2.pop %v2744
        %v2775 = vmul.f32 %v2774, 0.6931472
        %v2776 = vlog2.pop %v2751
        %v2777 = vmul.f32 %v2776, 0.6931472
        %v2778 = vlog2.pop %v2758
        %v2779 = vmul.f32 %v2778, 0.6931472
        %v2780 = vlog2.pop %v2765
        %v2781 = vmul.f32 %v2780, 0.6931472
        %v2782 = vadd.f32 %v2612, %v2767
        %v2783 = vadd.f32 %v2619, %v2769
        %v2784 = vadd.f32 %v2626, %v2771
        %v2785 = vadd.f32 %v2633, %v2773
        %v2786 = vadd.f32 %v2640, %v2775
        %v2787 = vadd.f32 %v2647, %v2777
        %v2788 = vadd.f32 %v2654, %v2779
        %v2789 = vadd.f32 %v2661, %v2781
        %v2790 = vmax.f32 %v1869, 0.0
        %v2791 = vmin.f32 %v2790, 14.99
        %v2793 = vrot.slane %v2791, 1
        %v2794 = vrot.slane %v2791, 2
        %v2795 = vrot.slane %v2791, 3
        %v2796 = vsel %vm2061, %v2791, %v2793
        %v2797 = vsel %vm2063, %v2794, %v2795
        %v2798 = vsel %vm936, %v2796, %v2797
        %v2799 = vsel %vm2066, %v2791, %v2793
        %v2800 = vsel %vm2068, %v2794, %v2795
        %v2801 = vsel %vm2070, %v2799, %v2800
        %v2802 = vrot.slane %v2801, 1
        %v2803 = vperm.slane %v2798, 0
        %v2804 = vperm.slane %v2798, 1
        %v2805 = vperm.slane %v2798, 2
        %v2806 = vperm.slane %v2798, 3
        %v2807 = vperm.slane %v2802, 0
        %v2808 = vperm.slane %v2802, 1
        %v2809 = vperm.slane %v2802, 2
        %v2810 = vperm.slane %v2802, 3
        %v2819 = vsub.f32 %v1865, %v2803
        %v2820 = vsub.f32 %v1865, %v2804
        %v2821 = vsub.f32 %v1865, %v2805
        %v2822 = vsub.f32 %v1865, %v2806
        %v2823 = vsub.f32 %v1866, %v2803
        %v2824 = vsub.f32 %v1866, %v2804
        %v2825 = vsub.f32 %v1866, %v2805
        %v2826 = vsub.f32 %v1866, %v2806
        %v2827 = vsub.f32 %v1865, %v2807
        %v2828 = vsub.f32 %v1865, %v2808
        %v2829 = vsub.f32 %v1865, %v2809
        %v2830 = vsub.f32 %v1865, %v2810
        %v2831 = vsub.f32 %v1866, %v2807
        %v2832 = vsub.f32 %v1866, %v2808
        %v2833 = vsub.f32 %v1866, %v2809
        %v2834 = vsub.f32 %v1866, %v2810
        %v2835 = vand.u32 2147483647, %v2819
        %v2836 = vand.u32 2147483647, %v2820
        %v2837 = vand.u32 2147483647, %v2821
        %v2838 = vand.u32 2147483647, %v2822
        %v2839 = vand.u32 2147483647, %v2823
        %v2840 = vand.u32 2147483647, %v2824
        %v2841 = vand.u32 2147483647, %v2825
        %v2842 = vand.u32 2147483647, %v2826
        %v2843 = vand.u32 2147483647, %v2827
        %v2844 = vand.u32 2147483647, %v2828
        %v2845 = vand.u32 2147483647, %v2829
        %v2846 = vand.u32 2147483647, %v2830
        %v2847 = vand.u32 2147483647, %v2831
        %v2848 = vand.u32 2147483647, %v2832
        %v2849 = vand.u32 2147483647, %v2833
        %v2850 = vand.u32 2147483647, %v2834
        %v2851 = vsub.f32 1.0, %v2835
        %v2852 = vsub.f32 1.0, %v2836
        %v2853 = vsub.f32 1.0, %v2837
        %v2854 = vsub.f32 1.0, %v2838
        %v2855 = vsub.f32 1.0, %v2839
        %v2856 = vsub.f32 1.0, %v2840
        %v2857 = vsub.f32 1.0, %v2841
        %v2858 = vsub.f32 1.0, %v2842
        %v2859 = vsub.f32 1.0, %v2843
        %v2860 = vsub.f32 1.0, %v2844
        %v2861 = vsub.f32 1.0, %v2845
        %v2862 = vsub.f32 1.0, %v2846
        %v2863 = vsub.f32 1.0, %v2847
        %v2864 = vsub.f32 1.0, %v2848
        %v2865 = vsub.f32 1.0, %v2849
        %v2866 = vsub.f32 1.0, %v2850
        %v2867 = vmax.f32 %v2851, 0.0
        %v2868 = vmax.f32 %v2852, 0.0
        %v2869 = vmax.f32 %v2853, 0.0
        %v2870 = vmax.f32 %v2854, 0.0
        %v2871 = vmax.f32 %v2855, 0.0
        %v2872 = vmax.f32 %v2856, 0.0
        %v2873 = vmax.f32 %v2857, 0.0
        %v2874 = vmax.f32 %v2858, 0.0
        %v2875 = vmax.f32 %v2859, 0.0
        %v2876 = vmax.f32 %v2860, 0.0
        %v2877 = vmax.f32 %v2861, 0.0
        %v2878 = vmax.f32 %v2862, 0.0
        %v2879 = vmax.f32 %v2863, 0.0
        %v2880 = vmax.f32 %v2864, 0.0
        %v2881 = vmax.f32 %v2865, 0.0
        %v2882 = vmax.f32 %v2866, 0.0
        %v2883 = vmul.f32 %v2867, %v1375
        %v2884 = vmul.f32 %v2868, %v1416
        %v2885 = vmul.f32 %v2869, %v1457
        %v2886 = vmul.f32 %v2870, %v1498
        %v2887 = vmul.f32 %v2871, %v1378
        %v2888 = vmul.f32 %v2872, %v1419
        %v2889 = vmul.f32 %v2873, %v1460
        %v2890 = vmul.f32 %v2874, %v1501
        %v2891 = vmul.f32 %v2875, %v1731
        %v2892 = vmul.f32 %v2876, %v1772
        %v2893 = vmul.f32 %v2877, %v1813
        %v2894 = vmul.f32 %v2878, %v1854
        %v2895 = vmul.f32 %v2879, %v1734
        %v2896 = vmul.f32 %v2880, %v1775
        %v2897 = vmul.f32 %v2881, %v1816
        %v2898 = vmul.f32 %v2882, %v1857
        %v2899 = vadd.f32 %v2883, %v2887
        %v2900 = vrot.slane %v2899, 4
        %v2901 = vadd.f32 %v2899, %v2900
        %v2902 = vrot.slane %v2901, 2
        %v2903 = vadd.f32 %v2901, %v2902
        %v2904 = vrot.slane %v2903, 1
        %v2905 = vadd.f32 %v2903, %v2904
        %v2906 = vadd.f32 %v2884, %v2888
        %v2907 = vrot.slane %v2906, 4
        %v2908 = vadd.f32 %v2906, %v2907
        %v2909 = vrot.slane %v2908, 2
        %v2910 = vadd.f32 %v2908, %v2909
        %v2911 = vrot.slane %v2910, 1
        %v2912 = vadd.f32 %v2910, %v2911
        %v2913 = vadd.f32 %v2885, %v2889
        %v2914 = vrot.slane %v2913, 4
        %v2915 = vadd.f32 %v2913, %v2914
        %v2916 = vrot.slane %v2915, 2
        %v2917 = vadd.f32 %v2915, %v2916
        %v2918 = vrot.slane %v2917, 1
        %v2919 = vadd.f32 %v2917, %v2918
        %v2920 = vadd.f32 %v2886, %v2890
        %v2921 = vrot.slane %v2920, 4
        %v2922 = vadd.f32 %v2920, %v2921
        %v2923 = vrot.slane %v2922, 2
        %v2924 = vadd.f32 %v2922, %v2923
        %v2925 = vrot.slane %v2924, 1
        %v2926 = vadd.f32 %v2924, %v2925
        %v2927 = vadd.f32 %v2891, %v2895
        %v2928 = vrot.slane %v2927, 4
        %v2929 = vadd.f32 %v2927, %v2928
        %v2930 = vrot.slane %v2929, 2
        %v2931 = vadd.f32 %v2929, %v2930
        %v2932 = vrot.slane %v2931, 1
        %v2933 = vadd.f32 %v2931, %v2932
        %v2934 = vadd.f32 %v2892, %v2896
        %v2935 = vrot.slane %v2934, 4
        %v2936 = vadd.f32 %v2934, %v2935
        %v2937 = vrot.slane %v2936, 2
        %v2938 = vadd.f32 %v2936, %v2937
        %v2939 = vrot.slane %v2938, 1
        %v2940 = vadd.f32 %v2938, %v2939
        %v2941 = vadd.f32 %v2893, %v2897
        %v2942 = vrot.slane %v2941, 4
        %v2943 = vadd.f32 %v2941, %v2942
        %v2944 = vrot.slane %v2943, 2
        %v2945 = vadd.f32 %v2943, %v2944
        %v2946 = vrot.slane %v2945, 1
        %v2947 = vadd.f32 %v2945, %v2946
        %v2948 = vadd.f32 %v2894, %v2898
        %v2949 = vrot.slane %v2948, 4
        %v2950 = vadd.f32 %v2948, %v2949
        %v2951 = vrot.slane %v2950, 2
        %v2952 = vadd.f32 %v2950, %v2951
        %v2953 = vrot.slane %v2952, 1
        %v2954 = vadd.f32 %v2952, %v2953
        %v2955 = vsub.f32 %v2782, %v2905
        %v2956 = vsub.f32 %v2783, %v2912
        %v2957 = vsub.f32 %v2784, %v2919
        %v2958 = vsub.f32 %v2785, %v2926
        %v2959 = vsub.f32 %v2786, %v2933
        %v2960 = vsub.f32 %v2787, %v2940
        %v2961 = vsub.f32 %v2788, %v2947
        %v2962 = vsub.f32 %v2789, %v2954
        %v2963 = vadd.f32 %v2598, %v2955
        %v2964 = vadd.f32 %v2599, %v2956
        %v2965 = vadd.f32 %v2600, %v2957
        %v2966 = vadd.f32 %v2601, %v2958
        %v2967 = vadd.f32 %v2602, %v2959
        %v2968 = vadd.f32 %v2603, %v2960
        %v2969 = vadd.f32 %v2604, %v2961
        %v2970 = vadd.f32 %v2605, %v2962
        %v2971 = vmax.f32 %v1381, %v1384
        %v2972 = vrot.slane %v2971, 4
        %v2973 = vmax.f32 %v2971, %v2972
        %v2974 = vrot.slane %v2973, 2
        %v2975 = vmax.f32 %v2973, %v2974
        %v2976 = vrot.slane %v2975, 1
        %v2977 = vmax.f32 %v2975, %v2976
        %v2978 = vmax.f32 %v1422, %v1425
        %v2979 = vrot.slane %v2978, 4
        %v2980 = vmax.f32 %v2978, %v2979
        %v2981 = vrot.slane %v2980, 2
        %v2982 = vmax.f32 %v2980, %v2981
        %v2983 = vrot.slane %v2982, 1
        %v2984 = vmax.f32 %v2982, %v2983
        %v2985 = vmax.f32 %v1463, %v1466
        %v2986 = vrot.slane %v2985, 4
        %v2987 = vmax.f32 %v2985, %v2986
        %v2988 = vrot.slane %v2987, 2
        %v2989 = vmax.f32 %v2987, %v2988
        %v2990 = vrot.slane %v2989, 1
        %v2991 = vmax.f32 %v2989, %v2990
        %v2992 = vmax.f32 %v1504, %v1507
        %v2993 = vrot.slane %v2992, 4
        %v2994 = vmax.f32 %v2992, %v2993
        %v2995 = vrot.slane %v2994, 2
        %v2996 = vmax.f32 %v2994, %v2995
        %v2997 = vrot.slane %v2996, 1
        %v2998 = vmax.f32 %v2996, %v2997
        %v2999 = vmax.f32 %v1737, %v1740
        %v3000 = vrot.slane %v2999, 4
        %v3001 = vmax.f32 %v2999, %v3000
        %v3002 = vrot.slane %v3001, 2
        %v3003 = vmax.f32 %v3001, %v3002
        %v3004 = vrot.slane %v3003, 1
        %v3005 = vmax.f32 %v3003, %v3004
        %v3006 = vmax.f32 %v1778, %v1781
        %v3007 = vrot.slane %v3006, 4
        %v3008 = vmax.f32 %v3006, %v3007
        %v3009 = vrot.slane %v3008, 2
        %v3010 = vmax.f32 %v3008, %v3009
        %v3011 = vrot.slane %v3010, 1
        %v3012 = vmax.f32 %v3010, %v3011
        %v3013 = vmax.f32 %v1819, %v1822
        %v3014 = vrot.slane %v3013, 4
        %v3015 = vmax.f32 %v3013, %v3014
        %v3016 = vrot.slane %v3015, 2
        %v3017 = vmax.f32 %v3015, %v3016
        %v3018 = vrot.slane %v3017, 1
        %v3019 = vmax.f32 %v3017, %v3018
        %v3020 = vmax.f32 %v1860, %v1863
        %v3021 = vrot.slane %v3020, 4
        %v3022 = vmax.f32 %v3020, %v3021
        %v3023 = vrot.slane %v3022, 2
        %v3024 = vmax.f32 %v3022, %v3023
        %v3025 = vrot.slane %v3024, 1
        %v3026 = vmax.f32 %v3024, %v3025
        %v3027 = vsub.f32 %v1381, %v2977
        %v3028 = vsub.f32 %v1422, %v2984
        %v3029 = vsub.f32 %v1463, %v2991
        %v3030 = vsub.f32 %v1504, %v2998
        %v3031 = vsub.f32 %v1384, %v2977
        %v3032 = vsub.f32 %v1425, %v2984
        %v3033 = vsub.f32 %v1466, %v2991
        %v3034 = vsub.f32 %v1507, %v2998
        %v3035 = vsub.f32 %v1737, %v3005
        %v3036 = vsub.f32 %v1778, %v3012
        %v3037 = vsub.f32 %v1819, %v3019
        %v3038 = vsub.f32 %v1860, %v3026
        %v3039 = vsub.f32 %v1740, %v3005
        %v3040 = vsub.f32 %v1781, %v3012
        %v3041 = vsub.f32 %v1822, %v3019
        %v3042 = vsub.f32 %v1863, %v3026
        %v3043 = vmul.f32 %v3027, 1.442695
        %v3044 = vpow.pop %v3043
        %v3045 = vmul.f32 %v3028, 1.442695
        %v3046 = vpow.pop %v3045
        %v3047 = vmul.f32 %v3029, 1.442695
        %v3048 = vpow.pop %v3047
        %v3049 = vmul.f32 %v3030, 1.442695
        %v3050 = vpow.pop %v3049
        %v3051 = vmul.f32 %v3031, 1.442695
        %v3052 = vpow.pop %v3051
        %v3053 = vmul.f32 %v3032, 1.442695
        %v3054 = vpow.pop %v3053
        %v3055 = vmul.f32 %v3033, 1.442695
        %v3056 = vpow.pop %v3055
        %v3057 = vmul.f32 %v3034, 1.442695
        %v3058 = vpow.pop %v3057
        %v3059 = vmul.f32 %v3035, 1.442695
        %v3060 = vpow.pop %v3059
        %v3061 = vmul.f32 %v3036, 1.442695
        %v3062 = vpow.pop %v3061
        %v3063 = vmul.f32 %v3037, 1.442695
        %v3064 = vpow.pop %v3063
        %v3065 = vmul.f32 %v3038, 1.442695
        %v3066 = vpow.pop %v3065
        %v3067 = vmul.f32 %v3039, 1.442695
        %v3068 = vpow.pop %v3067
        %v3069 = vmul.f32 %v3040, 1.442695
        %v3070 = vpow.pop %v3069
        %v3071 = vmul.f32 %v3041, 1.442695
        %v3072 = vpow.pop %v3071
        %v3073 = vmul.f32 %v3042, 1.442695
        %v3074 = vpow.pop %v3073
        %v3075 = vadd.f32 %v3044, %v3052
        %v3076 = vrot.slane %v3075, 4
        %v3077 = vadd.f32 %v3075, %v3076
        %v3078 = vrot.slane %v3077, 2
        %v3079 = vadd.f32 %v3077, %v3078
        %v3080 = vrot.slane %v3079, 1
        %v3081 = vadd.f32 %v3079, %v3080
        %v3082 = vadd.f32 %v3046, %v3054
        %v3083 = vrot.slane %v3082, 4
        %v3084 = vadd.f32 %v3082, %v3083
        %v3085 = vrot.slane %v3084, 2
        %v3086 = vadd.f32 %v3084, %v3085
        %v3087 = vrot.slane %v3086, 1
        %v3088 = vadd.f32 %v3086, %v3087
        %v3089 = vadd.f32 %v3048, %v3056
        %v3090 = vrot.slane %v3089, 4
        %v3091 = vadd.f32 %v3089, %v3090
        %v3092 = vrot.slane %v3091, 2
        %v3093 = vadd.f32 %v3091, %v3092
        %v3094 = vrot.slane %v3093, 1
        %v3095 = vadd.f32 %v3093, %v3094
        %v3096 = vadd.f32 %v3050, %v3058
        %v3097 = vrot.slane %v3096, 4
        %v3098 = vadd.f32 %v3096, %v3097
        %v3099 = vrot.slane %v3098, 2
        %v3100 = vadd.f32 %v3098, %v3099
        %v3101 = vrot.slane %v3100, 1
        %v3102 = vadd.f32 %v3100, %v3101
        %v3103 = vadd.f32 %v3060, %v3068
        %v3104 = vrot.slane %v3103, 4
        %v3105 = vadd.f32 %v3103, %v3104
        %v3106 = vrot.slane %v3105, 2
        %v3107 = vadd.f32 %v3105, %v3106
        %v3108 = vrot.slane %v3107, 1
        %v3109 = vadd.f32 %v3107, %v3108
        %v3110 = vadd.f32 %v3062, %v3070
        %v3111 = vrot.slane %v3110, 4
        %v3112 = vadd.f32 %v3110, %v3111
        %v3113 = vrot.slane %v3112, 2
        %v3114 = vadd.f32 %v3112, %v3113
        %v3115 = vrot.slane %v3114, 1
        %v3116 = vadd.f32 %v3114, %v3115
        %v3117 = vadd.f32 %v3064, %v3072
        %v3118 = vrot.slane %v3117, 4
        %v3119 = vadd.f32 %v3117, %v3118
        %v3120 = vrot.slane %v3119, 2
        %v3121 = vadd.f32 %v3119, %v3120
        %v3122 = vrot.slane %v3121, 1
        %v3123 = vadd.f32 %v3121, %v3122
        %v3124 = vadd.f32 %v3066, %v3074
        %v3125 = vrot.slane %v3124, 4
        %v3126 = vadd.f32 %v3124, %v3125
        %v3127 = vrot.slane %v3126, 2
        %v3128 = vadd.f32 %v3126, %v3127
        %v3129 = vrot.slane %v3128, 1
        %v3130 = vadd.f32 %v3128, %v3129
        %v3131 = vlog2.pop %v3081
        %v3132 = vmul.f32 %v3131, 0.6931472
        %v3133 = vlog2.pop %v3088
        %v3134 = vmul.f32 %v3133, 0.6931472
        %v3135 = vlog2.pop %v3095
        %v3136 = vmul.f32 %v3135, 0.6931472
        %v3137 = vlog2.pop %v3102
        %v3138 = vmul.f32 %v3137, 0.6931472
        %v3139 = vlog2.pop %v3109
        %v3140 = vmul.f32 %v3139, 0.6931472
        %v3141 = vlog2.pop %v3116
        %v3142 = vmul.f32 %v3141, 0.6931472
        %v3143 = vlog2.pop %v3123
        %v3144 = vmul.f32 %v3143, 0.6931472
        %v3145 = vlog2.pop %v3130
        %v3146 = vmul.f32 %v3145, 0.6931472
        %v3147 = vadd.f32 %v2977, %v3132
        %v3148 = vadd.f32 %v2984, %v3134
        %v3149 = vadd.f32 %v2991, %v3136
        %v3150 = vadd.f32 %v2998, %v3138
        %v3151 = vadd.f32 %v3005, %v3140
        %v3152 = vadd.f32 %v3012, %v3142
        %v3153 = vadd.f32 %v3019, %v3144
        %v3154 = vadd.f32 %v3026, %v3146
        %v3155 = vmax.f32 %v1870, 0.0
        %v3156 = vmin.f32 %v3155, 14.99
        %v3158 = vrot.slane %v3156, 1
        %v3159 = vrot.slane %v3156, 2
        %v3160 = vrot.slane %v3156, 3
        %v3161 = vsel %vm2061, %v3156, %v3158
        %v3162 = vsel %vm2063, %v3159, %v3160
        %v3163 = vsel %vm936, %v3161, %v3162
        %v3164 = vsel %vm2066, %v3156, %v3158
        %v3165 = vsel %vm2068, %v3159, %v3160
        %v3166 = vsel %vm2070, %v3164, %v3165
        %v3167 = vrot.slane %v3166, 1
        %v3168 = vperm.slane %v3163, 0
        %v3169 = vperm.slane %v3163, 1
        %v3170 = vperm.slane %v3163, 2
        %v3171 = vperm.slane %v3163, 3
        %v3172 = vperm.slane %v3167, 0
        %v3173 = vperm.slane %v3167, 1
        %v3174 = vperm.slane %v3167, 2
        %v3175 = vperm.slane %v3167, 3
        %v3184 = vsub.f32 %v1865, %v3168
        %v3185 = vsub.f32 %v1865, %v3169
        %v3186 = vsub.f32 %v1865, %v3170
        %v3187 = vsub.f32 %v1865, %v3171
        %v3188 = vsub.f32 %v1866, %v3168
        %v3189 = vsub.f32 %v1866, %v3169
        %v3190 = vsub.f32 %v1866, %v3170
        %v3191 = vsub.f32 %v1866, %v3171
        %v3192 = vsub.f32 %v1865, %v3172
        %v3193 = vsub.f32 %v1865, %v3173
        %v3194 = vsub.f32 %v1865, %v3174
        %v3195 = vsub.f32 %v1865, %v3175
        %v3196 = vsub.f32 %v1866, %v3172
        %v3197 = vsub.f32 %v1866, %v3173
        %v3198 = vsub.f32 %v1866, %v3174
        %v3199 = vsub.f32 %v1866, %v3175
        %v3200 = vand.u32 2147483647, %v3184
        %v3201 = vand.u32 2147483647, %v3185
        %v3202 = vand.u32 2147483647, %v3186
        %v3203 = vand.u32 2147483647, %v3187
        %v3204 = vand.u32 2147483647, %v3188
        %v3205 = vand.u32 2147483647, %v3189
        %v3206 = vand.u32 2147483647, %v3190
        %v3207 = vand.u32 2147483647, %v3191
        %v3208 = vand.u32 2147483647, %v3192
        %v3209 = vand.u32 2147483647, %v3193
        %v3210 = vand.u32 2147483647, %v3194
        %v3211 = vand.u32 2147483647, %v3195
        %v3212 = vand.u32 2147483647, %v3196
        %v3213 = vand.u32 2147483647, %v3197
        %v3214 = vand.u32 2147483647, %v3198
        %v3215 = vand.u32 2147483647, %v3199
        %v3216 = vsub.f32 1.0, %v3200
        %v3217 = vsub.f32 1.0, %v3201
        %v3218 = vsub.f32 1.0, %v3202
        %v3219 = vsub.f32 1.0, %v3203
        %v3220 = vsub.f32 1.0, %v3204
        %v3221 = vsub.f32 1.0, %v3205
        %v3222 = vsub.f32 1.0, %v3206
        %v3223 = vsub.f32 1.0, %v3207
        %v3224 = vsub.f32 1.0, %v3208
        %v3225 = vsub.f32 1.0, %v3209
        %v3226 = vsub.f32 1.0, %v3210
        %v3227 = vsub.f32 1.0, %v3211
        %v3228 = vsub.f32 1.0, %v3212
        %v3229 = vsub.f32 1.0, %v3213
        %v3230 = vsub.f32 1.0, %v3214
        %v3231 = vsub.f32 1.0, %v3215
        %v3232 = vmax.f32 %v3216, 0.0
        %v3233 = vmax.f32 %v3217, 0.0
        %v3234 = vmax.f32 %v3218, 0.0
        %v3235 = vmax.f32 %v3219, 0.0
        %v3236 = vmax.f32 %v3220, 0.0
        %v3237 = vmax.f32 %v3221, 0.0
        %v3238 = vmax.f32 %v3222, 0.0
        %v3239 = vmax.f32 %v3223, 0.0
        %v3240 = vmax.f32 %v3224, 0.0
        %v3241 = vmax.f32 %v3225, 0.0
        %v3242 = vmax.f32 %v3226, 0.0
        %v3243 = vmax.f32 %v3227, 0.0
        %v3244 = vmax.f32 %v3228, 0.0
        %v3245 = vmax.f32 %v3229, 0.0
        %v3246 = vmax.f32 %v3230, 0.0
        %v3247 = vmax.f32 %v3231, 0.0
        %v3248 = vmul.f32 %v3232, %v1381
        %v3249 = vmul.f32 %v3233, %v1422
        %v3250 = vmul.f32 %v3234, %v1463
        %v3251 = vmul.f32 %v3235, %v1504
        %v3252 = vmul.f32 %v3236, %v1384
        %v3253 = vmul.f32 %v3237, %v1425
        %v3254 = vmul.f32 %v3238, %v1466
        %v3255 = vmul.f32 %v3239, %v1507
        %v3256 = vmul.f32 %v3240, %v1737
        %v3257 = vmul.f32 %v3241, %v1778
        %v3258 = vmul.f32 %v3242, %v1819
        %v3259 = vmul.f32 %v3243, %v1860
        %v3260 = vmul.f32 %v3244, %v1740
        %v3261 = vmul.f32 %v3245, %v1781
        %v3262 = vmul.f32 %v3246, %v1822
        %v3263 = vmul.f32 %v3247, %v1863
        %v3264 = vadd.f32 %v3248, %v3252
        %v3265 = vrot.slane %v3264, 4
        %v3266 = vadd.f32 %v3264, %v3265
        %v3267 = vrot.slane %v3266, 2
        %v3268 = vadd.f32 %v3266, %v3267
        %v3269 = vrot.slane %v3268, 1
        %v3270 = vadd.f32 %v3268, %v3269
        %v3271 = vadd.f32 %v3249, %v3253
        %v3272 = vrot.slane %v3271, 4
        %v3273 = vadd.f32 %v3271, %v3272
        %v3274 = vrot.slane %v3273, 2
        %v3275 = vadd.f32 %v3273, %v3274
        %v3276 = vrot.slane %v3275, 1
        %v3277 = vadd.f32 %v3275, %v3276
        %v3278 = vadd.f32 %v3250, %v3254
        %v3279 = vrot.slane %v3278, 4
        %v3280 = vadd.f32 %v3278, %v3279
        %v3281 = vrot.slane %v3280, 2
        %v3282 = vadd.f32 %v3280, %v3281
        %v3283 = vrot.slane %v3282, 1
        %v3284 = vadd.f32 %v3282, %v3283
        %v3285 = vadd.f32 %v3251, %v3255
        %v3286 = vrot.slane %v3285, 4
        %v3287 = vadd.f32 %v3285, %v3286
        %v3288 = vrot.slane %v3287, 2
        %v3289 = vadd.f32 %v3287, %v3288
        %v3290 = vrot.slane %v3289, 1
        %v3291 = vadd.f32 %v3289, %v3290
        %v3292 = vadd.f32 %v3256, %v3260
        %v3293 = vrot.slane %v3292, 4
        %v3294 = vadd.f32 %v3292, %v3293
        %v3295 = vrot.slane %v3294, 2
        %v3296 = vadd.f32 %v3294, %v3295
        %v3297 = vrot.slane %v3296, 1
        %v3298 = vadd.f32 %v3296, %v3297
        %v3299 = vadd.f32 %v3257, %v3261
        %v3300 = vrot.slane %v3299, 4
        %v3301 = vadd.f32 %v3299, %v3300
        %v3302 = vrot.slane %v3301, 2
        %v3303 = vadd.f32 %v3301, %v3302
        %v3304 = vrot.slane %v3303, 1
        %v3305 = vadd.f32 %v3303, %v3304
        %v3306 = vadd.f32 %v3258, %v3262
        %v3307 = vrot.slane %v3306, 4
        %v3308 = vadd.f32 %v3306, %v3307
        %v3309 = vrot.slane %v3308, 2
        %v3310 = vadd.f32 %v3308, %v3309
        %v3311 = vrot.slane %v3310, 1
        %v3312 = vadd.f32 %v3310, %v3311
        %v3313 = vadd.f32 %v3259, %v3263
        %v3314 = vrot.slane %v3313, 4
        %v3315 = vadd.f32 %v3313, %v3314
        %v3316 = vrot.slane %v3315, 2
        %v3317 = vadd.f32 %v3315, %v3316
        %v3318 = vrot.slane %v3317, 1
        %v3319 = vadd.f32 %v3317, %v3318
        %v3320 = vsub.f32 %v3147, %v3270
        %v3321 = vsub.f32 %v3148, %v3277
        %v3322 = vsub.f32 %v3149, %v3284
        %v3323 = vsub.f32 %v3150, %v3291
        %v3324 = vsub.f32 %v3151, %v3298
        %v3325 = vsub.f32 %v3152, %v3305
        %v3326 = vsub.f32 %v3153, %v3312
        %v3327 = vsub.f32 %v3154, %v3319
        %v3328 = vadd.f32 %v2963, %v3320
        %v3329 = vadd.f32 %v2964, %v3321
        %v3330 = vadd.f32 %v2965, %v3322
        %v3331 = vadd.f32 %v2966, %v3323
        %v3332 = vadd.f32 %v2967, %v3324
        %v3333 = vadd.f32 %v2968, %v3325
        %v3334 = vadd.f32 %v2969, %v3326
        %v3335 = vadd.f32 %v2970, %v3327
        %3337 = vst [vmem:[#allocation1] ss:$4 sm:$0xff] %v837
        %v3338 = vld.sshfl [vmem:[#allocation1] sm:$0xff pattern:$0x73625140]
        %v3339 = vld.sshfl [vmem:[#allocation1 + $0x8] sm:$0xff pattern:$0x73625140]
        %v3340 = vld.sshfl [vmem:[#allocation1 + $0x10] sm:$0xff pattern:$0x73625140]
        %v3341 = vld.sshfl [vmem:[#allocation1 + $0x18] sm:$0xff pattern:$0x73625140]
        %v3342 = vrot.slane %v3338, 1
        %v3343 = vrot.slane %v3339, 1
        %v3344 = vrot.slane %v3340, 1
        %v3345 = vrot.slane %v3341, 1
        %v3354 = vmul.f32 %v3328, %v3338
        %v3355 = vmul.f32 %v3329, %v3339
        %v3356 = vmul.f32 %v3330, %v3340
        %v3357 = vmul.f32 %v3331, %v3341
        %v3358 = vmul.f32 %v3332, %v3342
        %v3359 = vmul.f32 %v3333, %v3343
        %v3360 = vmul.f32 %v3334, %v3344
        %v3361 = vmul.f32 %v3335, %v3345
        %v3370 = vrot.slane %v3358, 7
        %v3371 = vsel %vm2066, %v3370, %v3354
        %v3372 = vrot.slane %v3359, 7
        %v3373 = vsel %vm2066, %v3372, %v3355
        %v3374 = vrot.slane %v3360, 7
        %v3375 = vsel %vm2066, %v3374, %v3356
        %v3376 = vrot.slane %v3361, 7
        %v3377 = vsel %vm2066, %v3376, %v3357
        %v3382 = vsel %vm936, %v3371, 0.0
        %v3383 = vrot.slane %v3382, 4
        %v3384 = vadd.f32 %v3382, %v3383
        %v3385 = vrot.slane %v3384, 2
        %v3386 = vadd.f32 %v3384, %v3385
        %v3387 = vrot.slane %v3386, 1
        %v3388 = vadd.f32 %v3386, %v3387
        %v3389 = vsel %vm936, %v3373, 0.0
        %v3390 = vrot.slane %v3389, 4
        %v3391 = vadd.f32 %v3389, %v3390
        %v3392 = vrot.slane %v3391, 2
        %v3393 = vadd.f32 %v3391, %v3392
        %v3394 = vrot.slane %v3393, 1
        %v3395 = vadd.f32 %v3393, %v3394
        %v3396 = vsel %vm936, %v3375, 0.0
        %v3397 = vrot.slane %v3396, 4
        %v3398 = vadd.f32 %v3396, %v3397
        %v3399 = vrot.slane %v3398, 2
        %v3400 = vadd.f32 %v3398, %v3399
        %v3401 = vrot.slane %v3400, 1
        %v3402 = vadd.f32 %v3400, %v3401
        %v3403 = vsel %vm936, %v3377, 0.0
        %v3404 = vrot.slane %v3403, 4
        %v3405 = vadd.f32 %v3403, %v3404
        %v3406 = vrot.slane %v3405, 2
        %v3407 = vadd.f32 %v3405, %v3406
        %v3408 = vrot.slane %v3407, 1
        %v3409 = vadd.f32 %v3407, %v3408
        %v3410 = vmul.f32 %v3388, 0.25
        %v3411 = vmul.f32 %v3395, 0.25
        %v3412 = vmul.f32 %v3402, 0.25
        %v3413 = vmul.f32 %v3409, 0.25
        %v3418 = vrot.slane %v950, 7
        %v3419 = vrot.slane %v957, 6
        %v3420 = vrot.slane %v964, 5
        %v3421 = vsel %vm2061, %v943, %v3418
        %v3422 = vsel %vm2063, %v3419, %v3420
        %v3423 = vsel %vm936, %v3421, %v3422
        %v3425 = vlaneseq
        %vm3426 = vcmp.ge.s32.totalorder %v3425, 0
        %vm3427 = vcmp.lt.s32.totalorder %v3425, 512
        %vm3428 = vmand %vm3426, %vm3427
        %3429 = vst.msk [vmem:[%s826] ss:$2 sm:$0xf] %vm3428, %v3423
        %v3434 = vrot.slane %v3411, 7
        %v3435 = vrot.slane %v3412, 6
        %v3436 = vrot.slane %v3413, 5
        %v3437 = vsel %vm2061, %v3410, %v3434
        %v3438 = vsel %vm2063, %v3435, %v3436
        %v3439 = vsel %vm936, %v3437, %v3438
        %s3441 = scalar_lea.vmem %s826, 1
        %3442 = vst.msk [vmem:[%s3441] ss:$2 sm:$0xf] %vm3428, %v3439
        %s3443 = smul.u32 4, %s15
        %p3444 = scmp.lt.s32.totalorder %s3443, 19
        %s3445 = scalar_select %p3444, %s3443, 19
        %s3446 = smul.addr %s3445, 2
        %s3447 = scalar_lea.vmem %s2, %s3446
        %p3448 = scmp.lt.s32.totalorder %s15, 4
        %s3449 = scalar_select %p3448, %s15, 4
        %s3450 = smul.addr %s3449, 4
        %s3451 = smul.addr %s3450, 2
        %s3452 = scalar_lea.vmem %s3, %s3451
        // Predicated region
        $region105: #{bbox_loss.1} parent=95 // pred_check
          %p3453 = pneg %p85
        $region106: #{bbox_loss.1} parent=95 // pred_check_branch
          %3455 = sbr.rel (%p3453) target = $region108
        $region107: #{bbox_loss.1} parent=95 // pred_region
          %s3456 = smul.u32 4, %s15
        $region108: #{bbox_loss.1} parent=95 // pred_fallthru
          _
        // Predicated region
        $region109: #{bbox_loss.1} parent=95 // pred_check
          %p3457 = pneg %p111
        $region110: #{bbox_loss.1} parent=95 // pred_check_branch
          %3459 = sbr.rel (%p3457) target = $region112
        $region111: #{bbox_loss.1} parent=95 // pred_region
          _
        $region112: #{bbox_loss.1} parent=95 // pred_fallthru
          _
      $region96: #{bbox_loss.1} parent=5 // pred_fallthru
        _
      %p3460 = scmp.le.s32.totalorder 2, %s10
      // Predicated region
      $region113: #{bbox_loss.1} parent=5 // pred_check
        %p3461 = pneg %p3460
      $region114: #{bbox_loss.1} parent=5 // pred_check_branch
        %3463 = sbr.rel (%p3461) target = $region116
      $region115: #{bbox_loss.1} parent=5 // pred_region
        %s3464 = ssub.s32 %s10, 2
        // Predicated region
        $region117: #{bbox_loss.1} parent=115 // pred_check
          %p3465 = pneg %p91
        $region118: #{bbox_loss.1} parent=115 // pred_check_branch
          %3467 = sbr.rel (%p3465) target = $region120
        $region119: #{bbox_loss.1} parent=115 // pred_region
          %s3468 = smul.u32 4, %s16
          %p3469 = scmp.lt.s32.totalorder %s3468, 19
          %s3470 = scalar_select %p3469, %s3468, 19
          %s3471 = smul.addr %s3470, 2
          %s3472 = scalar_lea.vmem %s2, %s3471
        $region120: #{bbox_loss.1} parent=115 // pred_fallthru
          _
        // Predicated region
        $region121: #{bbox_loss.1} parent=115 // pred_check
          %p3473 = pneg %p117
        $region122: #{bbox_loss.1} parent=115 // pred_check_branch
          %3475 = sbr.rel (%p3473) target = $region124
        $region123: #{bbox_loss.1} parent=115 // pred_region
          %p3476 = scmp.lt.s32.totalorder %s16, 4
          %s3477 = scalar_select %p3476, %s16, 4
          %s3478 = smul.addr %s3477, 4
          %s3479 = smul.addr %s3478, 2
          %s3480 = scalar_lea.vmem %s3, %s3479
        $region124: #{bbox_loss.1} parent=115 // pred_fallthru
          _
      $region116: #{bbox_loss.1} parent=5 // pred_fallthru
        _
    $region6: #{bbox_loss.1} parent=1 // loop_footer
      %s14 = sadd.s32 1, %s10
    $region7: #{bbox_loss.1} parent=1 // loop_footer_branch
      %9 = sbr.rel target = $region3
    $region8: #{bbox_loss.1} parent=1 // loop_exit
      _

</llo_original>
